<compile_context>
chip_gen: v5e
topology: v5e:2x2
jax: 0.10.0
libtpu: 0.0.40
codegen_flags: <defaults>
</compile_context>

<pallas_src>
import math

import jax
import jax.numpy as jnp
from jax.experimental import pallas as pl
from jax.experimental.pallas import tpu as pltpu


# ----------------------------------------------------------------------------
# Fused block kernel: 3x3 conv (implicit im2col) + BN + (downsample) + add + PReLU
# ----------------------------------------------------------------------------
def _make_block_kernel(Ho, Wo, Hq, Cin, Cout, stride, has_downsample):
    """Builds the per-image kernel.

    Refs (per grid step; batch dim squeezed via BlockSpec None):
      x_ref     : (stride*stride*Hq, Wq, Cin)  bf16  phase-split, SAME-padded input
      w_ref     : (9*Cin, Cout)                bf16  3x3 conv weight, tap-major rows
      scale_ref : (1, Cout) f32   folded BN scale
      shift_ref : (1, Cout) f32   folded BN shift
      alpha_ref : (1, Cout) f32   PReLU slope
      [ds_w_ref : (Cin, Cout) bf16, ds_scale_ref/ds_shift_ref : (1, Cout) f32]
      o_ref     : (Ho, Wo, Cout) f32
    """
    s = stride

    def tap(x_ref, dy, dx):
        # Window of the padded input at tap offset (dy, dx) with stride s,
        # expressed as a plain slice of the phase-decomposed layout.
        phase = (dy % s) * s + (dx % s)
        row0 = phase * Hq + dy // s
        col0 = dx // s
        return x_ref[pl.ds(row0, Ho), pl.ds(col0, Wo), :]   # (Ho, Wo, Cin) bf16

    def kernel(x_ref, w_ref, scale_ref, shift_ref, alpha_ref, *rest):
        if has_downsample:
            ds_w_ref, ds_scale_ref, ds_shift_ref, o_ref = rest
        else:
            (o_ref,) = rest

        # --- 3x3 conv: 9 bf16 MXU dots accumulated in f32 (implicit im2col) ---
        acc = jnp.zeros((Ho * Wo, Cout), jnp.float32)
        for t in range(9):
            dy, dx = divmod(t, 3)
            win = tap(x_ref, dy, dx).reshape(Ho * Wo, Cin)
            acc = acc + jnp.dot(win, w_ref[pl.ds(t * Cin, Cin), :],
                                preferred_element_type=jnp.float32)

        # --- fused eval-mode BatchNorm ---
        y = acc * scale_ref[...] + shift_ref[...]

        # --- residual branch (identity, or fused 1x1 strided conv + BN) ---
        if has_downsample:
            ctr = tap(x_ref, 1, 1).reshape(Ho * Wo, Cin)     # strided centers = x[::s, ::s]
            res = jnp.dot(ctr, ds_w_ref[...], preferred_element_type=jnp.float32)
            res = res * ds_scale_ref[...] + ds_shift_ref[...]
        else:
            res = tap(x_ref, 1, 1).reshape(Ho * Wo, Cout).astype(jnp.float32)

        y = y + res
        # --- PReLU ---
        y = jnp.where(y >= 0.0, y, alpha_ref[...] * y)
        o_ref[...] = y.reshape(Ho, Wo, Cout)

    return kernel


# ----------------------------------------------------------------------------
# Wrapper: layout prep + pallas_call
# ----------------------------------------------------------------------------
def basic_block_forward(x_nchw, params):
    """BasicBlock_cifar: out = PReLU(BN(conv3x3_s(x)) + residual)."""
    s = int(params['stride'])
    has_ds = 'ds_w' in params

    x = jnp.transpose(x_nchw, (0, 2, 3, 1)).astype(jnp.float32)       # NCHW -> NHWC
    N, H, W, Cin = x.shape
    Cout = params['w'].shape[-1]
    assert H % s == 0 and W % s == 0
    if not has_ds:
        assert s == 1 and Cin == Cout, "identity residual needs matching shapes"
    Ho, Wo = H // s, W // s

    # SAME padding for the 3x3 taps; MXU operands in bf16.
    xp = jnp.pad(x, ((0, 0), (1, 1), (1, 1), (0, 0))).astype(jnp.bfloat16)
    # Space-to-depth phase split so strided taps become unstrided slices.
    if s == 1:
        x_ph = xp[:, None]                                            # (N,1,H+2,W+2,C)
    else:
        x_ph = jnp.stack([xp[:, p::s, q::s, :]
                          for p in range(s) for q in range(s)], axis=1)
    Hq, Wq = x_ph.shape[2], x_ph.shape[3]
    x_flat = x_ph.reshape(N, s * s * Hq, Wq, Cin)

    w2d = params['w'].reshape(9 * Cin, Cout).astype(jnp.bfloat16)     # (dy,dx,ci) rows
    scale = params['bn_scale'].reshape(1, Cout).astype(jnp.float32)
    shift = params['bn_shift'].reshape(1, Cout).astype(jnp.float32)
    alpha = params['alpha'].reshape(1, Cout).astype(jnp.float32)

    vec_spec = pl.BlockSpec((1, Cout), lambda n: (0, 0))
    inputs = [x_flat, w2d, scale, shift, alpha]
    in_specs = [
        pl.BlockSpec((None, s * s * Hq, Wq, Cin), lambda n: (n, 0, 0, 0)),
        pl.BlockSpec((9 * Cin, Cout), lambda n: (0, 0)),   # weight stays VMEM-resident
        vec_spec, vec_spec, vec_spec,
    ]
    if has_ds:
        inputs += [params['ds_w'].astype(jnp.bfloat16),
                   params['ds_bn_scale'].reshape(1, Cout).astype(jnp.float32),
                   params['ds_bn_shift'].reshape(1, Cout).astype(jnp.float32)]
        in_specs += [pl.BlockSpec((Cin, Cout), lambda n: (0, 0)),
                     vec_spec, vec_spec]

    kernel = _make_block_kernel(Ho, Wo, Hq, Cin, Cout, s, has_ds)
    out = pl.pallas_call(
        kernel,
        out_shape=jax.ShapeDtypeStruct((N, Ho, Wo, Cout), jnp.float32),
        grid_spec=pltpu.PrefetchScalarGridSpec(
            num_scalar_prefetch=0,
            grid=(N,),                                   # one image per grid step
            in_specs=in_specs,
            out_specs=pl.BlockSpec((None, Ho, Wo, Cout), lambda n: (n, 0, 0, 0)),
        ),
        compiler_params=pltpu.CompilerParams(
            dimension_semantics=("parallel",)),
    )(*inputs)
    return jnp.transpose(out, (0, 3, 1, 2))                           # NHWC -> NCHW


# ----------------------------------------------------------------------------
# Deterministic parameter construction (eval-mode BN folded to scale/shift)
# ----------------------------------------------------------------------------
def init_block_params(key, inplanes, planes, stride=1, downsample=False, eps=1e-5):
    Cout = 4 * planes
    keys = jax.random.split(key, 4)

    def bn(k, c):
        k1, k2, k3, k4 = jax.random.split(k, 4)
        gamma = 1.0 + 0.1 * jax.random.normal(k1, (c,), jnp.float32)
        beta = 0.1 * jax.random.normal(k2, (c,), jnp.float32)
        mean = 0.1 * jax.random.normal(k3, (c,), jnp.float32)
        var = 1.0 + jnp.abs(0.1 * jax.random.normal(k4, (c,), jnp.float32))
        scale = gamma * jax.lax.rsqrt(var + eps)
        shift = beta - mean * scale
        return scale, shift

    p = {'stride': stride}
    p['w'] = (jax.random.normal(keys[0], (3, 3, inplanes, Cout), jnp.float32)
              / math.sqrt(9 * inplanes))
    p['bn_scale'], p['bn_shift'] = bn(keys[1], Cout)
    p['alpha'] = jnp.full((Cout,), 0.25, jnp.float32)   # PyTorch PReLU default
    if downsample:
        p['ds_w'] = (jax.random.normal(keys[2], (inplanes, Cout), jnp.float32)
                     / math.sqrt(inplanes))
        p['ds_bn_scale'], p['ds_bn_shift'] = bn(keys[3], Cout)
    return p


# ----------------------------------------------------------------------------
# Pure-JAX reference (same bf16 operand rounding as the kernel)
# ----------------------------------------------------------------------------
def basic_block_reference(x_nchw, params):
    s = int(params['stride'])
    x = jnp.transpose(x_nchw, (0, 2, 3, 1)).astype(jnp.float32)
    xb = x.astype(jnp.bfloat16)
    w = params['w'].astype(jnp.bfloat16)
    dn = ('NHWC', 'HWIO', 'NHWC')
    out = jax.lax.conv_general_dilated(xb, w, (s, s), ((1, 1), (1, 1)),
                                       dimension_numbers=dn,
                                       preferred_element_type=jnp.float32)
    out = out * params['bn_scale'] + params['bn_shift']
    if 'ds_w' in params:
        cin, cout = params['ds_w'].shape
        dsw = params['ds_w'].astype(jnp.bfloat16).reshape(1, 1, cin, cout)
        res = jax.lax.conv_general_dilated(xb, dsw, (s, s), ((0, 0), (0, 0)),
                                           dimension_numbers=dn,
                                           preferred_element_type=jnp.float32)
        res = res * params['ds_bn_scale'] + params['ds_bn_shift']
    else:
        res = xb.astype(jnp.float32)
    out = out + res
    out = jnp.where(out >= 0.0, out, params['alpha'] * out)
    return jnp.transpose(out, (0, 3, 1, 2))


if __name__ == "__main__":
    root = jax.random.PRNGKey(0)
    kx1, kx2, kp1, kp2 = jax.random.split(root, 4)

    # Block 1: stride=1, identity residual (inplanes == planes*4 = 128).
    x1 = jax.random.normal(kx1, (2, 128, 16, 16), jnp.float32)
    p1 = init_block_params(kp1, inplanes=128, planes=32, stride=1, downsample=False)
    out1 = jax.block_until_ready(basic_block_forward(x1, p1))
    ref1 = basic_block_reference(x1, p1)
    assert out1.shape == (2, 128, 16, 16)
    assert bool(jnp.all(jnp.isfinite(out1)))
    assert bool(jnp.allclose(out1, ref1, atol=1e-2, rtol=1e-2))

    # Block 2: stride=2 with downsample (1x1 strided conv + BN).
    x2 = jax.random.normal(kx2, (2, 64, 16, 16), jnp.float32)
    p2 = init_block_params(kp2, inplanes=64, planes=32, stride=2, downsample=True)
    out2 = jax.block_until_ready(basic_block_forward(x2, p2))
    ref2 = basic_block_reference(x2, p2)
    assert out2.shape == (2, 128, 8, 8)
    assert bool(jnp.all(jnp.isfinite(out2)))
    assert bool(jnp.allclose(out2, ref2, atol=1e-2, rtol=1e-2))

    print("KERNEL_OK")
</pallas_src>

<mosaic_0001>
module attributes {stable_mosaic.version = 11 : i64} {
  func.func @kernel(%arg0: i32, %arg1: memref<1x18x18x128xbf16, #tpu.memory_space<vmem>>, %arg2: memref<1152x128xbf16, #tpu.memory_space<vmem>>, %arg3: memref<1x128xf32, #tpu.memory_space<vmem>>, %arg4: memref<1x128xf32, #tpu.memory_space<vmem>>, %arg5: memref<1x128xf32, #tpu.memory_space<vmem>>, %arg6: memref<1x16x16x128xf32, #tpu.memory_space<vmem>>) attributes {dimension_semantics = [#tpu.dimension_semantics<parallel>], iteration_bounds = array<i64: 2>, scalar_prefetch = 0 : i64, scratch_operands = 0 : i64, tpu.core_type = #tpu.core_type<tc>, window_params = [{transform_indices = @transform_0, window_bounds = array<i64: 1, 18, 18, 128>}, {pipeline_mode = #tpu.pipeline_mode<synchronous>, transform_indices = @transform_1, window_bounds = array<i64: 1152, 128>}, {pipeline_mode = #tpu.pipeline_mode<synchronous>, transform_indices = @transform_2, window_bounds = array<i64: 1, 128>}, {pipeline_mode = #tpu.pipeline_mode<synchronous>, transform_indices = @transform_3, window_bounds = array<i64: 1, 128>}, {pipeline_mode = #tpu.pipeline_mode<synchronous>, transform_indices = @transform_4, window_bounds = array<i64: 1, 128>}, {transform_indices = @transform_5, window_bounds = array<i64: 1, 16, 16, 128>}]} {
    %cst = arith.constant 0.000000e+00 : f32
    %0 = vector.broadcast %cst : f32 to vector<256x128xf32>
    %c0 = arith.constant 0 : index
    %c0_0 = arith.constant 0 : index
    %c0_1 = arith.constant 0 : index
    %c0_2 = arith.constant 0 : index
    %1 = vector.load %arg1[%c0, %c0_0, %c0_1, %c0_2] : memref<1x18x18x128xbf16, #tpu.memory_space<vmem>>, vector<1x16x16x128xbf16>
    %2 = vector.shape_cast %1 : vector<1x16x16x128xbf16> to vector<16x16x128xbf16>
    %3 = vector.shape_cast %2 : vector<16x16x128xbf16> to vector<256x128xbf16>
    %c0_3 = arith.constant 0 : index
    %c0_4 = arith.constant 0 : index
    %4 = vector.load %arg2[%c0_3, %c0_4] : memref<1152x128xbf16, #tpu.memory_space<vmem>>, vector<128x128xbf16>
    %cst_5 = arith.constant dense<0.000000e+00> : vector<256x128xf32>
    %5 = tpu.matmul %3, %4, %cst_5 {dimension_numbers = #tpu.dot_dimension_numbers<[1], [0], [0], [1], [0, 0, 1, 1], [], []>} : vector<256x128xbf16>, vector<128x128xbf16>, vector<256x128xf32> -> vector<256x128xf32>
    %6 = arith.addf %0, %5 : vector<256x128xf32>
    %c0_6 = arith.constant 0 : index
    %c0_7 = arith.constant 0 : index
    %c1 = arith.constant 1 : index
    %c0_8 = arith.constant 0 : index
    %7 = vector.load %arg1[%c0_6, %c0_7, %c1, %c0_8] : memref<1x18x18x128xbf16, #tpu.memory_space<vmem>>, vector<1x16x16x128xbf16>
    %8 = vector.shape_cast %7 : vector<1x16x16x128xbf16> to vector<16x16x128xbf16>
    %9 = vector.shape_cast %8 : vector<16x16x128xbf16> to vector<256x128xbf16>
    %c128 = arith.constant 128 : index
    %c0_9 = arith.constant 0 : index
    %10 = vector.load %arg2[%c128, %c0_9] : memref<1152x128xbf16, #tpu.memory_space<vmem>>, vector<128x128xbf16>
    %cst_10 = arith.constant dense<0.000000e+00> : vector<256x128xf32>
    %11 = tpu.matmul %9, %10, %cst_10 {dimension_numbers = #tpu.dot_dimension_numbers<[1], [0], [0], [1], [0, 0, 1, 1], [], []>} : vector<256x128xbf16>, vector<128x128xbf16>, vector<256x128xf32> -> vector<256x128xf32>
    %12 = arith.addf %6, %11 : vector<256x128xf32>
    %c0_11 = arith.constant 0 : index
    %c0_12 = arith.constant 0 : index
    %c2 = arith.constant 2 : index
    %c0_13 = arith.constant 0 : index
    %13 = vector.load %arg1[%c0_11, %c0_12, %c2, %c0_13] : memref<1x18x18x128xbf16, #tpu.memory_space<vmem>>, vector<1x16x16x128xbf16>
    %14 = vector.shape_cast %13 : vector<1x16x16x128xbf16> to vector<16x16x128xbf16>
    %15 = vector.shape_cast %14 : vector<16x16x128xbf16> to vector<256x128xbf16>
    %c256 = arith.constant 256 : index
    %c0_14 = arith.constant 0 : index
    %16 = vector.load %arg2[%c256, %c0_14] : memref<1152x128xbf16, #tpu.memory_space<vmem>>, vector<128x128xbf16>
    %cst_15 = arith.constant dense<0.000000e+00> : vector<256x128xf32>
    %17 = tpu.matmul %15, %16, %cst_15 {dimension_numbers = #tpu.dot_dimension_numbers<[1], [0], [0], [1], [0, 0, 1, 1], [], []>} : vector<256x128xbf16>, vector<128x128xbf16>, vector<256x128xf32> -> vector<256x128xf32>
    %18 = arith.addf %12, %17 : vector<256x128xf32>
    %c0_16 = arith.constant 0 : index
    %c1_17 = arith.constant 1 : index
    %c0_18 = arith.constant 0 : index
    %c0_19 = arith.constant 0 : index
    %19 = vector.load %arg1[%c0_16, %c1_17, %c0_18, %c0_19] : memref<1x18x18x128xbf16, #tpu.memory_space<vmem>>, vector<1x16x16x128xbf16>
    %20 = vector.shape_cast %19 : vector<1x16x16x128xbf16> to vector<16x16x128xbf16>
    %21 = vector.shape_cast %20 : vector<16x16x128xbf16> to vector<256x128xbf16>
    %c384 = arith.constant 384 : index
    %c0_20 = arith.constant 0 : index
    %22 = vector.load %arg2[%c384, %c0_20] : memref<1152x128xbf16, #tpu.memory_space<vmem>>, vector<128x128xbf16>
    %cst_21 = arith.constant dense<0.000000e+00> : vector<256x128xf32>
    %23 = tpu.matmul %21, %22, %cst_21 {dimension_numbers = #tpu.dot_dimension_numbers<[1], [0], [0], [1], [0, 0, 1, 1], [], []>} : vector<256x128xbf16>, vector<128x128xbf16>, vector<256x128xf32> -> vector<256x128xf32>
    %24 = arith.addf %18, %23 : vector<256x128xf32>
    %c0_22 = arith.constant 0 : index
    %c1_23 = arith.constant 1 : index
    %c1_24 = arith.constant 1 : index
    %c0_25 = arith.constant 0 : index
    %25 = vector.load %arg1[%c0_22, %c1_23, %c1_24, %c0_25] : memref<1x18x18x128xbf16, #tpu.memory_space<vmem>>, vector<1x16x16x128xbf16>
    %26 = vector.shape_cast %25 : vector<1x16x16x128xbf16> to vector<16x16x128xbf16>
    %27 = vector.shape_cast %26 : vector<16x16x128xbf16> to vector<256x128xbf16>
    %c512 = arith.constant 512 : index
    %c0_26 = arith.constant 0 : index
    %28 = vector.load %arg2[%c512, %c0_26] : memref<1152x128xbf16, #tpu.memory_space<vmem>>, vector<128x128xbf16>
    %cst_27 = arith.constant dense<0.000000e+00> : vector<256x128xf32>
    %29 = tpu.matmul %27, %28, %cst_27 {dimension_numbers = #tpu.dot_dimension_numbers<[1], [0], [0], [1], [0, 0, 1, 1], [], []>} : vector<256x128xbf16>, vector<128x128xbf16>, vector<256x128xf32> -> vector<256x128xf32>
    %30 = arith.addf %24, %29 : vector<256x128xf32>
    %c0_28 = arith.constant 0 : index
    %c1_29 = arith.constant 1 : index
    %c2_30 = arith.constant 2 : index
    %c0_31 = arith.constant 0 : index
    %31 = vector.load %arg1[%c0_28, %c1_29, %c2_30, %c0_31] : memref<1x18x18x128xbf16, #tpu.memory_space<vmem>>, vector<1x16x16x128xbf16>
    %32 = vector.shape_cast %31 : vector<1x16x16x128xbf16> to vector<16x16x128xbf16>
    %33 = vector.shape_cast %32 : vector<16x16x128xbf16> to vector<256x128xbf16>
    %c640 = arith.constant 640 : index
    %c0_32 = arith.constant 0 : index
    %34 = vector.load %arg2[%c640, %c0_32] : memref<1152x128xbf16, #tpu.memory_space<vmem>>, vector<128x128xbf16>
    %cst_33 = arith.constant dense<0.000000e+00> : vector<256x128xf32>
    %35 = tpu.matmul %33, %34, %cst_33 {dimension_numbers = #tpu.dot_dimension_numbers<[1], [0], [0], [1], [0, 0, 1, 1], [], []>} : vector<256x128xbf16>, vector<128x128xbf16>, vector<256x128xf32> -> vector<256x128xf32>
    %36 = arith.addf %30, %35 : vector<256x128xf32>
    %c0_34 = arith.constant 0 : index
    %c2_35 = arith.constant 2 : index
    %c0_36 = arith.constant 0 : index
    %c0_37 = arith.constant 0 : index
    %37 = vector.load %arg1[%c0_34, %c2_35, %c0_36, %c0_37] : memref<1x18x18x128xbf16, #tpu.memory_space<vmem>>, vector<1x16x16x128xbf16>
    %38 = vector.shape_cast %37 : vector<1x16x16x128xbf16> to vector<16x16x128xbf16>
    %39 = vector.shape_cast %38 : vector<16x16x128xbf16> to vector<256x128xbf16>
    %c768 = arith.constant 768 : index
    %c0_38 = arith.constant 0 : index
    %40 = vector.load %arg2[%c768, %c0_38] : memref<1152x128xbf16, #tpu.memory_space<vmem>>, vector<128x128xbf16>
    %cst_39 = arith.constant dense<0.000000e+00> : vector<256x128xf32>
    %41 = tpu.matmul %39, %40, %cst_39 {dimension_numbers = #tpu.dot_dimension_numbers<[1], [0], [0], [1], [0, 0, 1, 1], [], []>} : vector<256x128xbf16>, vector<128x128xbf16>, vector<256x128xf32> -> vector<256x128xf32>
    %42 = arith.addf %36, %41 : vector<256x128xf32>
    %c0_40 = arith.constant 0 : index
    %c2_41 = arith.constant 2 : index
    %c1_42 = arith.constant 1 : index
    %c0_43 = arith.constant 0 : index
    %43 = vector.load %arg1[%c0_40, %c2_41, %c1_42, %c0_43] : memref<1x18x18x128xbf16, #tpu.memory_space<vmem>>, vector<1x16x16x128xbf16>
    %44 = vector.shape_cast %43 : vector<1x16x16x128xbf16> to vector<16x16x128xbf16>
    %45 = vector.shape_cast %44 : vector<16x16x128xbf16> to vector<256x128xbf16>
    %c896 = arith.constant 896 : index
    %c0_44 = arith.constant 0 : index
    %46 = vector.load %arg2[%c896, %c0_44] : memref<1152x128xbf16, #tpu.memory_space<vmem>>, vector<128x128xbf16>
    %cst_45 = arith.constant dense<0.000000e+00> : vector<256x128xf32>
    %47 = tpu.matmul %45, %46, %cst_45 {dimension_numbers = #tpu.dot_dimension_numbers<[1], [0], [0], [1], [0, 0, 1, 1], [], []>} : vector<256x128xbf16>, vector<128x128xbf16>, vector<256x128xf32> -> vector<256x128xf32>
    %48 = arith.addf %42, %47 : vector<256x128xf32>
    %c0_46 = arith.constant 0 : index
    %c2_47 = arith.constant 2 : index
    %c2_48 = arith.constant 2 : index
    %c0_49 = arith.constant 0 : index
    %49 = vector.load %arg1[%c0_46, %c2_47, %c2_48, %c0_49] : memref<1x18x18x128xbf16, #tpu.memory_space<vmem>>, vector<1x16x16x128xbf16>
    %50 = vector.shape_cast %49 : vector<1x16x16x128xbf16> to vector<16x16x128xbf16>
    %51 = vector.shape_cast %50 : vector<16x16x128xbf16> to vector<256x128xbf16>
    %c1024 = arith.constant 1024 : index
    %c0_50 = arith.constant 0 : index
    %52 = vector.load %arg2[%c1024, %c0_50] : memref<1152x128xbf16, #tpu.memory_space<vmem>>, vector<128x128xbf16>
    %cst_51 = arith.constant dense<0.000000e+00> : vector<256x128xf32>
    %53 = tpu.matmul %51, %52, %cst_51 {dimension_numbers = #tpu.dot_dimension_numbers<[1], [0], [0], [1], [0, 0, 1, 1], [], []>} : vector<256x128xbf16>, vector<128x128xbf16>, vector<256x128xf32> -> vector<256x128xf32>
    %54 = arith.addf %48, %53 : vector<256x128xf32>
    %c0_52 = arith.constant 0 : index
    %c0_53 = arith.constant 0 : index
    %55 = vector.load %arg3[%c0_52, %c0_53] : memref<1x128xf32, #tpu.memory_space<vmem>>, vector<1x128xf32>
    %56 = vector.broadcast %55 : vector<1x128xf32> to vector<256x128xf32>
    %57 = arith.mulf %54, %56 : vector<256x128xf32>
    %c0_54 = arith.constant 0 : index
    %c0_55 = arith.constant 0 : index
    %58 = vector.load %arg4[%c0_54, %c0_55] : memref<1x128xf32, #tpu.memory_space<vmem>>, vector<1x128xf32>
    %59 = vector.broadcast %58 : vector<1x128xf32> to vector<256x128xf32>
    %60 = arith.addf %57, %59 : vector<256x128xf32>
    %c0_56 = arith.constant 0 : index
    %c1_57 = arith.constant 1 : index
    %c1_58 = arith.constant 1 : index
    %c0_59 = arith.constant 0 : index
    %61 = vector.load %arg1[%c0_56, %c1_57, %c1_58, %c0_59] : memref<1x18x18x128xbf16, #tpu.memory_space<vmem>>, vector<1x16x16x128xbf16>
    %62 = vector.shape_cast %61 : vector<1x16x16x128xbf16> to vector<16x16x128xbf16>
    %63 = vector.shape_cast %62 : vector<16x16x128xbf16> to vector<256x128xbf16>
    %64 = arith.extf %63 : vector<256x128xbf16> to vector<256x128xf32>
    %65 = arith.addf %60, %64 : vector<256x128xf32>
    %cst_60 = arith.constant 0.000000e+00 : f32
    %66 = vector.broadcast %cst_60 : f32 to vector<256x128xf32>
    %67 = arith.cmpf oge, %65, %66 : vector<256x128xf32>
    %c0_61 = arith.constant 0 : index
    %c0_62 = arith.constant 0 : index
    %68 = vector.load %arg5[%c0_61, %c0_62] : memref<1x128xf32, #tpu.memory_space<vmem>>, vector<1x128xf32>
    %69 = vector.broadcast %68 : vector<1x128xf32> to vector<256x128xf32>
    %70 = arith.mulf %69, %65 : vector<256x128xf32>
    %71 = arith.select %67, %65, %70 : vector<256x128xi1>, vector<256x128xf32>
    %72 = vector.shape_cast %71 : vector<256x128xf32> to vector<16x16x128xf32>
    %c0_63 = arith.constant 0 : index
    %c0_64 = arith.constant 0 : index
    %c0_65 = arith.constant 0 : index
    %c0_66 = arith.constant 0 : index
    %73 = vector.load %arg6[%c0_63, %c0_64, %c0_65, %c0_66] : memref<1x16x16x128xf32, #tpu.memory_space<vmem>>, vector<1x16x16x128xf32>
    %74 = vector.shape_cast %73 : vector<1x16x16x128xf32> to vector<16x16x128xf32>
    %75 = vector.shape_cast %72 : vector<16x16x128xf32> to vector<1x16x16x128xf32>
    tpu.vector_store %arg6[%c0_63, %c0_64, %c0_65, %c0_66], %75 {strides = array<i32>} : memref<1x16x16x128xf32, #tpu.memory_space<vmem>>, vector<1x16x16x128xf32>,
    return
  }
  func.func @transform_0(%arg0: i32) -> (i32, i32, i32, i32) {
    %c0_i32 = arith.constant 0 : i32
    %c0_i32_0 = arith.constant 0 : i32
    %c0_i32_1 = arith.constant 0 : i32
    %c0_i32_2 = arith.constant 0 : i32
    return %arg0, %c0_i32, %c0_i32_0, %c0_i32_1 : i32, i32, i32, i32
  }
  func.func @transform_1(%arg0: i32) -> (i32, i32) {
    %c0_i32 = arith.constant 0 : i32
    %c0_i32_0 = arith.constant 0 : i32
    %c0_i32_1 = arith.constant 0 : i32
    return %c0_i32, %c0_i32_0 : i32, i32
  }
  func.func @transform_2(%arg0: i32) -> (i32, i32) {
    %c0_i32 = arith.constant 0 : i32
    %c0_i32_0 = arith.constant 0 : i32
    %c0_i32_1 = arith.constant 0 : i32
    return %c0_i32, %c0_i32_0 : i32, i32
  }
  func.func @transform_3(%arg0: i32) -> (i32, i32) {
    %c0_i32 = arith.constant 0 : i32
    %c0_i32_0 = arith.constant 0 : i32
    %c0_i32_1 = arith.constant 0 : i32
    return %c0_i32, %c0_i32_0 : i32, i32
  }
  func.func @transform_4(%arg0: i32) -> (i32, i32) {
    %c0_i32 = arith.constant 0 : i32
    %c0_i32_0 = arith.constant 0 : i32
    %c0_i32_1 = arith.constant 0 : i32
    return %c0_i32, %c0_i32_0 : i32, i32
  }
  func.func @transform_5(%arg0: i32) -> (i32, i32, i32, i32) {
    %c0_i32 = arith.constant 0 : i32
    %c0_i32_0 = arith.constant 0 : i32
    %c0_i32_1 = arith.constant 0 : i32
    %c0_i32_2 = arith.constant 0 : i32
    return %arg0, %c0_i32, %c0_i32_0, %c0_i32_1 : i32, i32, i32, i32
  }
}

</mosaic_0001>

<llo_original>
// kernel: tpu_custom_call.1
$region0: #{tpu_custom_call.1}
  #allocation0 [shape = 'u32[]', space=smem, size = 0x4, offset = 0x4, fixed_abs, tag = 'smem constant byte address 0x4 - core index']
  #allocation1 [shape = 'u32[72,128]{1,0:T(1,128)}', space=vmem, size = 0x9000, scoped, tag = 'internal scratch']
  %s0 = inlined_call_operand.vmem [shape: bf16[2,18,18,128], index: 0, kind: input, shape index: {}]
  %s1 = inlined_call_operand.vmem [shape: bf16[1152,128], index: 1, kind: input, shape index: {}]
  %s2 = inlined_call_operand.vmem [shape: f32[1,128], index: 2, kind: input, shape index: {}]
  %s3 = inlined_call_operand.vmem [shape: f32[1,128], index: 3, kind: input, shape index: {}]
  %s4 = inlined_call_operand.vmem [shape: f32[1,128], index: 4, kind: input, shape index: {}]
  %s5 = inlined_call_operand.hbm [shape: f32[2,16,16,128], index: 5, kind: output, shape index: {}]
  %s6 = sld [smem:[#allocation0]]
  $region53: #{tpu_custom_call.1} parent=0
    _
  %s8 = ssub.s32 1, %s6
  %s9 = scalar_select 0, %s8, %s6
  $region1: #{tpu_custom_call.1} parent=0
    #allocation2 [shape = 'u8[262144]{0}', space=vmem, size = 0x40000, scoped, tag = 'output window, operand 0']
    #allocation3 [shape = 's32[2]{0}', space=sflag, size = 0x8, scoped, tag = 'scoped memory for tpu_custom_call.1']
    %10 = vsyncpa [#allocation3], 0
    %s11 = scalar_lea.sflag [#allocation3], 1
    %12 = vsyncpa %s11, 0
    loop: start=0, step=1, limit=4
    $region2: #{tpu_custom_call.1} parent=1 // loop_pre_header
      _
    $region3: #{tpu_custom_call.1} parent=1 // loop_header
      %s14 = sphi 0, %s18
      %p15 = scmp.ge.s32.totalorder %s14, 4
      %s24 = sphi 0, %s26
      %s27 = sphi 0, %s24
      %s28 = sphi 0, %s27
      %s44 = sphi 0, %s28
      %s48 = sphi 0, %s48
      %s50 = sphi 0, %s48
      %s51 = sphi 0, %s50
      %s65 = sphi 0, %s51
      %s69 = sphi 0, %s69
      %s71 = sphi 0, %s69
      %s72 = sphi 0, %s71
      %s86 = sphi 0, %s72
      %s90 = sphi 0, %s90
      %s92 = sphi 0, %s90
      %s93 = sphi 0, %s92
      %s107 = sphi 0, %s93
      %s111 = sphi 0, %s111
      %s113 = sphi 0, %s111
      %s114 = sphi 0, %s113
      %s128 = sphi 0, %s114
      %s134 = sphi 0, %s136
      %s137 = sphi 0, %s134
      %s138 = sphi 0, %s137
      %s154 = sphi 0, %s138
    $region4: #{tpu_custom_call.1} parent=1 // loop_header_branch
      %17 = sbr.rel (%p15) target = $region8
    $region5: #{tpu_custom_call.1} parent=1 // loop_body
      %s19 = ssub.s32 %s14, 1
      %s20 = ssub.s32 %s14, 2
      %s21 = sadd.s32 %s14, 1
      %s22 = ssub.s32 %s14, %s21
      %p23 = scmp.eq.s32.totalorder %s22, 0
      %s25 = sadd.s32 %s24, 1
      %s26 = scalar_select %p23, %s24, %s25
      %p29 = pneg %p23
      %p30 = scmp.eq.s32.totalorder %s14, 1
      %p31 = por %p29, %p30
      %p32 = scmp.ne.s32.totalorder %s24, %s27
      %p33 = scmp.eq.s32.totalorder %s14, 0
      %p34 = por %p32, %p33
      %p35 = scmp.ne.s32.totalorder %s24, %s27
      %p36 = scmp.eq.s32.totalorder %s19, 1
      %p37 = por %p35, %p36
      %p38 = scmp.ne.s32.totalorder %s27, %s28
      %p39 = scmp.eq.s32.totalorder %s19, 0
      %p40 = por %p38, %p39
      %p41 = scmp.ne.s32.totalorder %s27, %s28
      %p42 = scmp.eq.s32.totalorder %s20, 1
      %p43 = por %p41, %p42
      %p45 = scmp.ne.s32.totalorder %s28, %s44
      %p46 = scmp.eq.s32.totalorder %s20, 0
      %p47 = por %p45, %p46
      %s49 = sadd.s32 %s48, 1
      %p52 = scmp.eq.s32.totalorder %s14, 1
      %p53 = scmp.ne.s32.totalorder %s48, %s50
      %p54 = scmp.eq.s32.totalorder %s14, 0
      %p55 = por %p53, %p54
      %p56 = scmp.ne.s32.totalorder %s48, %s50
      %p57 = scmp.eq.s32.totalorder %s19, 1
      %p58 = por %p56, %p57
      %p59 = scmp.ne.s32.totalorder %s50, %s51
      %p60 = scmp.eq.s32.totalorder %s19, 0
      %p61 = por %p59, %p60
      %p62 = scmp.ne.s32.totalorder %s50, %s51
      %p63 = scmp.eq.s32.totalorder %s20, 1
      %p64 = por %p62, %p63
      %p66 = scmp.ne.s32.totalorder %s51, %s65
      %p67 = scmp.eq.s32.totalorder %s20, 0
      %p68 = por %p66, %p67
      %s70 = sadd.s32 %s69, 1
      %p73 = scmp.eq.s32.totalorder %s14, 1
      %p74 = scmp.ne.s32.totalorder %s69, %s71
      %p75 = scmp.eq.s32.totalorder %s14, 0
      %p76 = por %p74, %p75
      %p77 = scmp.ne.s32.totalorder %s69, %s71
      %p78 = scmp.eq.s32.totalorder %s19, 1
      %p79 = por %p77, %p78
      %p80 = scmp.ne.s32.totalorder %s71, %s72
      %p81 = scmp.eq.s32.totalorder %s19, 0
      %p82 = por %p80, %p81
      %p83 = scmp.ne.s32.totalorder %s71, %s72
      %p84 = scmp.eq.s32.totalorder %s20, 1
      %p85 = por %p83, %p84
      %p87 = scmp.ne.s32.totalorder %s72, %s86
      %p88 = scmp.eq.s32.totalorder %s20, 0
      %p89 = por %p87, %p88
      %s91 = sadd.s32 %s90, 1
      %p94 = scmp.eq.s32.totalorder %s14, 1
      %p95 = scmp.ne.s32.totalorder %s90, %s92
      %p96 = scmp.eq.s32.totalorder %s14, 0
      %p97 = por %p95, %p96
      %p98 = scmp.ne.s32.totalorder %s90, %s92
      %p99 = scmp.eq.s32.totalorder %s19, 1
      %p100 = por %p98, %p99
      %p101 = scmp.ne.s32.totalorder %s92, %s93
      %p102 = scmp.eq.s32.totalorder %s19, 0
      %p103 = por %p101, %p102
      %p104 = scmp.ne.s32.totalorder %s92, %s93
      %p105 = scmp.eq.s32.totalorder %s20, 1
      %p106 = por %p104, %p105
      %p108 = scmp.ne.s32.totalorder %s93, %s107
      %p109 = scmp.eq.s32.totalorder %s20, 0
      %p110 = por %p108, %p109
      %s112 = sadd.s32 %s111, 1
      %p115 = scmp.eq.s32.totalorder %s14, 1
      %p116 = scmp.ne.s32.totalorder %s111, %s113
      %p117 = scmp.eq.s32.totalorder %s14, 0
      %p118 = por %p116, %p117
      %p119 = scmp.ne.s32.totalorder %s111, %s113
      %p120 = scmp.eq.s32.totalorder %s19, 1
      %p121 = por %p119, %p120
      %p122 = scmp.ne.s32.totalorder %s113, %s114
      %p123 = scmp.eq.s32.totalorder %s19, 0
      %p124 = por %p122, %p123
      %p125 = scmp.ne.s32.totalorder %s113, %s114
      %p126 = scmp.eq.s32.totalorder %s20, 1
      %p127 = por %p125, %p126
      %p129 = scmp.ne.s32.totalorder %s114, %s128
      %p130 = scmp.eq.s32.totalorder %s20, 0
      %p131 = por %p129, %p130
      %s132 = ssub.s32 %s14, %s21
      %p133 = scmp.eq.s32.totalorder %s132, 0
      %s135 = sadd.s32 %s134, 1
      %s136 = scalar_select %p133, %s134, %s135
      %p139 = pneg %p133
      %p140 = scmp.eq.s32.totalorder %s14, 1
      %p141 = por %p139, %p140
      %p142 = scmp.ne.s32.totalorder %s134, %s137
      %p143 = scmp.eq.s32.totalorder %s14, 0
      %p144 = por %p142, %p143
      %p145 = scmp.ne.s32.totalorder %s134, %s137
      %p146 = scmp.eq.s32.totalorder %s19, 1
      %p147 = por %p145, %p146
      %p148 = scmp.ne.s32.totalorder %s137, %s138
      %p149 = scmp.eq.s32.totalorder %s19, 0
      %p150 = por %p148, %p149
      %p151 = scmp.ne.s32.totalorder %s137, %s138
      %p152 = scmp.eq.s32.totalorder %s20, 1
      %p153 = por %p151, %p152
      %p155 = scmp.ne.s32.totalorder %s138, %s154
      %p156 = scmp.eq.s32.totalorder %s20, 0
      %p157 = por %p155, %p156
      %p158 = scmp.le.s32.totalorder 1, %s14
      %p159 = scmp.lt.s32.totalorder %s14, 3
      %p160 = pnand %p158, %p159
      %p161 = pneg %p160
      // Predicated region
      $region9: #{tpu_custom_call.1} parent=5 // pred_check
        _
      $region10: #{tpu_custom_call.1} parent=5 // pred_check_branch
        %163 = sbr.rel (%p160) target = $region12
      $region11: #{tpu_custom_call.1} parent=5 // pred_region
        %s164 = ssub.s32 %s14, 1
        // Predicated region
        $region13: #{tpu_custom_call.1} parent=11 // pred_check
          %p165 = pneg %p61
        $region14: #{tpu_custom_call.1} parent=11 // pred_check_branch
          %167 = sbr.rel (%p165) target = $region16
        $region15: #{tpu_custom_call.1} parent=11 // pred_region
          _
        $region16: #{tpu_custom_call.1} parent=11 // pred_fallthru
          _
        // Predicated region
        $region17: #{tpu_custom_call.1} parent=11 // pred_check
          %p168 = pneg %p82
        $region18: #{tpu_custom_call.1} parent=11 // pred_check_branch
          %170 = sbr.rel (%p168) target = $region20
        $region19: #{tpu_custom_call.1} parent=11 // pred_region
          _
        $region20: #{tpu_custom_call.1} parent=11 // pred_fallthru
          _
        // Predicated region
        $region21: #{tpu_custom_call.1} parent=11 // pred_check
          %p171 = pneg %p103
        $region22: #{tpu_custom_call.1} parent=11 // pred_check_branch
          %173 = sbr.rel (%p171) target = $region24
        $region23: #{tpu_custom_call.1} parent=11 // pred_region
          _
        $region24: #{tpu_custom_call.1} parent=11 // pred_fallthru
          _
        // Predicated region
        $region25: #{tpu_custom_call.1} parent=11 // pred_check
          %p174 = pneg %p124
        $region26: #{tpu_custom_call.1} parent=11 // pred_check_branch
          %176 = sbr.rel (%p174) target = $region28
        $region27: #{tpu_custom_call.1} parent=11 // pred_region
          _
        $region28: #{tpu_custom_call.1} parent=11 // pred_fallthru
          _
      $region12: #{tpu_custom_call.1} parent=5 // pred_fallthru
        _
      %p177 = scmp.lt.s32.totalorder %s14, 2
      // Predicated region
      $region29: #{tpu_custom_call.1} parent=5 // pred_check
        %p178 = pneg %p177
      $region30: #{tpu_custom_call.1} parent=5 // pred_check_branch
        %180 = sbr.rel (%p178) target = $region32
      $region31: #{tpu_custom_call.1} parent=5 // pred_region
        // Predicated region
        $region33: #{tpu_custom_call.1} parent=31 // pred_check
          %p181 = pneg %p34
        $region34: #{tpu_custom_call.1} parent=31 // pred_check_branch
          %183 = sbr.rel (%p181) target = $region36
        $region35: #{tpu_custom_call.1} parent=31 // pred_region
          %p184 = scmp.lt.s32.totalorder %s14, 1
          %s185 = scalar_select %p184, %s14, 1
          %s186 = smul.addr %s185, 54
          %s187 = smul.addr %s186, 4
          %s188 = scalar_lea.vmem %s0, %s187
        $region36: #{tpu_custom_call.1} parent=31 // pred_fallthru
          _
      $region32: #{tpu_custom_call.1} parent=5 // pred_fallthru
        _
      %p189 = scmp.le.s32.totalorder 1, %s14
      %p190 = scmp.lt.s32.totalorder %s14, 3
      %p191 = pnand %p189, %p190
      %p192 = pneg %p191
      // Predicated region
      $region37: #{tpu_custom_call.1} parent=5 // pred_check
        _
      $region38: #{tpu_custom_call.1} parent=5 // pred_check_branch
        %194 = sbr.rel (%p191) target = $region40
      $region39: #{tpu_custom_call.1} parent=5 // pred_region
        %s195 = ssub.s32 %s14, 1
        %p196 = scmp.lt.s32.totalorder %s19, 1
        %s197 = scalar_select %p196, %s19, 1
        %s198 = smul.addr %s197, 54
        %s199 = smul.addr %s198, 4
        %s200 = scalar_lea.vmem %s0, %s199
        %p201 = pneg %p40
        %p202 = pneg %p37
        %p203 = pneg %p61
        %p204 = pneg %p58
        %p205 = pneg %p82
        %p206 = pneg %p79
        %p207 = pneg %p103
        %p208 = pneg %p100
        %p209 = pneg %p124
        %p210 = pneg %p121
        %p211 = pneg %p150
        %p212 = pneg %p147
        %s213 = sand.u32 %s137, 1
        %s214 = scalar_lea.sflag [#allocation3], %s213
        %s215 = sand.u32 %s137, 1
        %s216 = smul.addr %s215, 256
        %s217 = scalar_lea.vmem [#allocation2], %s216
        %p218 = scmp.lt.s32.totalorder %s19, 1
        %s219 = scalar_select %p218, %s19, 1
        %s220 = smul.addr %s219, 54
        %s221 = smul.addr %s220, 4
        %s222 = scalar_lea.vmem %s0, %s221
        %v223 = vld [vmem:[%s222] sm:$0xf]
        %v224 = vld [vmem:[%s222 + $0x4] sm:$0xf]
        %v225 = vld [vmem:[%s222 + $0xc] sm:$0xf]
        %v226 = vld [vmem:[%s222 + $0x10] sm:$0xf]
        %v227 = vld [vmem:[%s222 + $0x18] sm:$0xf]
        %v228 = vld [vmem:[%s222 + $0x1c] sm:$0xf]
        %v229 = vld [vmem:[%s222 + $0x24] sm:$0xf]
        %v230 = vld [vmem:[%s222 + $0x28] sm:$0xf]
        %v231 = vld [vmem:[%s222 + $0x30] sm:$0xf]
        %v232 = vld [vmem:[%s222 + $0x34] sm:$0xf]
        %v233 = vld [vmem:[%s222 + $0x3c] sm:$0xf]
        %v234 = vld [vmem:[%s222 + $0x40] sm:$0xf]
        %v235 = vld [vmem:[%s222 + $0x48] sm:$0xf]
        %v236 = vld [vmem:[%s222 + $0x4c] sm:$0xf]
        %v237 = vld [vmem:[%s222 + $0x54] sm:$0xf]
        %v238 = vld [vmem:[%s222 + $0x58] sm:$0xf]
        %v239 = vld [vmem:[%s222 + $0x60] sm:$0xf]
        %v240 = vld [vmem:[%s222 + $0x64] sm:$0xf]
        %v241 = vld [vmem:[%s222 + $0x6c] sm:$0xf]
        %v242 = vld [vmem:[%s222 + $0x70] sm:$0xf]
        %v243 = vld [vmem:[%s222 + $0x78] sm:$0xf]
        %v244 = vld [vmem:[%s222 + $0x7c] sm:$0xf]
        %v245 = vld [vmem:[%s222 + $0x84] sm:$0xf]
        %v246 = vld [vmem:[%s222 + $0x88] sm:$0xf]
        %v247 = vld [vmem:[%s222 + $0x90] sm:$0xf]
        %v248 = vld [vmem:[%s222 + $0x94] sm:$0xf]
        %v249 = vld [vmem:[%s222 + $0x9c] sm:$0xf]
        %v250 = vld [vmem:[%s222 + $0xa0] sm:$0xf]
        %v251 = vld [vmem:[%s222 + $0xa8] sm:$0xf]
        %v252 = vld [vmem:[%s222 + $0xac] sm:$0xf]
        %v253 = vld [vmem:[%s222 + $0xb4] sm:$0xf]
        %v254 = vld [vmem:[%s222 + $0xb8] sm:$0xf]
        %v255 = vld [vmem:[%s1] sm:$0xf]
        %v256 = vld [vmem:[%s1 + $0x4] sm:$0xf]
        %v257 = vld [vmem:[%s1 + $0x8] sm:$0xf]
        %v258 = vld [vmem:[%s1 + $0xc] sm:$0xf]
        %v259 = vld [vmem:[%s1 + $0x10] sm:$0xf]
        %v260 = vld [vmem:[%s1 + $0x14] sm:$0xf]
        %v261 = vld [vmem:[%s1 + $0x18] sm:$0xf]
        %v262 = vld [vmem:[%s1 + $0x1c] sm:$0xf]
        %v263 = vld [vmem:[%s1 + $0x20] sm:$0xf]
        %v264 = vld [vmem:[%s1 + $0x24] sm:$0xf]
        %v265 = vld [vmem:[%s1 + $0x28] sm:$0xf]
        %v266 = vld [vmem:[%s1 + $0x2c] sm:$0xf]
        %v267 = vld [vmem:[%s1 + $0x30] sm:$0xf]
        %v268 = vld [vmem:[%s1 + $0x34] sm:$0xf]
        %v269 = vld [vmem:[%s1 + $0x38] sm:$0xf]
        %v270 = vld [vmem:[%s1 + $0x3c] sm:$0xf]
        %v271 = vld [vmem:[%s222 + $0x8] sm:$0x1]
        %v272 = vld [vmem:[%s222 + $0x14] sm:$0x1]
        %v273 = vld [vmem:[%s222 + $0x20] sm:$0x1]
        %v274 = vld [vmem:[%s222 + $0x2c] sm:$0x1]
        %v275 = vld [vmem:[%s222 + $0x38] sm:$0x1]
        %v276 = vld [vmem:[%s222 + $0x44] sm:$0x1]
        %v277 = vld [vmem:[%s222 + $0x50] sm:$0x1]
        %v278 = vld [vmem:[%s222 + $0x5c] sm:$0x1]
        %v279 = vld [vmem:[%s222 + $0x68] sm:$0x1]
        %v280 = vld [vmem:[%s222 + $0x74] sm:$0x1]
        %v281 = vld [vmem:[%s222 + $0x80] sm:$0x1]
        %v282 = vld [vmem:[%s222 + $0x8c] sm:$0x1]
        %v283 = vld [vmem:[%s222 + $0x98] sm:$0x1]
        %v284 = vld [vmem:[%s222 + $0xa4] sm:$0x1]
        %v285 = vld [vmem:[%s222 + $0xb0] sm:$0x1]
        %v286 = vld [vmem:[%s222 + $0xbc] sm:$0x1]
        %vm287 = vsmask.f32 3328
        %vm288 = vsmask.f32 7440
        %vm289 = vmor %vm287, %vm288
        %v291 = vshrl.u32 %v223, 16
        %v293 = vrot.slane %v291, 4
        %v294 = vshll.u32 %v223, 16
        %v296 = vrot.slane %v294, 5
        %v297 = vor.u32 %v293, %v296
        %v298 = vrot.slane %v297, 4
        %v300 = vshll.u32 %v224, 16
        %v302 = vrot.slane %v300, 5
        %v303 = vsel %vm289, %v298, %v302
        %v304 = vshrl.u32 %v224, 16
        %v306 = vrot.slane %v304, 4
        %v307 = vor.u32 %v306, %v302
        %v308 = vrot.slane %v307, 4
        %v310 = vshll.u32 %v271, 16
        %v312 = vrot.slane %v310, 5
        %v313 = vsel %vm289, %v308, %v312
        %v315 = vshrl.u32 %v225, 16
        %v317 = vrot.slane %v315, 4
        %v318 = vshll.u32 %v225, 16
        %v320 = vrot.slane %v318, 5
        %v321 = vor.u32 %v317, %v320
        %v322 = vrot.slane %v321, 4
        %v324 = vshll.u32 %v226, 16
        %v326 = vrot.slane %v324, 5
        %v327 = vsel %vm289, %v322, %v326
        %v328 = vshrl.u32 %v226, 16
        %v330 = vrot.slane %v328, 4
        %v331 = vor.u32 %v330, %v326
        %v332 = vrot.slane %v331, 4
        %v334 = vshll.u32 %v272, 16
        %v336 = vrot.slane %v334, 5
        %v337 = vsel %vm289, %v332, %v336
        %v339 = vshrl.u32 %v227, 16
        %v341 = vrot.slane %v339, 4
        %v342 = vshll.u32 %v227, 16
        %v344 = vrot.slane %v342, 5
        %v345 = vor.u32 %v341, %v344
        %v346 = vrot.slane %v345, 4
        %v348 = vshll.u32 %v228, 16
        %v350 = vrot.slane %v348, 5
        %v351 = vsel %vm289, %v346, %v350
        %v352 = vshrl.u32 %v228, 16
        %v354 = vrot.slane %v352, 4
        %v355 = vor.u32 %v354, %v350
        %v356 = vrot.slane %v355, 4
        %v358 = vshll.u32 %v273, 16
        %v360 = vrot.slane %v358, 5
        %v361 = vsel %vm289, %v356, %v360
        %v363 = vshrl.u32 %v229, 16
        %v365 = vrot.slane %v363, 4
        %v366 = vshll.u32 %v229, 16
        %v368 = vrot.slane %v366, 5
        %v369 = vor.u32 %v365, %v368
        %v370 = vrot.slane %v369, 4
        %v372 = vshll.u32 %v230, 16
        %v374 = vrot.slane %v372, 5
        %v375 = vsel %vm289, %v370, %v374
        %v376 = vshrl.u32 %v230, 16
        %v378 = vrot.slane %v376, 4
        %v379 = vor.u32 %v378, %v374
        %v380 = vrot.slane %v379, 4
        %v382 = vshll.u32 %v274, 16
        %v384 = vrot.slane %v382, 5
        %v385 = vsel %vm289, %v380, %v384
        %v387 = vshrl.u32 %v231, 16
        %v389 = vrot.slane %v387, 4
        %v390 = vshll.u32 %v231, 16
        %v392 = vrot.slane %v390, 5
        %v393 = vor.u32 %v389, %v392
        %v394 = vrot.slane %v393, 4
        %v396 = vshll.u32 %v232, 16
        %v398 = vrot.slane %v396, 5
        %v399 = vsel %vm289, %v394, %v398
        %v400 = vshrl.u32 %v232, 16
        %v402 = vrot.slane %v400, 4
        %v403 = vor.u32 %v402, %v398
        %v404 = vrot.slane %v403, 4
        %v406 = vshll.u32 %v275, 16
        %v408 = vrot.slane %v406, 5
        %v409 = vsel %vm289, %v404, %v408
        %v411 = vshrl.u32 %v233, 16
        %v413 = vrot.slane %v411, 4
        %v414 = vshll.u32 %v233, 16
        %v416 = vrot.slane %v414, 5
        %v417 = vor.u32 %v413, %v416
        %v418 = vrot.slane %v417, 4
        %v420 = vshll.u32 %v234, 16
        %v422 = vrot.slane %v420, 5
        %v423 = vsel %vm289, %v418, %v422
        %v424 = vshrl.u32 %v234, 16
        %v426 = vrot.slane %v424, 4
        %v427 = vor.u32 %v426, %v422
        %v428 = vrot.slane %v427, 4
        %v430 = vshll.u32 %v276, 16
        %v432 = vrot.slane %v430, 5
        %v433 = vsel %vm289, %v428, %v432
        %v435 = vshrl.u32 %v235, 16
        %v437 = vrot.slane %v435, 4
        %v438 = vshll.u32 %v235, 16
        %v440 = vrot.slane %v438, 5
        %v441 = vor.u32 %v437, %v440
        %v442 = vrot.slane %v441, 4
        %v444 = vshll.u32 %v236, 16
        %v446 = vrot.slane %v444, 5
        %v447 = vsel %vm289, %v442, %v446
        %v448 = vshrl.u32 %v236, 16
        %v450 = vrot.slane %v448, 4
        %v451 = vor.u32 %v450, %v446
        %v452 = vrot.slane %v451, 4
        %v454 = vshll.u32 %v277, 16
        %v456 = vrot.slane %v454, 5
        %v457 = vsel %vm289, %v452, %v456
        %v459 = vshrl.u32 %v237, 16
        %v461 = vrot.slane %v459, 4
        %v462 = vshll.u32 %v237, 16
        %v464 = vrot.slane %v462, 5
        %v465 = vor.u32 %v461, %v464
        %v466 = vrot.slane %v465, 4
        %v468 = vshll.u32 %v238, 16
        %v470 = vrot.slane %v468, 5
        %v471 = vsel %vm289, %v466, %v470
        %v472 = vshrl.u32 %v238, 16
        %v474 = vrot.slane %v472, 4
        %v475 = vor.u32 %v474, %v470
        %v476 = vrot.slane %v475, 4
        %v478 = vshll.u32 %v278, 16
        %v480 = vrot.slane %v478, 5
        %v481 = vsel %vm289, %v476, %v480
        %v483 = vshrl.u32 %v239, 16
        %v485 = vrot.slane %v483, 4
        %v486 = vshll.u32 %v239, 16
        %v488 = vrot.slane %v486, 5
        %v489 = vor.u32 %v485, %v488
        %v490 = vrot.slane %v489, 4
        %v492 = vshll.u32 %v240, 16
        %v494 = vrot.slane %v492, 5
        %v495 = vsel %vm289, %v490, %v494
        %v496 = vshrl.u32 %v240, 16
        %v498 = vrot.slane %v496, 4
        %v499 = vor.u32 %v498, %v494
        %v500 = vrot.slane %v499, 4
        %v502 = vshll.u32 %v279, 16
        %v504 = vrot.slane %v502, 5
        %v505 = vsel %vm289, %v500, %v504
        %v507 = vshrl.u32 %v241, 16
        %v509 = vrot.slane %v507, 4
        %v510 = vshll.u32 %v241, 16
        %v512 = vrot.slane %v510, 5
        %v513 = vor.u32 %v509, %v512
        %v514 = vrot.slane %v513, 4
        %v516 = vshll.u32 %v242, 16
        %v518 = vrot.slane %v516, 5
        %v519 = vsel %vm289, %v514, %v518
        %v520 = vshrl.u32 %v242, 16
        %v522 = vrot.slane %v520, 4
        %v523 = vor.u32 %v522, %v518
        %v524 = vrot.slane %v523, 4
        %v526 = vshll.u32 %v280, 16
        %v528 = vrot.slane %v526, 5
        %v529 = vsel %vm289, %v524, %v528
        %v531 = vshrl.u32 %v243, 16
        %v533 = vrot.slane %v531, 4
        %v534 = vshll.u32 %v243, 16
        %v536 = vrot.slane %v534, 5
        %v537 = vor.u32 %v533, %v536
        %v538 = vrot.slane %v537, 4
        %v540 = vshll.u32 %v244, 16
        %v542 = vrot.slane %v540, 5
        %v543 = vsel %vm289, %v538, %v542
        %v544 = vshrl.u32 %v244, 16
        %v546 = vrot.slane %v544, 4
        %v547 = vor.u32 %v546, %v542
        %v548 = vrot.slane %v547, 4
        %v550 = vshll.u32 %v281, 16
        %v552 = vrot.slane %v550, 5
        %v553 = vsel %vm289, %v548, %v552
        %v555 = vshrl.u32 %v245, 16
        %v557 = vrot.slane %v555, 4
        %v558 = vshll.u32 %v245, 16
        %v560 = vrot.slane %v558, 5
        %v561 = vor.u32 %v557, %v560
        %v562 = vrot.slane %v561, 4
        %v564 = vshll.u32 %v246, 16
        %v566 = vrot.slane %v564, 5
        %v567 = vsel %vm289, %v562, %v566
        %v568 = vshrl.u32 %v246, 16
        %v570 = vrot.slane %v568, 4
        %v571 = vor.u32 %v570, %v566
        %v572 = vrot.slane %v571, 4
        %v574 = vshll.u32 %v282, 16
        %v576 = vrot.slane %v574, 5
        %v577 = vsel %vm289, %v572, %v576
        %v579 = vshrl.u32 %v247, 16
        %v581 = vrot.slane %v579, 4
        %v582 = vshll.u32 %v247, 16
        %v584 = vrot.slane %v582, 5
        %v585 = vor.u32 %v581, %v584
        %v586 = vrot.slane %v585, 4
        %v588 = vshll.u32 %v248, 16
        %v590 = vrot.slane %v588, 5
        %v591 = vsel %vm289, %v586, %v590
        %v592 = vshrl.u32 %v248, 16
        %v594 = vrot.slane %v592, 4
        %v595 = vor.u32 %v594, %v590
        %v596 = vrot.slane %v595, 4
        %v598 = vshll.u32 %v283, 16
        %v600 = vrot.slane %v598, 5
        %v601 = vsel %vm289, %v596, %v600
        %v603 = vshrl.u32 %v249, 16
        %v605 = vrot.slane %v603, 4
        %v606 = vshll.u32 %v249, 16
        %v608 = vrot.slane %v606, 5
        %v609 = vor.u32 %v605, %v608
        %v610 = vrot.slane %v609, 4
        %v612 = vshll.u32 %v250, 16
        %v614 = vrot.slane %v612, 5
        %v615 = vsel %vm289, %v610, %v614
        %v616 = vshrl.u32 %v250, 16
        %v618 = vrot.slane %v616, 4
        %v619 = vor.u32 %v618, %v614
        %v620 = vrot.slane %v619, 4
        %v622 = vshll.u32 %v284, 16
        %v624 = vrot.slane %v622, 5
        %v625 = vsel %vm289, %v620, %v624
        %v627 = vshrl.u32 %v251, 16
        %v629 = vrot.slane %v627, 4
        %v630 = vshll.u32 %v251, 16
        %v632 = vrot.slane %v630, 5
        %v633 = vor.u32 %v629, %v632
        %v634 = vrot.slane %v633, 4
        %v636 = vshll.u32 %v252, 16
        %v638 = vrot.slane %v636, 5
        %v639 = vsel %vm289, %v634, %v638
        %v640 = vshrl.u32 %v252, 16
        %v642 = vrot.slane %v640, 4
        %v643 = vor.u32 %v642, %v638
        %v644 = vrot.slane %v643, 4
        %v646 = vshll.u32 %v285, 16
        %v648 = vrot.slane %v646, 5
        %v649 = vsel %vm289, %v644, %v648
        %v651 = vshrl.u32 %v253, 16
        %v653 = vrot.slane %v651, 4
        %v654 = vshll.u32 %v253, 16
        %v656 = vrot.slane %v654, 5
        %v657 = vor.u32 %v653, %v656
        %v658 = vrot.slane %v657, 4
        %v660 = vshll.u32 %v254, 16
        %v662 = vrot.slane %v660, 5
        %v663 = vsel %vm289, %v658, %v662
        %v664 = vshrl.u32 %v254, 16
        %v666 = vrot.slane %v664, 4
        %v667 = vor.u32 %v666, %v662
        %v668 = vrot.slane %v667, 4
        %v670 = vshll.u32 %v286, 16
        %v672 = vrot.slane %v670, 5
        %v673 = vsel %vm289, %v668, %v672
        %v674 = vld [vmem:[%s1 + $0x40] sm:$0xf]
        %v675 = vld [vmem:[%s1 + $0x44] sm:$0xf]
        %v676 = vld [vmem:[%s1 + $0x48] sm:$0xf]
        %v677 = vld [vmem:[%s1 + $0x4c] sm:$0xf]
        %v678 = vld [vmem:[%s1 + $0x50] sm:$0xf]
        %v679 = vld [vmem:[%s1 + $0x54] sm:$0xf]
        %v680 = vld [vmem:[%s1 + $0x58] sm:$0xf]
        %v681 = vld [vmem:[%s1 + $0x5c] sm:$0xf]
        %v682 = vld [vmem:[%s1 + $0x60] sm:$0xf]
        %v683 = vld [vmem:[%s1 + $0x64] sm:$0xf]
        %v684 = vld [vmem:[%s1 + $0x68] sm:$0xf]
        %v685 = vld [vmem:[%s1 + $0x6c] sm:$0xf]
        %v686 = vld [vmem:[%s1 + $0x70] sm:$0xf]
        %v687 = vld [vmem:[%s1 + $0x74] sm:$0xf]
        %v688 = vld [vmem:[%s1 + $0x78] sm:$0xf]
        %v689 = vld [vmem:[%s1 + $0x7c] sm:$0xf]
        %v690 = vunpack.c.l.b16 %v303
        %v691 = vunpack.c.l.b16 %v313
        %v692 = vunpack.c.l.b16 %v327
        %v693 = vunpack.c.l.b16 %v337
        %v694 = vunpack.c.l.b16 %v351
        %v695 = vunpack.c.l.b16 %v361
        %v696 = vunpack.c.l.b16 %v375
        %v697 = vunpack.c.l.b16 %v385
        %v698 = vunpack.c.l.b16 %v399
        %v699 = vunpack.c.l.b16 %v409
        %v700 = vunpack.c.l.b16 %v423
        %v701 = vunpack.c.l.b16 %v433
        %v702 = vunpack.c.l.b16 %v447
        %v703 = vunpack.c.l.b16 %v457
        %v704 = vunpack.c.l.b16 %v471
        %v705 = vunpack.c.l.b16 %v481
        %v706 = vunpack.c.l.b16 %v495
        %v707 = vunpack.c.l.b16 %v505
        %v708 = vunpack.c.l.b16 %v519
        %v709 = vunpack.c.l.b16 %v529
        %v710 = vunpack.c.l.b16 %v543
        %v711 = vunpack.c.l.b16 %v553
        %v712 = vunpack.c.l.b16 %v567
        %v713 = vunpack.c.l.b16 %v577
        %v714 = vunpack.c.l.b16 %v591
        %v715 = vunpack.c.l.b16 %v601
        %v716 = vunpack.c.l.b16 %v615
        %v717 = vunpack.c.l.b16 %v625
        %v718 = vunpack.c.l.b16 %v639
        %v719 = vunpack.c.l.b16 %v649
        %v720 = vunpack.c.l.b16 %v663
        %v721 = vunpack.c.l.b16 %v673
        %v722 = vpack.c.b16 %v691, %v690
        %v723 = vpack.c.b16 %v693, %v692
        %v724 = vpack.c.b16 %v695, %v694
        %v725 = vpack.c.b16 %v697, %v696
        %v726 = vpack.c.b16 %v699, %v698
        %v727 = vpack.c.b16 %v701, %v700
        %v728 = vpack.c.b16 %v703, %v702
        %v729 = vpack.c.b16 %v705, %v704
        %v730 = vpack.c.b16 %v707, %v706
        %v731 = vpack.c.b16 %v709, %v708
        %v732 = vpack.c.b16 %v711, %v710
        %v733 = vpack.c.b16 %v713, %v712
        %v734 = vpack.c.b16 %v715, %v714
        %v735 = vpack.c.b16 %v717, %v716
        %v736 = vpack.c.b16 %v719, %v718
        %v737 = vpack.c.b16 %v721, %v720
        %v770 = vunpack.c.l.b16 %v674
        %v771 = vunpack.c.l.b16 %v675
        %v772 = vunpack.c.l.b16 %v676
        %v773 = vunpack.c.l.b16 %v677
        %v774 = vunpack.c.l.b16 %v678
        %v775 = vunpack.c.l.b16 %v679
        %v776 = vunpack.c.l.b16 %v680
        %v777 = vunpack.c.l.b16 %v681
        %v778 = vunpack.c.l.b16 %v682
        %v779 = vunpack.c.l.b16 %v683
        %v780 = vunpack.c.l.b16 %v684
        %v781 = vunpack.c.l.b16 %v685
        %v782 = vunpack.c.l.b16 %v686
        %v783 = vunpack.c.l.b16 %v687
        %v784 = vunpack.c.l.b16 %v688
        %v785 = vunpack.c.l.b16 %v689
        %v786 = vpack.c.b16 %v771, %v770
        %v787 = vpack.c.b16 %v773, %v772
        %v788 = vpack.c.b16 %v775, %v774
        %v789 = vpack.c.b16 %v777, %v776
        %v790 = vpack.c.b16 %v779, %v778
        %v791 = vpack.c.b16 %v781, %v780
        %v792 = vpack.c.b16 %v783, %v782
        %v793 = vpack.c.b16 %v785, %v784
        %802 = vmatpush.bf16.msra.mxu0 %v793
        %803 = vmatpush.bf16.msra.mxu0 %v792
        %804 = vmatpush.bf16.msra.mxu0 %v791
        %805 = vmatpush.bf16.msra.mxu0 %v790
        %806 = vmatpush.bf16.msra.mxu0 %v789
        %807 = vmatpush.bf16.msra.mxu0 %v788
        %808 = vmatpush.bf16.msra.mxu0 %v787
        %809 = vmatpush.bf16.msra.mxu0 %v786
        %810 = vmatmul.bf16.gmra.mxu0 %v722
        %v811 = vpop.f32.mrf.mxu0
        %v812 = vadd.f32 0.0, %v811
        %v813 = vpop.f32.mrf.mxu0
        %v814 = vadd.f32 0.0, %v813
        %815 = vmatmul.bf16.gmra.mxu0 %v723
        %v816 = vpop.f32.mrf.mxu0
        %v817 = vadd.f32 0.0, %v816
        %v818 = vpop.f32.mrf.mxu0
        %v819 = vadd.f32 0.0, %v818
        %820 = vmatmul.bf16.gmra.mxu0 %v724
        %v821 = vpop.f32.mrf.mxu0
        %v822 = vadd.f32 0.0, %v821
        %v823 = vpop.f32.mrf.mxu0
        %v824 = vadd.f32 0.0, %v823
        %825 = vmatmul.bf16.gmra.mxu0 %v725
        %v826 = vpop.f32.mrf.mxu0
        %v827 = vadd.f32 0.0, %v826
        %v828 = vpop.f32.mrf.mxu0
        %v829 = vadd.f32 0.0, %v828
        %830 = vmatmul.bf16.gmra.mxu0 %v726
        %v831 = vpop.f32.mrf.mxu0
        %v832 = vadd.f32 0.0, %v831
        %v833 = vpop.f32.mrf.mxu0
        %v834 = vadd.f32 0.0, %v833
        %835 = vmatmul.bf16.gmra.mxu0 %v727
        %v836 = vpop.f32.mrf.mxu0
        %v837 = vadd.f32 0.0, %v836
        %v838 = vpop.f32.mrf.mxu0
        %v839 = vadd.f32 0.0, %v838
        %840 = vmatmul.bf16.gmra.mxu0 %v728
        %v841 = vpop.f32.mrf.mxu0
        %v842 = vadd.f32 0.0, %v841
        %v843 = vpop.f32.mrf.mxu0
        %v844 = vadd.f32 0.0, %v843
        %845 = vmatmul.bf16.gmra.mxu0 %v729
        %v846 = vpop.f32.mrf.mxu0
        %v847 = vadd.f32 0.0, %v846
        %v848 = vpop.f32.mrf.mxu0
        %v849 = vadd.f32 0.0, %v848
        %850 = vmatmul.bf16.gmra.mxu0 %v730
        %v851 = vpop.f32.mrf.mxu0
        %v852 = vadd.f32 0.0, %v851
        %v853 = vpop.f32.mrf.mxu0
        %v854 = vadd.f32 0.0, %v853
        %855 = vmatmul.bf16.gmra.mxu0 %v731
        %v856 = vpop.f32.mrf.mxu0
        %v857 = vadd.f32 0.0, %v856
        %v858 = vpop.f32.mrf.mxu0
        %v859 = vadd.f32 0.0, %v858
        %860 = vmatmul.bf16.gmra.mxu0 %v732
        %v861 = vpop.f32.mrf.mxu0
        %v862 = vadd.f32 0.0, %v861
        %v863 = vpop.f32.mrf.mxu0
        %v864 = vadd.f32 0.0, %v863
        %865 = vmatmul.bf16.gmra.mxu0 %v733
        %v866 = vpop.f32.mrf.mxu0
        %v867 = vadd.f32 0.0, %v866
        %v868 = vpop.f32.mrf.mxu0
        %v869 = vadd.f32 0.0, %v868
        %870 = vmatmul.bf16.gmra.mxu0 %v734
        %v871 = vpop.f32.mrf.mxu0
        %v872 = vadd.f32 0.0, %v871
        %v873 = vpop.f32.mrf.mxu0
        %v874 = vadd.f32 0.0, %v873
        %875 = vmatmul.bf16.gmra.mxu0 %v735
        %v876 = vpop.f32.mrf.mxu0
        %v877 = vadd.f32 0.0, %v876
        %v878 = vpop.f32.mrf.mxu0
        %v879 = vadd.f32 0.0, %v878
        %880 = vmatmul.bf16.gmra.mxu0 %v736
        %v881 = vpop.f32.mrf.mxu0
        %v882 = vadd.f32 0.0, %v881
        %v883 = vpop.f32.mrf.mxu0
        %v884 = vadd.f32 0.0, %v883
        %885 = vmatmul.bf16.gmra.mxu0 %v737
        %v886 = vpop.f32.mrf.mxu0
        %v887 = vadd.f32 0.0, %v886
        %v888 = vpop.f32.mrf.mxu0
        %v889 = vadd.f32 0.0, %v888
        %890 = vdwg.mxu0
        %v923 = vunpack.c.l.b16 %v223
        %v924 = vunpack.c.l.b16 %v224
        %v925 = vunpack.c.l.b16 %v225
        %v926 = vunpack.c.l.b16 %v226
        %v927 = vunpack.c.l.b16 %v227
        %v928 = vunpack.c.l.b16 %v228
        %v929 = vunpack.c.l.b16 %v229
        %v930 = vunpack.c.l.b16 %v230
        %v931 = vunpack.c.l.b16 %v231
        %v932 = vunpack.c.l.b16 %v232
        %v933 = vunpack.c.l.b16 %v233
        %v934 = vunpack.c.l.b16 %v234
        %v935 = vunpack.c.l.b16 %v235
        %v936 = vunpack.c.l.b16 %v236
        %v937 = vunpack.c.l.b16 %v237
        %v938 = vunpack.c.l.b16 %v238
        %v939 = vunpack.c.l.b16 %v239
        %v940 = vunpack.c.l.b16 %v240
        %v941 = vunpack.c.l.b16 %v241
        %v942 = vunpack.c.l.b16 %v242
        %v943 = vunpack.c.l.b16 %v243
        %v944 = vunpack.c.l.b16 %v244
        %v945 = vunpack.c.l.b16 %v245
        %v946 = vunpack.c.l.b16 %v246
        %v947 = vunpack.c.l.b16 %v247
        %v948 = vunpack.c.l.b16 %v248
        %v949 = vunpack.c.l.b16 %v249
        %v950 = vunpack.c.l.b16 %v250
        %v951 = vunpack.c.l.b16 %v251
        %v952 = vunpack.c.l.b16 %v252
        %v953 = vunpack.c.l.b16 %v253
        %v954 = vunpack.c.l.b16 %v254
        %v955 = vpack.c.b16 %v924, %v923
        %v956 = vpack.c.b16 %v926, %v925
        %v957 = vpack.c.b16 %v928, %v927
        %v958 = vpack.c.b16 %v930, %v929
        %v959 = vpack.c.b16 %v932, %v931
        %v960 = vpack.c.b16 %v934, %v933
        %v961 = vpack.c.b16 %v936, %v935
        %v962 = vpack.c.b16 %v938, %v937
        %v963 = vpack.c.b16 %v940, %v939
        %v964 = vpack.c.b16 %v942, %v941
        %v965 = vpack.c.b16 %v944, %v943
        %v966 = vpack.c.b16 %v946, %v945
        %v967 = vpack.c.b16 %v948, %v947
        %v968 = vpack.c.b16 %v950, %v949
        %v969 = vpack.c.b16 %v952, %v951
        %v970 = vpack.c.b16 %v954, %v953
        %v1003 = vunpack.c.l.b16 %v255
        %v1004 = vunpack.c.l.b16 %v256
        %v1005 = vunpack.c.l.b16 %v257
        %v1006 = vunpack.c.l.b16 %v258
        %v1007 = vunpack.c.l.b16 %v259
        %v1008 = vunpack.c.l.b16 %v260
        %v1009 = vunpack.c.l.b16 %v261
        %v1010 = vunpack.c.l.b16 %v262
        %v1011 = vunpack.c.l.b16 %v263
        %v1012 = vunpack.c.l.b16 %v264
        %v1013 = vunpack.c.l.b16 %v265
        %v1014 = vunpack.c.l.b16 %v266
        %v1015 = vunpack.c.l.b16 %v267
        %v1016 = vunpack.c.l.b16 %v268
        %v1017 = vunpack.c.l.b16 %v269
        %v1018 = vunpack.c.l.b16 %v270
        %v1019 = vpack.c.b16 %v1004, %v1003
        %v1020 = vpack.c.b16 %v1006, %v1005
        %v1021 = vpack.c.b16 %v1008, %v1007
        %v1022 = vpack.c.b16 %v1010, %v1009
        %v1023 = vpack.c.b16 %v1012, %v1011
        %v1024 = vpack.c.b16 %v1014, %v1013
        %v1025 = vpack.c.b16 %v1016, %v1015
        %v1026 = vpack.c.b16 %v1018, %v1017
        %1035 = vmatpush.bf16.msra.mxu0 %v1026
        %1036 = vmatpush.bf16.msra.mxu0 %v1025
        %1037 = vmatpush.bf16.msra.mxu0 %v1024
        %1038 = vmatpush.bf16.msra.mxu0 %v1023
        %1039 = vmatpush.bf16.msra.mxu0 %v1022
        %1040 = vmatpush.bf16.msra.mxu0 %v1021
        %1041 = vmatpush.bf16.msra.mxu0 %v1020
        %1042 = vmatpush.bf16.msra.mxu0 %v1019
        %1043 = vmatmul.bf16.gmra.mxu0 %v955
        %v1044 = vpop.f32.mrf.mxu0
        %v1045 = vadd.f32 %v812, %v1044
        %v1046 = vpop.f32.mrf.mxu0
        %v1047 = vadd.f32 %v814, %v1046
        %1048 = vmatmul.bf16.gmra.mxu0 %v956
        %v1049 = vpop.f32.mrf.mxu0
        %v1050 = vadd.f32 %v817, %v1049
        %v1051 = vpop.f32.mrf.mxu0
        %v1052 = vadd.f32 %v819, %v1051
        %1053 = vmatmul.bf16.gmra.mxu0 %v957
        %v1054 = vpop.f32.mrf.mxu0
        %v1055 = vadd.f32 %v822, %v1054
        %v1056 = vpop.f32.mrf.mxu0
        %v1057 = vadd.f32 %v824, %v1056
        %1058 = vmatmul.bf16.gmra.mxu0 %v958
        %v1059 = vpop.f32.mrf.mxu0
        %v1060 = vadd.f32 %v827, %v1059
        %v1061 = vpop.f32.mrf.mxu0
        %v1062 = vadd.f32 %v829, %v1061
        %1063 = vmatmul.bf16.gmra.mxu0 %v959
        %v1064 = vpop.f32.mrf.mxu0
        %v1065 = vadd.f32 %v832, %v1064
        %v1066 = vpop.f32.mrf.mxu0
        %v1067 = vadd.f32 %v834, %v1066
        %1068 = vmatmul.bf16.gmra.mxu0 %v960
        %v1069 = vpop.f32.mrf.mxu0
        %v1070 = vadd.f32 %v837, %v1069
        %v1071 = vpop.f32.mrf.mxu0
        %v1072 = vadd.f32 %v839, %v1071
        %1073 = vmatmul.bf16.gmra.mxu0 %v961
        %v1074 = vpop.f32.mrf.mxu0
        %v1075 = vadd.f32 %v842, %v1074
        %v1076 = vpop.f32.mrf.mxu0
        %v1077 = vadd.f32 %v844, %v1076
        %1078 = vmatmul.bf16.gmra.mxu0 %v962
        %v1079 = vpop.f32.mrf.mxu0
        %v1080 = vadd.f32 %v847, %v1079
        %v1081 = vpop.f32.mrf.mxu0
        %v1082 = vadd.f32 %v849, %v1081
        %1083 = vmatmul.bf16.gmra.mxu0 %v963
        %v1084 = vpop.f32.mrf.mxu0
        %v1085 = vadd.f32 %v852, %v1084
        %v1086 = vpop.f32.mrf.mxu0
        %v1087 = vadd.f32 %v854, %v1086
        %1088 = vmatmul.bf16.gmra.mxu0 %v964
        %v1089 = vpop.f32.mrf.mxu0
        %v1090 = vadd.f32 %v857, %v1089
        %v1091 = vpop.f32.mrf.mxu0
        %v1092 = vadd.f32 %v859, %v1091
        %1093 = vmatmul.bf16.gmra.mxu0 %v965
        %v1094 = vpop.f32.mrf.mxu0
        %v1095 = vadd.f32 %v862, %v1094
        %v1096 = vpop.f32.mrf.mxu0
        %v1097 = vadd.f32 %v864, %v1096
        %1098 = vmatmul.bf16.gmra.mxu0 %v966
        %v1099 = vpop.f32.mrf.mxu0
        %v1100 = vadd.f32 %v867, %v1099
        %v1101 = vpop.f32.mrf.mxu0
        %v1102 = vadd.f32 %v869, %v1101
        %1103 = vmatmul.bf16.gmra.mxu0 %v967
        %v1104 = vpop.f32.mrf.mxu0
        %v1105 = vadd.f32 %v872, %v1104
        %v1106 = vpop.f32.mrf.mxu0
        %v1107 = vadd.f32 %v874, %v1106
        %1108 = vmatmul.bf16.gmra.mxu0 %v968
        %v1109 = vpop.f32.mrf.mxu0
        %v1110 = vadd.f32 %v877, %v1109
        %v1111 = vpop.f32.mrf.mxu0
        %v1112 = vadd.f32 %v879, %v1111
        %1113 = vmatmul.bf16.gmra.mxu0 %v969
        %v1114 = vpop.f32.mrf.mxu0
        %v1115 = vadd.f32 %v882, %v1114
        %v1116 = vpop.f32.mrf.mxu0
        %v1117 = vadd.f32 %v884, %v1116
        %1118 = vmatmul.bf16.gmra.mxu0 %v970
        %v1119 = vpop.f32.mrf.mxu0
        %v1120 = vadd.f32 %v887, %v1119
        %v1121 = vpop.f32.mrf.mxu0
        %v1122 = vadd.f32 %v889, %v1121
        %1123 = vdwg.mxu0
        %v1124 = vld [vmem:[%s222] sm:$0xe]
        %v1125 = vld [vmem:[%s222 + $0xc] sm:$0xe]
        %v1126 = vld [vmem:[%s222 + $0x18] sm:$0xe]
        %v1127 = vld [vmem:[%s222 + $0x24] sm:$0xe]
        %v1128 = vld [vmem:[%s222 + $0x30] sm:$0xe]
        %v1129 = vld [vmem:[%s222 + $0x3c] sm:$0xe]
        %v1130 = vld [vmem:[%s222 + $0x48] sm:$0xe]
        %v1131 = vld [vmem:[%s222 + $0x54] sm:$0xe]
        %v1132 = vld [vmem:[%s222 + $0x60] sm:$0xe]
        %v1133 = vld [vmem:[%s222 + $0x6c] sm:$0xe]
        %v1134 = vld [vmem:[%s222 + $0x78] sm:$0xe]
        %v1135 = vld [vmem:[%s222 + $0x84] sm:$0xe]
        %v1136 = vld [vmem:[%s222 + $0x90] sm:$0xe]
        %v1137 = vld [vmem:[%s222 + $0x9c] sm:$0xe]
        %v1138 = vld [vmem:[%s222 + $0xa8] sm:$0xe]
        %v1139 = vld [vmem:[%s222 + $0xb4] sm:$0xe]
        %vm1172 = vcmask 1042432
        %vm1173 = vcmask 1046532
        %vm1174 = vmor %vm1172, %vm1173
        %v1175 = vrot.slane %v1124, 5
        %v1176 = vrot.slane %v1175, 4
        %v1177 = vrot.slane %v224, 5
        %v1178 = vsel %vm1174, %v1176, %v1177
        %v1179 = vrot.slane %v1177, 4
        %v1180 = vrot.slane %v271, 5
        %v1181 = vsel %vm1174, %v1179, %v1180
        %v1182 = vrot.slane %v1125, 5
        %v1183 = vrot.slane %v1182, 4
        %v1184 = vrot.slane %v226, 5
        %v1185 = vsel %vm1174, %v1183, %v1184
        %v1186 = vrot.slane %v1184, 4
        %v1187 = vrot.slane %v272, 5
        %v1188 = vsel %vm1174, %v1186, %v1187
        %v1189 = vrot.slane %v1126, 5
        %v1190 = vrot.slane %v1189, 4
        %v1191 = vrot.slane %v228, 5
        %v1192 = vsel %vm1174, %v1190, %v1191
        %v1193 = vrot.slane %v1191, 4
        %v1194 = vrot.slane %v273, 5
        %v1195 = vsel %vm1174, %v1193, %v1194
        %v1196 = vrot.slane %v1127, 5
        %v1197 = vrot.slane %v1196, 4
        %v1198 = vrot.slane %v230, 5
        %v1199 = vsel %vm1174, %v1197, %v1198
        %v1200 = vrot.slane %v1198, 4
        %v1201 = vrot.slane %v274, 5
        %v1202 = vsel %vm1174, %v1200, %v1201
        %v1203 = vrot.slane %v1128, 5
        %v1204 = vrot.slane %v1203, 4
        %v1205 = vrot.slane %v232, 5
        %v1206 = vsel %vm1174, %v1204, %v1205
        %v1207 = vrot.slane %v1205, 4
        %v1208 = vrot.slane %v275, 5
        %v1209 = vsel %vm1174, %v1207, %v1208
        %v1210 = vrot.slane %v1129, 5
        %v1211 = vrot.slane %v1210, 4
        %v1212 = vrot.slane %v234, 5
        %v1213 = vsel %vm1174, %v1211, %v1212
        %v1214 = vrot.slane %v1212, 4
        %v1215 = vrot.slane %v276, 5
        %v1216 = vsel %vm1174, %v1214, %v1215
        %v1217 = vrot.slane %v1130, 5
        %v1218 = vrot.slane %v1217, 4
        %v1219 = vrot.slane %v236, 5
        %v1220 = vsel %vm1174, %v1218, %v1219
        %v1221 = vrot.slane %v1219, 4
        %v1222 = vrot.slane %v277, 5
        %v1223 = vsel %vm1174, %v1221, %v1222
        %v1224 = vrot.slane %v1131, 5
        %v1225 = vrot.slane %v1224, 4
        %v1226 = vrot.slane %v238, 5
        %v1227 = vsel %vm1174, %v1225, %v1226
        %v1228 = vrot.slane %v1226, 4
        %v1229 = vrot.slane %v278, 5
        %v1230 = vsel %vm1174, %v1228, %v1229
        %v1231 = vrot.slane %v1132, 5
        %v1232 = vrot.slane %v1231, 4
        %v1233 = vrot.slane %v240, 5
        %v1234 = vsel %vm1174, %v1232, %v1233
        %v1235 = vrot.slane %v1233, 4
        %v1236 = vrot.slane %v279, 5
        %v1237 = vsel %vm1174, %v1235, %v1236
        %v1238 = vrot.slane %v1133, 5
        %v1239 = vrot.slane %v1238, 4
        %v1240 = vrot.slane %v242, 5
        %v1241 = vsel %vm1174, %v1239, %v1240
        %v1242 = vrot.slane %v1240, 4
        %v1243 = vrot.slane %v280, 5
        %v1244 = vsel %vm1174, %v1242, %v1243
        %v1245 = vrot.slane %v1134, 5
        %v1246 = vrot.slane %v1245, 4
        %v1247 = vrot.slane %v244, 5
        %v1248 = vsel %vm1174, %v1246, %v1247
        %v1249 = vrot.slane %v1247, 4
        %v1250 = vrot.slane %v281, 5
        %v1251 = vsel %vm1174, %v1249, %v1250
        %v1252 = vrot.slane %v1135, 5
        %v1253 = vrot.slane %v1252, 4
        %v1254 = vrot.slane %v246, 5
        %v1255 = vsel %vm1174, %v1253, %v1254
        %v1256 = vrot.slane %v1254, 4
        %v1257 = vrot.slane %v282, 5
        %v1258 = vsel %vm1174, %v1256, %v1257
        %v1259 = vrot.slane %v1136, 5
        %v1260 = vrot.slane %v1259, 4
        %v1261 = vrot.slane %v248, 5
        %v1262 = vsel %vm1174, %v1260, %v1261
        %v1263 = vrot.slane %v1261, 4
        %v1264 = vrot.slane %v283, 5
        %v1265 = vsel %vm1174, %v1263, %v1264
        %v1266 = vrot.slane %v1137, 5
        %v1267 = vrot.slane %v1266, 4
        %v1268 = vrot.slane %v250, 5
        %v1269 = vsel %vm1174, %v1267, %v1268
        %v1270 = vrot.slane %v1268, 4
        %v1271 = vrot.slane %v284, 5
        %v1272 = vsel %vm1174, %v1270, %v1271
        %v1273 = vrot.slane %v1138, 5
        %v1274 = vrot.slane %v1273, 4
        %v1275 = vrot.slane %v252, 5
        %v1276 = vsel %vm1174, %v1274, %v1275
        %v1277 = vrot.slane %v1275, 4
        %v1278 = vrot.slane %v285, 5
        %v1279 = vsel %vm1174, %v1277, %v1278
        %v1280 = vrot.slane %v1139, 5
        %v1281 = vrot.slane %v1280, 4
        %v1282 = vrot.slane %v254, 5
        %v1283 = vsel %vm1174, %v1281, %v1282
        %v1284 = vrot.slane %v1282, 4
        %v1285 = vrot.slane %v286, 5
        %v1286 = vsel %vm1174, %v1284, %v1285
        %v1287 = vld [vmem:[%s1 + $0x80] sm:$0xf]
        %v1288 = vld [vmem:[%s1 + $0x84] sm:$0xf]
        %v1289 = vld [vmem:[%s1 + $0x88] sm:$0xf]
        %v1290 = vld [vmem:[%s1 + $0x8c] sm:$0xf]
        %v1291 = vld [vmem:[%s1 + $0x90] sm:$0xf]
        %v1292 = vld [vmem:[%s1 + $0x94] sm:$0xf]
        %v1293 = vld [vmem:[%s1 + $0x98] sm:$0xf]
        %v1294 = vld [vmem:[%s1 + $0x9c] sm:$0xf]
        %v1295 = vld [vmem:[%s1 + $0xa0] sm:$0xf]
        %v1296 = vld [vmem:[%s1 + $0xa4] sm:$0xf]
        %v1297 = vld [vmem:[%s1 + $0xa8] sm:$0xf]
        %v1298 = vld [vmem:[%s1 + $0xac] sm:$0xf]
        %v1299 = vld [vmem:[%s1 + $0xb0] sm:$0xf]
        %v1300 = vld [vmem:[%s1 + $0xb4] sm:$0xf]
        %v1301 = vld [vmem:[%s1 + $0xb8] sm:$0xf]
        %v1302 = vld [vmem:[%s1 + $0xbc] sm:$0xf]
        %v1303 = vunpack.c.l.b16 %v1178
        %v1304 = vunpack.c.l.b16 %v1181
        %v1305 = vunpack.c.l.b16 %v1185
        %v1306 = vunpack.c.l.b16 %v1188
        %v1307 = vunpack.c.l.b16 %v1192
        %v1308 = vunpack.c.l.b16 %v1195
        %v1309 = vunpack.c.l.b16 %v1199
        %v1310 = vunpack.c.l.b16 %v1202
        %v1311 = vunpack.c.l.b16 %v1206
        %v1312 = vunpack.c.l.b16 %v1209
        %v1313 = vunpack.c.l.b16 %v1213
        %v1314 = vunpack.c.l.b16 %v1216
        %v1315 = vunpack.c.l.b16 %v1220
        %v1316 = vunpack.c.l.b16 %v1223
        %v1317 = vunpack.c.l.b16 %v1227
        %v1318 = vunpack.c.l.b16 %v1230
        %v1319 = vunpack.c.l.b16 %v1234
        %v1320 = vunpack.c.l.b16 %v1237
        %v1321 = vunpack.c.l.b16 %v1241
        %v1322 = vunpack.c.l.b16 %v1244
        %v1323 = vunpack.c.l.b16 %v1248
        %v1324 = vunpack.c.l.b16 %v1251
        %v1325 = vunpack.c.l.b16 %v1255
        %v1326 = vunpack.c.l.b16 %v1258
        %v1327 = vunpack.c.l.b16 %v1262
        %v1328 = vunpack.c.l.b16 %v1265
        %v1329 = vunpack.c.l.b16 %v1269
        %v1330 = vunpack.c.l.b16 %v1272
        %v1331 = vunpack.c.l.b16 %v1276
        %v1332 = vunpack.c.l.b16 %v1279
        %v1333 = vunpack.c.l.b16 %v1283
        %v1334 = vunpack.c.l.b16 %v1286
        %v1335 = vpack.c.b16 %v1304, %v1303
        %v1336 = vpack.c.b16 %v1306, %v1305
        %v1337 = vpack.c.b16 %v1308, %v1307
        %v1338 = vpack.c.b16 %v1310, %v1309
        %v1339 = vpack.c.b16 %v1312, %v1311
        %v1340 = vpack.c.b16 %v1314, %v1313
        %v1341 = vpack.c.b16 %v1316, %v1315
        %v1342 = vpack.c.b16 %v1318, %v1317
        %v1343 = vpack.c.b16 %v1320, %v1319
        %v1344 = vpack.c.b16 %v1322, %v1321
        %v1345 = vpack.c.b16 %v1324, %v1323
        %v1346 = vpack.c.b16 %v1326, %v1325
        %v1347 = vpack.c.b16 %v1328, %v1327
        %v1348 = vpack.c.b16 %v1330, %v1329
        %v1349 = vpack.c.b16 %v1332, %v1331
        %v1350 = vpack.c.b16 %v1334, %v1333
        %v1383 = vunpack.c.l.b16 %v1287
        %v1384 = vunpack.c.l.b16 %v1288
        %v1385 = vunpack.c.l.b16 %v1289
        %v1386 = vunpack.c.l.b16 %v1290
        %v1387 = vunpack.c.l.b16 %v1291
        %v1388 = vunpack.c.l.b16 %v1292
        %v1389 = vunpack.c.l.b16 %v1293
        %v1390 = vunpack.c.l.b16 %v1294
        %v1391 = vunpack.c.l.b16 %v1295
        %v1392 = vunpack.c.l.b16 %v1296
        %v1393 = vunpack.c.l.b16 %v1297
        %v1394 = vunpack.c.l.b16 %v1298
        %v1395 = vunpack.c.l.b16 %v1299
        %v1396 = vunpack.c.l.b16 %v1300
        %v1397 = vunpack.c.l.b16 %v1301
        %v1398 = vunpack.c.l.b16 %v1302
        %v1399 = vpack.c.b16 %v1384, %v1383
        %v1400 = vpack.c.b16 %v1386, %v1385
        %v1401 = vpack.c.b16 %v1388, %v1387
        %v1402 = vpack.c.b16 %v1390, %v1389
        %v1403 = vpack.c.b16 %v1392, %v1391
        %v1404 = vpack.c.b16 %v1394, %v1393
        %v1405 = vpack.c.b16 %v1396, %v1395
        %v1406 = vpack.c.b16 %v1398, %v1397
        %1415 = vmatpush.bf16.msra.mxu0 %v1406
        %1416 = vmatpush.bf16.msra.mxu0 %v1405
        %1417 = vmatpush.bf16.msra.mxu0 %v1404
        %1418 = vmatpush.bf16.msra.mxu0 %v1403
        %1419 = vmatpush.bf16.msra.mxu0 %v1402
        %1420 = vmatpush.bf16.msra.mxu0 %v1401
        %1421 = vmatpush.bf16.msra.mxu0 %v1400
        %1422 = vmatpush.bf16.msra.mxu0 %v1399
        %1423 = vmatmul.bf16.gmra.mxu0 %v1335
        %v1424 = vpop.f32.mrf.mxu0
        %v1425 = vadd.f32 0.0, %v1424
        %v1426 = vpop.f32.mrf.mxu0
        %v1427 = vadd.f32 0.0, %v1426
        %1428 = vmatmul.bf16.gmra.mxu0 %v1336
        %v1429 = vpop.f32.mrf.mxu0
        %v1430 = vadd.f32 0.0, %v1429
        %v1431 = vpop.f32.mrf.mxu0
        %v1432 = vadd.f32 0.0, %v1431
        %1433 = vmatmul.bf16.gmra.mxu0 %v1337
        %v1434 = vpop.f32.mrf.mxu0
        %v1435 = vadd.f32 0.0, %v1434
        %v1436 = vpop.f32.mrf.mxu0
        %v1437 = vadd.f32 0.0, %v1436
        %1438 = vmatmul.bf16.gmra.mxu0 %v1338
        %v1439 = vpop.f32.mrf.mxu0
        %v1440 = vadd.f32 0.0, %v1439
        %v1441 = vpop.f32.mrf.mxu0
        %v1442 = vadd.f32 0.0, %v1441
        %1443 = vmatmul.bf16.gmra.mxu0 %v1339
        %v1444 = vpop.f32.mrf.mxu0
        %v1445 = vadd.f32 0.0, %v1444
        %v1446 = vpop.f32.mrf.mxu0
        %v1447 = vadd.f32 0.0, %v1446
        %1448 = vmatmul.bf16.gmra.mxu0 %v1340
        %v1449 = vpop.f32.mrf.mxu0
        %v1450 = vadd.f32 0.0, %v1449
        %v1451 = vpop.f32.mrf.mxu0
        %v1452 = vadd.f32 0.0, %v1451
        %1453 = vmatmul.bf16.gmra.mxu0 %v1341
        %v1454 = vpop.f32.mrf.mxu0
        %v1455 = vadd.f32 0.0, %v1454
        %v1456 = vpop.f32.mrf.mxu0
        %v1457 = vadd.f32 0.0, %v1456
        %1458 = vmatmul.bf16.gmra.mxu0 %v1342
        %v1459 = vpop.f32.mrf.mxu0
        %v1460 = vadd.f32 0.0, %v1459
        %v1461 = vpop.f32.mrf.mxu0
        %v1462 = vadd.f32 0.0, %v1461
        %1463 = vmatmul.bf16.gmra.mxu0 %v1343
        %v1464 = vpop.f32.mrf.mxu0
        %v1465 = vadd.f32 0.0, %v1464
        %v1466 = vpop.f32.mrf.mxu0
        %v1467 = vadd.f32 0.0, %v1466
        %1468 = vmatmul.bf16.gmra.mxu0 %v1344
        %v1469 = vpop.f32.mrf.mxu0
        %v1470 = vadd.f32 0.0, %v1469
        %v1471 = vpop.f32.mrf.mxu0
        %v1472 = vadd.f32 0.0, %v1471
        %1473 = vmatmul.bf16.gmra.mxu0 %v1345
        %v1474 = vpop.f32.mrf.mxu0
        %v1475 = vadd.f32 0.0, %v1474
        %v1476 = vpop.f32.mrf.mxu0
        %v1477 = vadd.f32 0.0, %v1476
        %1478 = vmatmul.bf16.gmra.mxu0 %v1346
        %v1479 = vpop.f32.mrf.mxu0
        %v1480 = vadd.f32 0.0, %v1479
        %v1481 = vpop.f32.mrf.mxu0
        %v1482 = vadd.f32 0.0, %v1481
        %1483 = vmatmul.bf16.gmra.mxu0 %v1347
        %v1484 = vpop.f32.mrf.mxu0
        %v1485 = vadd.f32 0.0, %v1484
        %v1486 = vpop.f32.mrf.mxu0
        %v1487 = vadd.f32 0.0, %v1486
        %1488 = vmatmul.bf16.gmra.mxu0 %v1348
        %v1489 = vpop.f32.mrf.mxu0
        %v1490 = vadd.f32 0.0, %v1489
        %v1491 = vpop.f32.mrf.mxu0
        %v1492 = vadd.f32 0.0, %v1491
        %1493 = vmatmul.bf16.gmra.mxu0 %v1349
        %v1494 = vpop.f32.mrf.mxu0
        %v1495 = vadd.f32 0.0, %v1494
        %v1496 = vpop.f32.mrf.mxu0
        %v1497 = vadd.f32 0.0, %v1496
        %1498 = vmatmul.bf16.gmra.mxu0 %v1350
        %v1499 = vpop.f32.mrf.mxu0
        %v1500 = vadd.f32 0.0, %v1499
        %v1501 = vpop.f32.mrf.mxu0
        %v1502 = vadd.f32 0.0, %v1501
        %1503 = vdwg.mxu0
        %v1504 = vadd.f32 %v1045, %v1425
        %v1505 = vadd.f32 %v1047, %v1427
        %v1506 = vadd.f32 %v1050, %v1430
        %v1507 = vadd.f32 %v1052, %v1432
        %v1508 = vadd.f32 %v1055, %v1435
        %v1509 = vadd.f32 %v1057, %v1437
        %v1510 = vadd.f32 %v1060, %v1440
        %v1511 = vadd.f32 %v1062, %v1442
        %v1512 = vadd.f32 %v1065, %v1445
        %v1513 = vadd.f32 %v1067, %v1447
        %v1514 = vadd.f32 %v1070, %v1450
        %v1515 = vadd.f32 %v1072, %v1452
        %v1516 = vadd.f32 %v1075, %v1455
        %v1517 = vadd.f32 %v1077, %v1457
        %v1518 = vadd.f32 %v1080, %v1460
        %v1519 = vadd.f32 %v1082, %v1462
        %v1520 = vadd.f32 %v1085, %v1465
        %v1521 = vadd.f32 %v1087, %v1467
        %v1522 = vadd.f32 %v1090, %v1470
        %v1523 = vadd.f32 %v1092, %v1472
        %v1524 = vadd.f32 %v1095, %v1475
        %v1525 = vadd.f32 %v1097, %v1477
        %v1526 = vadd.f32 %v1100, %v1480
        %v1527 = vadd.f32 %v1102, %v1482
        %v1528 = vadd.f32 %v1105, %v1485
        %v1529 = vadd.f32 %v1107, %v1487
        %v1530 = vadd.f32 %v1110, %v1490
        %v1531 = vadd.f32 %v1112, %v1492
        %v1532 = vadd.f32 %v1115, %v1495
        %v1533 = vadd.f32 %v1117, %v1497
        %v1534 = vadd.f32 %v1120, %v1500
        %v1535 = vadd.f32 %v1122, %v1502
        %s1536 = scalar_lea.vmem %s222, 12
        %v1537 = vld [vmem:[%s1536] sm:$0xf]
        %v1538 = vld [vmem:[%s1536 + $0x4] sm:$0xf]
        %v1539 = vld [vmem:[%s1536 + $0xc] sm:$0xf]
        %v1540 = vld [vmem:[%s1536 + $0x10] sm:$0xf]
        %v1541 = vld [vmem:[%s1536 + $0x18] sm:$0xf]
        %v1542 = vld [vmem:[%s1536 + $0x1c] sm:$0xf]
        %v1543 = vld [vmem:[%s1536 + $0x24] sm:$0xf]
        %v1544 = vld [vmem:[%s1536 + $0x28] sm:$0xf]
        %v1545 = vld [vmem:[%s1536 + $0x30] sm:$0xf]
        %v1546 = vld [vmem:[%s1536 + $0x34] sm:$0xf]
        %v1547 = vld [vmem:[%s1536 + $0x3c] sm:$0xf]
        %v1548 = vld [vmem:[%s1536 + $0x40] sm:$0xf]
        %v1549 = vld [vmem:[%s1536 + $0x48] sm:$0xf]
        %v1550 = vld [vmem:[%s1536 + $0x4c] sm:$0xf]
        %v1551 = vld [vmem:[%s1536 + $0x54] sm:$0xf]
        %v1552 = vld [vmem:[%s1536 + $0x58] sm:$0xf]
        %v1553 = vld [vmem:[%s1536 + $0x60] sm:$0xf]
        %v1554 = vld [vmem:[%s1536 + $0x64] sm:$0xf]
        %v1555 = vld [vmem:[%s1536 + $0x6c] sm:$0xf]
        %v1556 = vld [vmem:[%s1536 + $0x70] sm:$0xf]
        %v1557 = vld [vmem:[%s1536 + $0x78] sm:$0xf]
        %v1558 = vld [vmem:[%s1536 + $0x7c] sm:$0xf]
        %v1559 = vld [vmem:[%s1536 + $0x84] sm:$0xf]
        %v1560 = vld [vmem:[%s1536 + $0x88] sm:$0xf]
        %v1561 = vld [vmem:[%s1536 + $0x90] sm:$0xf]
        %v1562 = vld [vmem:[%s1536 + $0x94] sm:$0xf]
        %v1563 = vld [vmem:[%s1536 + $0x9c] sm:$0xf]
        %v1564 = vld [vmem:[%s1536 + $0xa0] sm:$0xf]
        %v1565 = vld [vmem:[%s1536 + $0xa8] sm:$0xf]
        %v1566 = vld [vmem:[%s1536 + $0xac] sm:$0xf]
        %v1567 = vld [vmem:[%s1536 + $0xb4] sm:$0xf]
        %v1568 = vld [vmem:[%s1536 + $0xb8] sm:$0xf]
        %v1569 = vld [vmem:[%s1 + $0xc0] sm:$0xf]
        %v1570 = vld [vmem:[%s1 + $0xc4] sm:$0xf]
        %v1571 = vld [vmem:[%s1 + $0xc8] sm:$0xf]
        %v1572 = vld [vmem:[%s1 + $0xcc] sm:$0xf]
        %v1573 = vld [vmem:[%s1 + $0xd0] sm:$0xf]
        %v1574 = vld [vmem:[%s1 + $0xd4] sm:$0xf]
        %v1575 = vld [vmem:[%s1 + $0xd8] sm:$0xf]
        %v1576 = vld [vmem:[%s1 + $0xdc] sm:$0xf]
        %v1577 = vld [vmem:[%s1 + $0xe0] sm:$0xf]
        %v1578 = vld [vmem:[%s1 + $0xe4] sm:$0xf]
        %v1579 = vld [vmem:[%s1 + $0xe8] sm:$0xf]
        %v1580 = vld [vmem:[%s1 + $0xec] sm:$0xf]
        %v1581 = vld [vmem:[%s1 + $0xf0] sm:$0xf]
        %v1582 = vld [vmem:[%s1 + $0xf4] sm:$0xf]
        %v1583 = vld [vmem:[%s1 + $0xf8] sm:$0xf]
        %v1584 = vld [vmem:[%s1 + $0xfc] sm:$0xf]
        %v1617 = vunpack.c.l.b16 %v1537
        %v1618 = vunpack.c.l.b16 %v1538
        %v1619 = vunpack.c.l.b16 %v1539
        %v1620 = vunpack.c.l.b16 %v1540
        %v1621 = vunpack.c.l.b16 %v1541
        %v1622 = vunpack.c.l.b16 %v1542
        %v1623 = vunpack.c.l.b16 %v1543
        %v1624 = vunpack.c.l.b16 %v1544
        %v1625 = vunpack.c.l.b16 %v1545
        %v1626 = vunpack.c.l.b16 %v1546
        %v1627 = vunpack.c.l.b16 %v1547
        %v1628 = vunpack.c.l.b16 %v1548
        %v1629 = vunpack.c.l.b16 %v1549
        %v1630 = vunpack.c.l.b16 %v1550
        %v1631 = vunpack.c.l.b16 %v1551
        %v1632 = vunpack.c.l.b16 %v1552
        %v1633 = vunpack.c.l.b16 %v1553
        %v1634 = vunpack.c.l.b16 %v1554
        %v1635 = vunpack.c.l.b16 %v1555
        %v1636 = vunpack.c.l.b16 %v1556
        %v1637 = vunpack.c.l.b16 %v1557
        %v1638 = vunpack.c.l.b16 %v1558
        %v1639 = vunpack.c.l.b16 %v1559
        %v1640 = vunpack.c.l.b16 %v1560
        %v1641 = vunpack.c.l.b16 %v1561
        %v1642 = vunpack.c.l.b16 %v1562
        %v1643 = vunpack.c.l.b16 %v1563
        %v1644 = vunpack.c.l.b16 %v1564
        %v1645 = vunpack.c.l.b16 %v1565
        %v1646 = vunpack.c.l.b16 %v1566
        %v1647 = vunpack.c.l.b16 %v1567
        %v1648 = vunpack.c.l.b16 %v1568
        %v1649 = vpack.c.b16 %v1618, %v1617
        %v1650 = vpack.c.b16 %v1620, %v1619
        %v1651 = vpack.c.b16 %v1622, %v1621
        %v1652 = vpack.c.b16 %v1624, %v1623
        %v1653 = vpack.c.b16 %v1626, %v1625
        %v1654 = vpack.c.b16 %v1628, %v1627
        %v1655 = vpack.c.b16 %v1630, %v1629
        %v1656 = vpack.c.b16 %v1632, %v1631
        %v1657 = vpack.c.b16 %v1634, %v1633
        %v1658 = vpack.c.b16 %v1636, %v1635
        %v1659 = vpack.c.b16 %v1638, %v1637
        %v1660 = vpack.c.b16 %v1640, %v1639
        %v1661 = vpack.c.b16 %v1642, %v1641
        %v1662 = vpack.c.b16 %v1644, %v1643
        %v1663 = vpack.c.b16 %v1646, %v1645
        %v1664 = vpack.c.b16 %v1648, %v1647
        %v1697 = vunpack.c.l.b16 %v1569
        %v1698 = vunpack.c.l.b16 %v1570
        %v1699 = vunpack.c.l.b16 %v1571
        %v1700 = vunpack.c.l.b16 %v1572
        %v1701 = vunpack.c.l.b16 %v1573
        %v1702 = vunpack.c.l.b16 %v1574
        %v1703 = vunpack.c.l.b16 %v1575
        %v1704 = vunpack.c.l.b16 %v1576
        %v1705 = vunpack.c.l.b16 %v1577
        %v1706 = vunpack.c.l.b16 %v1578
        %v1707 = vunpack.c.l.b16 %v1579
        %v1708 = vunpack.c.l.b16 %v1580
        %v1709 = vunpack.c.l.b16 %v1581
        %v1710 = vunpack.c.l.b16 %v1582
        %v1711 = vunpack.c.l.b16 %v1583
        %v1712 = vunpack.c.l.b16 %v1584
        %v1713 = vpack.c.b16 %v1698, %v1697
        %v1714 = vpack.c.b16 %v1700, %v1699
        %v1715 = vpack.c.b16 %v1702, %v1701
        %v1716 = vpack.c.b16 %v1704, %v1703
        %v1717 = vpack.c.b16 %v1706, %v1705
        %v1718 = vpack.c.b16 %v1708, %v1707
        %v1719 = vpack.c.b16 %v1710, %v1709
        %v1720 = vpack.c.b16 %v1712, %v1711
        %1729 = vmatpush.bf16.msra.mxu0 %v1720
        %1730 = vmatpush.bf16.msra.mxu0 %v1719
        %1731 = vmatpush.bf16.msra.mxu0 %v1718
        %1732 = vmatpush.bf16.msra.mxu0 %v1717
        %1733 = vmatpush.bf16.msra.mxu0 %v1716
        %1734 = vmatpush.bf16.msra.mxu0 %v1715
        %1735 = vmatpush.bf16.msra.mxu0 %v1714
        %1736 = vmatpush.bf16.msra.mxu0 %v1713
        %1737 = vmatmul.bf16.gmra.mxu0 %v1649
        %v1738 = vpop.f32.mrf.mxu0
        %v1739 = vadd.f32 0.0, %v1738
        %v1740 = vpop.f32.mrf.mxu0
        %v1741 = vadd.f32 0.0, %v1740
        %1742 = vmatmul.bf16.gmra.mxu0 %v1650
        %v1743 = vpop.f32.mrf.mxu0
        %v1744 = vadd.f32 0.0, %v1743
        %v1745 = vpop.f32.mrf.mxu0
        %v1746 = vadd.f32 0.0, %v1745
        %1747 = vmatmul.bf16.gmra.mxu0 %v1651
        %v1748 = vpop.f32.mrf.mxu0
        %v1749 = vadd.f32 0.0, %v1748
        %v1750 = vpop.f32.mrf.mxu0
        %v1751 = vadd.f32 0.0, %v1750
        %1752 = vmatmul.bf16.gmra.mxu0 %v1652
        %v1753 = vpop.f32.mrf.mxu0
        %v1754 = vadd.f32 0.0, %v1753
        %v1755 = vpop.f32.mrf.mxu0
        %v1756 = vadd.f32 0.0, %v1755
        %1757 = vmatmul.bf16.gmra.mxu0 %v1653
        %v1758 = vpop.f32.mrf.mxu0
        %v1759 = vadd.f32 0.0, %v1758
        %v1760 = vpop.f32.mrf.mxu0
        %v1761 = vadd.f32 0.0, %v1760
        %1762 = vmatmul.bf16.gmra.mxu0 %v1654
        %v1763 = vpop.f32.mrf.mxu0
        %v1764 = vadd.f32 0.0, %v1763
        %v1765 = vpop.f32.mrf.mxu0
        %v1766 = vadd.f32 0.0, %v1765
        %1767 = vmatmul.bf16.gmra.mxu0 %v1655
        %v1768 = vpop.f32.mrf.mxu0
        %v1769 = vadd.f32 0.0, %v1768
        %v1770 = vpop.f32.mrf.mxu0
        %v1771 = vadd.f32 0.0, %v1770
        %1772 = vmatmul.bf16.gmra.mxu0 %v1656
        %v1773 = vpop.f32.mrf.mxu0
        %v1774 = vadd.f32 0.0, %v1773
        %v1775 = vpop.f32.mrf.mxu0
        %v1776 = vadd.f32 0.0, %v1775
        %1777 = vmatmul.bf16.gmra.mxu0 %v1657
        %v1778 = vpop.f32.mrf.mxu0
        %v1779 = vadd.f32 0.0, %v1778
        %v1780 = vpop.f32.mrf.mxu0
        %v1781 = vadd.f32 0.0, %v1780
        %1782 = vmatmul.bf16.gmra.mxu0 %v1658
        %v1783 = vpop.f32.mrf.mxu0
        %v1784 = vadd.f32 0.0, %v1783
        %v1785 = vpop.f32.mrf.mxu0
        %v1786 = vadd.f32 0.0, %v1785
        %1787 = vmatmul.bf16.gmra.mxu0 %v1659
        %v1788 = vpop.f32.mrf.mxu0
        %v1789 = vadd.f32 0.0, %v1788
        %v1790 = vpop.f32.mrf.mxu0
        %v1791 = vadd.f32 0.0, %v1790
        %1792 = vmatmul.bf16.gmra.mxu0 %v1660
        %v1793 = vpop.f32.mrf.mxu0
        %v1794 = vadd.f32 0.0, %v1793
        %v1795 = vpop.f32.mrf.mxu0
        %v1796 = vadd.f32 0.0, %v1795
        %1797 = vmatmul.bf16.gmra.mxu0 %v1661
        %v1798 = vpop.f32.mrf.mxu0
        %v1799 = vadd.f32 0.0, %v1798
        %v1800 = vpop.f32.mrf.mxu0
        %v1801 = vadd.f32 0.0, %v1800
        %1802 = vmatmul.bf16.gmra.mxu0 %v1662
        %v1803 = vpop.f32.mrf.mxu0
        %v1804 = vadd.f32 0.0, %v1803
        %v1805 = vpop.f32.mrf.mxu0
        %v1806 = vadd.f32 0.0, %v1805
        %1807 = vmatmul.bf16.gmra.mxu0 %v1663
        %v1808 = vpop.f32.mrf.mxu0
        %v1809 = vadd.f32 0.0, %v1808
        %v1810 = vpop.f32.mrf.mxu0
        %v1811 = vadd.f32 0.0, %v1810
        %1812 = vmatmul.bf16.gmra.mxu0 %v1664
        %v1813 = vpop.f32.mrf.mxu0
        %v1814 = vadd.f32 0.0, %v1813
        %v1815 = vpop.f32.mrf.mxu0
        %v1816 = vadd.f32 0.0, %v1815
        %1817 = vdwg.mxu0
        %v1818 = vadd.f32 %v1504, %v1739
        %v1819 = vadd.f32 %v1505, %v1741
        %v1820 = vadd.f32 %v1506, %v1744
        %v1821 = vadd.f32 %v1507, %v1746
        %v1822 = vadd.f32 %v1508, %v1749
        %v1823 = vadd.f32 %v1509, %v1751
        %v1824 = vadd.f32 %v1510, %v1754
        %v1825 = vadd.f32 %v1511, %v1756
        %v1826 = vadd.f32 %v1512, %v1759
        %v1827 = vadd.f32 %v1513, %v1761
        %v1828 = vadd.f32 %v1514, %v1764
        %v1829 = vadd.f32 %v1515, %v1766
        %v1830 = vadd.f32 %v1516, %v1769
        %v1831 = vadd.f32 %v1517, %v1771
        %v1832 = vadd.f32 %v1518, %v1774
        %v1833 = vadd.f32 %v1519, %v1776
        %v1834 = vadd.f32 %v1520, %v1779
        %v1835 = vadd.f32 %v1521, %v1781
        %v1836 = vadd.f32 %v1522, %v1784
        %v1837 = vadd.f32 %v1523, %v1786
        %v1838 = vadd.f32 %v1524, %v1789
        %v1839 = vadd.f32 %v1525, %v1791
        %v1840 = vadd.f32 %v1526, %v1794
        %v1841 = vadd.f32 %v1527, %v1796
        %v1842 = vadd.f32 %v1528, %v1799
        %v1843 = vadd.f32 %v1529, %v1801
        %v1844 = vadd.f32 %v1530, %v1804
        %v1845 = vadd.f32 %v1531, %v1806
        %v1846 = vadd.f32 %v1532, %v1809
        %v1847 = vadd.f32 %v1533, %v1811
        %v1848 = vadd.f32 %v1534, %v1814
        %v1849 = vadd.f32 %v1535, %v1816
        %v1850 = vld [vmem:[%s1536] sm:$0xf]
        %v1851 = vld [vmem:[%s1536 + $0x4] sm:$0xf]
        %v1852 = vld [vmem:[%s1536 + $0x8] sm:$0x1]
        %v1853 = vld [vmem:[%s1536 + $0xc] sm:$0xf]
        %v1854 = vld [vmem:[%s1536 + $0x10] sm:$0xf]
        %v1855 = vld [vmem:[%s1536 + $0x14] sm:$0x1]
        %v1856 = vld [vmem:[%s1536 + $0x18] sm:$0xf]
        %v1857 = vld [vmem:[%s1536 + $0x1c] sm:$0xf]
        %v1858 = vld [vmem:[%s1536 + $0x20] sm:$0x1]
        %v1859 = vld [vmem:[%s1536 + $0x24] sm:$0xf]
        %v1860 = vld [vmem:[%s1536 + $0x28] sm:$0xf]
        %v1861 = vld [vmem:[%s1536 + $0x2c] sm:$0x1]
        %v1862 = vld [vmem:[%s1536 + $0x30] sm:$0xf]
        %v1863 = vld [vmem:[%s1536 + $0x34] sm:$0xf]
        %v1864 = vld [vmem:[%s1536 + $0x38] sm:$0x1]
        %v1865 = vld [vmem:[%s1536 + $0x3c] sm:$0xf]
        %v1866 = vld [vmem:[%s1536 + $0x40] sm:$0xf]
        %v1867 = vld [vmem:[%s1536 + $0x44] sm:$0x1]
        %v1868 = vld [vmem:[%s1536 + $0x48] sm:$0xf]
        %v1869 = vld [vmem:[%s1536 + $0x4c] sm:$0xf]
        %v1870 = vld [vmem:[%s1536 + $0x50] sm:$0x1]
        %v1871 = vld [vmem:[%s1536 + $0x54] sm:$0xf]
        %v1872 = vld [vmem:[%s1536 + $0x58] sm:$0xf]
        %v1873 = vld [vmem:[%s1536 + $0x5c] sm:$0x1]
        %v1874 = vld [vmem:[%s1536 + $0x60] sm:$0xf]
        %v1875 = vld [vmem:[%s1536 + $0x64] sm:$0xf]
        %v1876 = vld [vmem:[%s1536 + $0x68] sm:$0x1]
        %v1877 = vld [vmem:[%s1536 + $0x6c] sm:$0xf]
        %v1878 = vld [vmem:[%s1536 + $0x70] sm:$0xf]
        %v1879 = vld [vmem:[%s1536 + $0x74] sm:$0x1]
        %v1880 = vld [vmem:[%s1536 + $0x78] sm:$0xf]
        %v1881 = vld [vmem:[%s1536 + $0x7c] sm:$0xf]
        %v1882 = vld [vmem:[%s1536 + $0x80] sm:$0x1]
        %v1883 = vld [vmem:[%s1536 + $0x84] sm:$0xf]
        %v1884 = vld [vmem:[%s1536 + $0x88] sm:$0xf]
        %v1885 = vld [vmem:[%s1536 + $0x8c] sm:$0x1]
        %v1886 = vld [vmem:[%s1536 + $0x90] sm:$0xf]
        %v1887 = vld [vmem:[%s1536 + $0x94] sm:$0xf]
        %v1888 = vld [vmem:[%s1536 + $0x98] sm:$0x1]
        %v1889 = vld [vmem:[%s1536 + $0x9c] sm:$0xf]
        %v1890 = vld [vmem:[%s1536 + $0xa0] sm:$0xf]
        %v1891 = vld [vmem:[%s1536 + $0xa4] sm:$0x1]
        %v1892 = vld [vmem:[%s1536 + $0xa8] sm:$0xf]
        %v1893 = vld [vmem:[%s1536 + $0xac] sm:$0xf]
        %v1894 = vld [vmem:[%s1536 + $0xb0] sm:$0x1]
        %v1895 = vld [vmem:[%s1536 + $0xb4] sm:$0xf]
        %v1896 = vld [vmem:[%s1536 + $0xb8] sm:$0xf]
        %v1897 = vld [vmem:[%s1536 + $0xbc] sm:$0x1]
        %v1899 = vshrl.u32 %v1850, 16
        %v1901 = vrot.slane %v1899, 4
        %v1902 = vshll.u32 %v1850, 16
        %v1904 = vrot.slane %v1902, 5
        %v1905 = vor.u32 %v1901, %v1904
        %v1906 = vrot.slane %v1905, 4
        %v1908 = vshll.u32 %v1851, 16
        %v1910 = vrot.slane %v1908, 5
        %v1911 = vsel %vm289, %v1906, %v1910
        %v1912 = vshrl.u32 %v1851, 16
        %v1914 = vrot.slane %v1912, 4
        %v1915 = vor.u32 %v1914, %v1910
        %v1916 = vrot.slane %v1915, 4
        %v1918 = vshll.u32 %v1852, 16
        %v1920 = vrot.slane %v1918, 5
        %v1921 = vsel %vm289, %v1916, %v1920
        %v1923 = vshrl.u32 %v1853, 16
        %v1925 = vrot.slane %v1923, 4
        %v1926 = vshll.u32 %v1853, 16
        %v1928 = vrot.slane %v1926, 5
        %v1929 = vor.u32 %v1925, %v1928
        %v1930 = vrot.slane %v1929, 4
        %v1932 = vshll.u32 %v1854, 16
        %v1934 = vrot.slane %v1932, 5
        %v1935 = vsel %vm289, %v1930, %v1934
        %v1936 = vshrl.u32 %v1854, 16
        %v1938 = vrot.slane %v1936, 4
        %v1939 = vor.u32 %v1938, %v1934
        %v1940 = vrot.slane %v1939, 4
        %v1942 = vshll.u32 %v1855, 16
        %v1944 = vrot.slane %v1942, 5
        %v1945 = vsel %vm289, %v1940, %v1944
        %v1947 = vshrl.u32 %v1856, 16
        %v1949 = vrot.slane %v1947, 4
        %v1950 = vshll.u32 %v1856, 16
        %v1952 = vrot.slane %v1950, 5
        %v1953 = vor.u32 %v1949, %v1952
        %v1954 = vrot.slane %v1953, 4
        %v1956 = vshll.u32 %v1857, 16
        %v1958 = vrot.slane %v1956, 5
        %v1959 = vsel %vm289, %v1954, %v1958
        %v1960 = vshrl.u32 %v1857, 16
        %v1962 = vrot.slane %v1960, 4
        %v1963 = vor.u32 %v1962, %v1958
        %v1964 = vrot.slane %v1963, 4
        %v1966 = vshll.u32 %v1858, 16
        %v1968 = vrot.slane %v1966, 5
        %v1969 = vsel %vm289, %v1964, %v1968
        %v1971 = vshrl.u32 %v1859, 16
        %v1973 = vrot.slane %v1971, 4
        %v1974 = vshll.u32 %v1859, 16
        %v1976 = vrot.slane %v1974, 5
        %v1977 = vor.u32 %v1973, %v1976
        %v1978 = vrot.slane %v1977, 4
        %v1980 = vshll.u32 %v1860, 16
        %v1982 = vrot.slane %v1980, 5
        %v1983 = vsel %vm289, %v1978, %v1982
        %v1984 = vshrl.u32 %v1860, 16
        %v1986 = vrot.slane %v1984, 4
        %v1987 = vor.u32 %v1986, %v1982
        %v1988 = vrot.slane %v1987, 4
        %v1990 = vshll.u32 %v1861, 16
        %v1992 = vrot.slane %v1990, 5
        %v1993 = vsel %vm289, %v1988, %v1992
        %v1995 = vshrl.u32 %v1862, 16
        %v1997 = vrot.slane %v1995, 4
        %v1998 = vshll.u32 %v1862, 16
        %v2000 = vrot.slane %v1998, 5
        %v2001 = vor.u32 %v1997, %v2000
        %v2002 = vrot.slane %v2001, 4
        %v2004 = vshll.u32 %v1863, 16
        %v2006 = vrot.slane %v2004, 5
        %v2007 = vsel %vm289, %v2002, %v2006
        %v2008 = vshrl.u32 %v1863, 16
        %v2010 = vrot.slane %v2008, 4
        %v2011 = vor.u32 %v2010, %v2006
        %v2012 = vrot.slane %v2011, 4
        %v2014 = vshll.u32 %v1864, 16
        %v2016 = vrot.slane %v2014, 5
        %v2017 = vsel %vm289, %v2012, %v2016
        %v2019 = vshrl.u32 %v1865, 16
        %v2021 = vrot.slane %v2019, 4
        %v2022 = vshll.u32 %v1865, 16
        %v2024 = vrot.slane %v2022, 5
        %v2025 = vor.u32 %v2021, %v2024
        %v2026 = vrot.slane %v2025, 4
        %v2028 = vshll.u32 %v1866, 16
        %v2030 = vrot.slane %v2028, 5
        %v2031 = vsel %vm289, %v2026, %v2030
        %v2032 = vshrl.u32 %v1866, 16
        %v2034 = vrot.slane %v2032, 4
        %v2035 = vor.u32 %v2034, %v2030
        %v2036 = vrot.slane %v2035, 4
        %v2038 = vshll.u32 %v1867, 16
        %v2040 = vrot.slane %v2038, 5
        %v2041 = vsel %vm289, %v2036, %v2040
        %v2043 = vshrl.u32 %v1868, 16
        %v2045 = vrot.slane %v2043, 4
        %v2046 = vshll.u32 %v1868, 16
        %v2048 = vrot.slane %v2046, 5
        %v2049 = vor.u32 %v2045, %v2048
        %v2050 = vrot.slane %v2049, 4
        %v2052 = vshll.u32 %v1869, 16
        %v2054 = vrot.slane %v2052, 5
        %v2055 = vsel %vm289, %v2050, %v2054
        %v2056 = vshrl.u32 %v1869, 16
        %v2058 = vrot.slane %v2056, 4
        %v2059 = vor.u32 %v2058, %v2054
        %v2060 = vrot.slane %v2059, 4
        %v2062 = vshll.u32 %v1870, 16
        %v2064 = vrot.slane %v2062, 5
        %v2065 = vsel %vm289, %v2060, %v2064
        %v2067 = vshrl.u32 %v1871, 16
        %v2069 = vrot.slane %v2067, 4
        %v2070 = vshll.u32 %v1871, 16
        %v2072 = vrot.slane %v2070, 5
        %v2073 = vor.u32 %v2069, %v2072
        %v2074 = vrot.slane %v2073, 4
        %v2076 = vshll.u32 %v1872, 16
        %v2078 = vrot.slane %v2076, 5
        %v2079 = vsel %vm289, %v2074, %v2078
        %v2080 = vshrl.u32 %v1872, 16
        %v2082 = vrot.slane %v2080, 4
        %v2083 = vor.u32 %v2082, %v2078
        %v2084 = vrot.slane %v2083, 4
        %v2086 = vshll.u32 %v1873, 16
        %v2088 = vrot.slane %v2086, 5
        %v2089 = vsel %vm289, %v2084, %v2088
        %v2091 = vshrl.u32 %v1874, 16
        %v2093 = vrot.slane %v2091, 4
        %v2094 = vshll.u32 %v1874, 16
        %v2096 = vrot.slane %v2094, 5
        %v2097 = vor.u32 %v2093, %v2096
        %v2098 = vrot.slane %v2097, 4
        %v2100 = vshll.u32 %v1875, 16
        %v2102 = vrot.slane %v2100, 5
        %v2103 = vsel %vm289, %v2098, %v2102
        %v2104 = vshrl.u32 %v1875, 16
        %v2106 = vrot.slane %v2104, 4
        %v2107 = vor.u32 %v2106, %v2102
        %v2108 = vrot.slane %v2107, 4
        %v2110 = vshll.u32 %v1876, 16
        %v2112 = vrot.slane %v2110, 5
        %v2113 = vsel %vm289, %v2108, %v2112
        %v2115 = vshrl.u32 %v1877, 16
        %v2117 = vrot.slane %v2115, 4
        %v2118 = vshll.u32 %v1877, 16
        %v2120 = vrot.slane %v2118, 5
        %v2121 = vor.u32 %v2117, %v2120
        %v2122 = vrot.slane %v2121, 4
        %v2124 = vshll.u32 %v1878, 16
        %v2126 = vrot.slane %v2124, 5
        %v2127 = vsel %vm289, %v2122, %v2126
        %v2128 = vshrl.u32 %v1878, 16
        %v2130 = vrot.slane %v2128, 4
        %v2131 = vor.u32 %v2130, %v2126
        %v2132 = vrot.slane %v2131, 4
        %v2134 = vshll.u32 %v1879, 16
        %v2136 = vrot.slane %v2134, 5
        %v2137 = vsel %vm289, %v2132, %v2136
        %v2139 = vshrl.u32 %v1880, 16
        %v2141 = vrot.slane %v2139, 4
        %v2142 = vshll.u32 %v1880, 16
        %v2144 = vrot.slane %v2142, 5
        %v2145 = vor.u32 %v2141, %v2144
        %v2146 = vrot.slane %v2145, 4
        %v2148 = vshll.u32 %v1881, 16
        %v2150 = vrot.slane %v2148, 5
        %v2151 = vsel %vm289, %v2146, %v2150
        %v2152 = vshrl.u32 %v1881, 16
        %v2154 = vrot.slane %v2152, 4
        %v2155 = vor.u32 %v2154, %v2150
        %v2156 = vrot.slane %v2155, 4
        %v2158 = vshll.u32 %v1882, 16
        %v2160 = vrot.slane %v2158, 5
        %v2161 = vsel %vm289, %v2156, %v2160
        %v2163 = vshrl.u32 %v1883, 16
        %v2165 = vrot.slane %v2163, 4
        %v2166 = vshll.u32 %v1883, 16
        %v2168 = vrot.slane %v2166, 5
        %v2169 = vor.u32 %v2165, %v2168
        %v2170 = vrot.slane %v2169, 4
        %v2172 = vshll.u32 %v1884, 16
        %v2174 = vrot.slane %v2172, 5
        %v2175 = vsel %vm289, %v2170, %v2174
        %v2176 = vshrl.u32 %v1884, 16
        %v2178 = vrot.slane %v2176, 4
        %v2179 = vor.u32 %v2178, %v2174
        %v2180 = vrot.slane %v2179, 4
        %v2182 = vshll.u32 %v1885, 16
        %v2184 = vrot.slane %v2182, 5
        %v2185 = vsel %vm289, %v2180, %v2184
        %v2187 = vshrl.u32 %v1886, 16
        %v2189 = vrot.slane %v2187, 4
        %v2190 = vshll.u32 %v1886, 16
        %v2192 = vrot.slane %v2190, 5
        %v2193 = vor.u32 %v2189, %v2192
        %v2194 = vrot.slane %v2193, 4
        %v2196 = vshll.u32 %v1887, 16
        %v2198 = vrot.slane %v2196, 5
        %v2199 = vsel %vm289, %v2194, %v2198
        %v2200 = vshrl.u32 %v1887, 16
        %v2202 = vrot.slane %v2200, 4
        %v2203 = vor.u32 %v2202, %v2198
        %v2204 = vrot.slane %v2203, 4
        %v2206 = vshll.u32 %v1888, 16
        %v2208 = vrot.slane %v2206, 5
        %v2209 = vsel %vm289, %v2204, %v2208
        %v2211 = vshrl.u32 %v1889, 16
        %v2213 = vrot.slane %v2211, 4
        %v2214 = vshll.u32 %v1889, 16
        %v2216 = vrot.slane %v2214, 5
        %v2217 = vor.u32 %v2213, %v2216
        %v2218 = vrot.slane %v2217, 4
        %v2220 = vshll.u32 %v1890, 16
        %v2222 = vrot.slane %v2220, 5
        %v2223 = vsel %vm289, %v2218, %v2222
        %v2224 = vshrl.u32 %v1890, 16
        %v2226 = vrot.slane %v2224, 4
        %v2227 = vor.u32 %v2226, %v2222
        %v2228 = vrot.slane %v2227, 4
        %v2230 = vshll.u32 %v1891, 16
        %v2232 = vrot.slane %v2230, 5
        %v2233 = vsel %vm289, %v2228, %v2232
        %v2235 = vshrl.u32 %v1892, 16
        %v2237 = vrot.slane %v2235, 4
        %v2238 = vshll.u32 %v1892, 16
        %v2240 = vrot.slane %v2238, 5
        %v2241 = vor.u32 %v2237, %v2240
        %v2242 = vrot.slane %v2241, 4
        %v2244 = vshll.u32 %v1893, 16
        %v2246 = vrot.slane %v2244, 5
        %v2247 = vsel %vm289, %v2242, %v2246
        %v2248 = vshrl.u32 %v1893, 16
        %v2250 = vrot.slane %v2248, 4
        %v2251 = vor.u32 %v2250, %v2246
        %v2252 = vrot.slane %v2251, 4
        %v2254 = vshll.u32 %v1894, 16
        %v2256 = vrot.slane %v2254, 5
        %v2257 = vsel %vm289, %v2252, %v2256
        %v2259 = vshrl.u32 %v1895, 16
        %v2261 = vrot.slane %v2259, 4
        %v2262 = vshll.u32 %v1895, 16
        %v2264 = vrot.slane %v2262, 5
        %v2265 = vor.u32 %v2261, %v2264
        %v2266 = vrot.slane %v2265, 4
        %v2268 = vshll.u32 %v1896, 16
        %v2270 = vrot.slane %v2268, 5
        %v2271 = vsel %vm289, %v2266, %v2270
        %v2272 = vshrl.u32 %v1896, 16
        %v2274 = vrot.slane %v2272, 4
        %v2275 = vor.u32 %v2274, %v2270
        %v2276 = vrot.slane %v2275, 4
        %v2278 = vshll.u32 %v1897, 16
        %v2280 = vrot.slane %v2278, 5
        %v2281 = vsel %vm289, %v2276, %v2280
        %v2314 = vld [vmem:[%s1 + $0x100] sm:$0xf]
        %v2315 = vld [vmem:[%s1 + $0x104] sm:$0xf]
        %v2316 = vld [vmem:[%s1 + $0x108] sm:$0xf]
        %v2317 = vld [vmem:[%s1 + $0x10c] sm:$0xf]
        %v2318 = vld [vmem:[%s1 + $0x110] sm:$0xf]
        %v2319 = vld [vmem:[%s1 + $0x114] sm:$0xf]
        %v2320 = vld [vmem:[%s1 + $0x118] sm:$0xf]
        %v2321 = vld [vmem:[%s1 + $0x11c] sm:$0xf]
        %v2322 = vld [vmem:[%s1 + $0x120] sm:$0xf]
        %v2323 = vld [vmem:[%s1 + $0x124] sm:$0xf]
        %v2324 = vld [vmem:[%s1 + $0x128] sm:$0xf]
        %v2325 = vld [vmem:[%s1 + $0x12c] sm:$0xf]
        %v2326 = vld [vmem:[%s1 + $0x130] sm:$0xf]
        %v2327 = vld [vmem:[%s1 + $0x134] sm:$0xf]
        %v2328 = vld [vmem:[%s1 + $0x138] sm:$0xf]
        %v2329 = vld [vmem:[%s1 + $0x13c] sm:$0xf]
        %v2330 = vunpack.c.l.b16 %v1911
        %v2331 = vunpack.c.l.b16 %v1921
        %v2332 = vunpack.c.l.b16 %v1935
        %v2333 = vunpack.c.l.b16 %v1945
        %v2334 = vunpack.c.l.b16 %v1959
        %v2335 = vunpack.c.l.b16 %v1969
        %v2336 = vunpack.c.l.b16 %v1983
        %v2337 = vunpack.c.l.b16 %v1993
        %v2338 = vunpack.c.l.b16 %v2007
        %v2339 = vunpack.c.l.b16 %v2017
        %v2340 = vunpack.c.l.b16 %v2031
        %v2341 = vunpack.c.l.b16 %v2041
        %v2342 = vunpack.c.l.b16 %v2055
        %v2343 = vunpack.c.l.b16 %v2065
        %v2344 = vunpack.c.l.b16 %v2079
        %v2345 = vunpack.c.l.b16 %v2089
        %v2346 = vunpack.c.l.b16 %v2103
        %v2347 = vunpack.c.l.b16 %v2113
        %v2348 = vunpack.c.l.b16 %v2127
        %v2349 = vunpack.c.l.b16 %v2137
        %v2350 = vunpack.c.l.b16 %v2151
        %v2351 = vunpack.c.l.b16 %v2161
        %v2352 = vunpack.c.l.b16 %v2175
        %v2353 = vunpack.c.l.b16 %v2185
        %v2354 = vunpack.c.l.b16 %v2199
        %v2355 = vunpack.c.l.b16 %v2209
        %v2356 = vunpack.c.l.b16 %v2223
        %v2357 = vunpack.c.l.b16 %v2233
        %v2358 = vunpack.c.l.b16 %v2247
        %v2359 = vunpack.c.l.b16 %v2257
        %v2360 = vunpack.c.l.b16 %v2271
        %v2361 = vunpack.c.l.b16 %v2281
        %v2362 = vpack.c.b16 %v2331, %v2330
        %v2363 = vpack.c.b16 %v2333, %v2332
        %v2364 = vpack.c.b16 %v2335, %v2334
        %v2365 = vpack.c.b16 %v2337, %v2336
        %v2366 = vpack.c.b16 %v2339, %v2338
        %v2367 = vpack.c.b16 %v2341, %v2340
        %v2368 = vpack.c.b16 %v2343, %v2342
        %v2369 = vpack.c.b16 %v2345, %v2344
        %v2370 = vpack.c.b16 %v2347, %v2346
        %v2371 = vpack.c.b16 %v2349, %v2348
        %v2372 = vpack.c.b16 %v2351, %v2350
        %v2373 = vpack.c.b16 %v2353, %v2352
        %v2374 = vpack.c.b16 %v2355, %v2354
        %v2375 = vpack.c.b16 %v2357, %v2356
        %v2376 = vpack.c.b16 %v2359, %v2358
        %v2377 = vpack.c.b16 %v2361, %v2360
        %v2410 = vunpack.c.l.b16 %v2314
        %v2411 = vunpack.c.l.b16 %v2315
        %v2412 = vunpack.c.l.b16 %v2316
        %v2413 = vunpack.c.l.b16 %v2317
        %v2414 = vunpack.c.l.b16 %v2318
        %v2415 = vunpack.c.l.b16 %v2319
        %v2416 = vunpack.c.l.b16 %v2320
        %v2417 = vunpack.c.l.b16 %v2321
        %v2418 = vunpack.c.l.b16 %v2322
        %v2419 = vunpack.c.l.b16 %v2323
        %v2420 = vunpack.c.l.b16 %v2324
        %v2421 = vunpack.c.l.b16 %v2325
        %v2422 = vunpack.c.l.b16 %v2326
        %v2423 = vunpack.c.l.b16 %v2327
        %v2424 = vunpack.c.l.b16 %v2328
        %v2425 = vunpack.c.l.b16 %v2329
        %v2426 = vpack.c.b16 %v2411, %v2410
        %v2427 = vpack.c.b16 %v2413, %v2412
        %v2428 = vpack.c.b16 %v2415, %v2414
        %v2429 = vpack.c.b16 %v2417, %v2416
        %v2430 = vpack.c.b16 %v2419, %v2418
        %v2431 = vpack.c.b16 %v2421, %v2420
        %v2432 = vpack.c.b16 %v2423, %v2422
        %v2433 = vpack.c.b16 %v2425, %v2424
        %2442 = vmatpush.bf16.msra.mxu0 %v2433
        %2443 = vmatpush.bf16.msra.mxu0 %v2432
        %2444 = vmatpush.bf16.msra.mxu0 %v2431
        %2445 = vmatpush.bf16.msra.mxu0 %v2430
        %2446 = vmatpush.bf16.msra.mxu0 %v2429
        %2447 = vmatpush.bf16.msra.mxu0 %v2428
        %2448 = vmatpush.bf16.msra.mxu0 %v2427
        %2449 = vmatpush.bf16.msra.mxu0 %v2426
        %2450 = vmatmul.bf16.gmra.mxu0 %v2362
        %v2451 = vpop.f32.mrf.mxu0
        %v2452 = vadd.f32 0.0, %v2451
        %v2453 = vpop.f32.mrf.mxu0
        %v2454 = vadd.f32 0.0, %v2453
        %2455 = vmatmul.bf16.gmra.mxu0 %v2363
        %v2456 = vpop.f32.mrf.mxu0
        %v2457 = vadd.f32 0.0, %v2456
        %v2458 = vpop.f32.mrf.mxu0
        %v2459 = vadd.f32 0.0, %v2458
        %2460 = vmatmul.bf16.gmra.mxu0 %v2364
        %v2461 = vpop.f32.mrf.mxu0
        %v2462 = vadd.f32 0.0, %v2461
        %v2463 = vpop.f32.mrf.mxu0
        %v2464 = vadd.f32 0.0, %v2463
        %2465 = vmatmul.bf16.gmra.mxu0 %v2365
        %v2466 = vpop.f32.mrf.mxu0
        %v2467 = vadd.f32 0.0, %v2466
        %v2468 = vpop.f32.mrf.mxu0
        %v2469 = vadd.f32 0.0, %v2468
        %2470 = vmatmul.bf16.gmra.mxu0 %v2366
        %v2471 = vpop.f32.mrf.mxu0
        %v2472 = vadd.f32 0.0, %v2471
        %v2473 = vpop.f32.mrf.mxu0
        %v2474 = vadd.f32 0.0, %v2473
        %2475 = vmatmul.bf16.gmra.mxu0 %v2367
        %v2476 = vpop.f32.mrf.mxu0
        %v2477 = vadd.f32 0.0, %v2476
        %v2478 = vpop.f32.mrf.mxu0
        %v2479 = vadd.f32 0.0, %v2478
        %2480 = vmatmul.bf16.gmra.mxu0 %v2368
        %v2481 = vpop.f32.mrf.mxu0
        %v2482 = vadd.f32 0.0, %v2481
        %v2483 = vpop.f32.mrf.mxu0
        %v2484 = vadd.f32 0.0, %v2483
        %2485 = vmatmul.bf16.gmra.mxu0 %v2369
        %v2486 = vpop.f32.mrf.mxu0
        %v2487 = vadd.f32 0.0, %v2486
        %v2488 = vpop.f32.mrf.mxu0
        %v2489 = vadd.f32 0.0, %v2488
        %2490 = vmatmul.bf16.gmra.mxu0 %v2370
        %v2491 = vpop.f32.mrf.mxu0
        %v2492 = vadd.f32 0.0, %v2491
        %v2493 = vpop.f32.mrf.mxu0
        %v2494 = vadd.f32 0.0, %v2493
        %2495 = vmatmul.bf16.gmra.mxu0 %v2371
        %v2496 = vpop.f32.mrf.mxu0
        %v2497 = vadd.f32 0.0, %v2496
        %v2498 = vpop.f32.mrf.mxu0
        %v2499 = vadd.f32 0.0, %v2498
        %2500 = vmatmul.bf16.gmra.mxu0 %v2372
        %v2501 = vpop.f32.mrf.mxu0
        %v2502 = vadd.f32 0.0, %v2501
        %v2503 = vpop.f32.mrf.mxu0
        %v2504 = vadd.f32 0.0, %v2503
        %2505 = vmatmul.bf16.gmra.mxu0 %v2373
        %v2506 = vpop.f32.mrf.mxu0
        %v2507 = vadd.f32 0.0, %v2506
        %v2508 = vpop.f32.mrf.mxu0
        %v2509 = vadd.f32 0.0, %v2508
        %2510 = vmatmul.bf16.gmra.mxu0 %v2374
        %v2511 = vpop.f32.mrf.mxu0
        %v2512 = vadd.f32 0.0, %v2511
        %v2513 = vpop.f32.mrf.mxu0
        %v2514 = vadd.f32 0.0, %v2513
        %2515 = vmatmul.bf16.gmra.mxu0 %v2375
        %v2516 = vpop.f32.mrf.mxu0
        %v2517 = vadd.f32 0.0, %v2516
        %v2518 = vpop.f32.mrf.mxu0
        %v2519 = vadd.f32 0.0, %v2518
        %2520 = vmatmul.bf16.gmra.mxu0 %v2376
        %v2521 = vpop.f32.mrf.mxu0
        %v2522 = vadd.f32 0.0, %v2521
        %v2523 = vpop.f32.mrf.mxu0
        %v2524 = vadd.f32 0.0, %v2523
        %2525 = vmatmul.bf16.gmra.mxu0 %v2377
        %v2526 = vpop.f32.mrf.mxu0
        %v2527 = vadd.f32 0.0, %v2526
        %v2528 = vpop.f32.mrf.mxu0
        %v2529 = vadd.f32 0.0, %v2528
        %2530 = vdwg.mxu0
        %v2531 = vadd.f32 %v1818, %v2452
        %v2532 = vadd.f32 %v1819, %v2454
        %v2533 = vadd.f32 %v1820, %v2457
        %v2534 = vadd.f32 %v1821, %v2459
        %v2535 = vadd.f32 %v1822, %v2462
        %v2536 = vadd.f32 %v1823, %v2464
        %v2537 = vadd.f32 %v1824, %v2467
        %v2538 = vadd.f32 %v1825, %v2469
        %v2539 = vadd.f32 %v1826, %v2472
        %v2540 = vadd.f32 %v1827, %v2474
        %v2541 = vadd.f32 %v1828, %v2477
        %v2542 = vadd.f32 %v1829, %v2479
        %v2543 = vadd.f32 %v1830, %v2482
        %v2544 = vadd.f32 %v1831, %v2484
        %v2545 = vadd.f32 %v1832, %v2487
        %v2546 = vadd.f32 %v1833, %v2489
        %v2547 = vadd.f32 %v1834, %v2492
        %v2548 = vadd.f32 %v1835, %v2494
        %v2549 = vadd.f32 %v1836, %v2497
        %v2550 = vadd.f32 %v1837, %v2499
        %v2551 = vadd.f32 %v1838, %v2502
        %v2552 = vadd.f32 %v1839, %v2504
        %v2553 = vadd.f32 %v1840, %v2507
        %v2554 = vadd.f32 %v1841, %v2509
        %v2555 = vadd.f32 %v1842, %v2512
        %v2556 = vadd.f32 %v1843, %v2514
        %v2557 = vadd.f32 %v1844, %v2517
        %v2558 = vadd.f32 %v1845, %v2519
        %v2559 = vadd.f32 %v1846, %v2522
        %v2560 = vadd.f32 %v1847, %v2524
        %v2561 = vadd.f32 %v1848, %v2527
        %v2562 = vadd.f32 %v1849, %v2529
        %v2563 = vld [vmem:[%s1536] sm:$0xe]
        %v2564 = vld [vmem:[%s1536 + $0xc] sm:$0xe]
        %v2565 = vld [vmem:[%s1536 + $0x18] sm:$0xe]
        %v2566 = vld [vmem:[%s1536 + $0x24] sm:$0xe]
        %v2567 = vld [vmem:[%s1536 + $0x30] sm:$0xe]
        %v2568 = vld [vmem:[%s1536 + $0x3c] sm:$0xe]
        %v2569 = vld [vmem:[%s1536 + $0x48] sm:$0xe]
        %v2570 = vld [vmem:[%s1536 + $0x54] sm:$0xe]
        %v2571 = vld [vmem:[%s1536 + $0x60] sm:$0xe]
        %v2572 = vld [vmem:[%s1536 + $0x6c] sm:$0xe]
        %v2573 = vld [vmem:[%s1536 + $0x78] sm:$0xe]
        %v2574 = vld [vmem:[%s1536 + $0x84] sm:$0xe]
        %v2575 = vld [vmem:[%s1536 + $0x90] sm:$0xe]
        %v2576 = vld [vmem:[%s1536 + $0x9c] sm:$0xe]
        %v2577 = vld [vmem:[%s1536 + $0xa8] sm:$0xe]
        %v2578 = vld [vmem:[%s1536 + $0xb4] sm:$0xe]
        %v2627 = vrot.slane %v2563, 5
        %v2628 = vrot.slane %v2627, 4
        %v2629 = vrot.slane %v1851, 5
        %v2630 = vsel %vm1174, %v2628, %v2629
        %v2631 = vrot.slane %v2629, 4
        %v2632 = vrot.slane %v1852, 5
        %v2633 = vsel %vm1174, %v2631, %v2632
        %v2634 = vrot.slane %v2564, 5
        %v2635 = vrot.slane %v2634, 4
        %v2636 = vrot.slane %v1854, 5
        %v2637 = vsel %vm1174, %v2635, %v2636
        %v2638 = vrot.slane %v2636, 4
        %v2639 = vrot.slane %v1855, 5
        %v2640 = vsel %vm1174, %v2638, %v2639
        %v2641 = vrot.slane %v2565, 5
        %v2642 = vrot.slane %v2641, 4
        %v2643 = vrot.slane %v1857, 5
        %v2644 = vsel %vm1174, %v2642, %v2643
        %v2645 = vrot.slane %v2643, 4
        %v2646 = vrot.slane %v1858, 5
        %v2647 = vsel %vm1174, %v2645, %v2646
        %v2648 = vrot.slane %v2566, 5
        %v2649 = vrot.slane %v2648, 4
        %v2650 = vrot.slane %v1860, 5
        %v2651 = vsel %vm1174, %v2649, %v2650
        %v2652 = vrot.slane %v2650, 4
        %v2653 = vrot.slane %v1861, 5
        %v2654 = vsel %vm1174, %v2652, %v2653
        %v2655 = vrot.slane %v2567, 5
        %v2656 = vrot.slane %v2655, 4
        %v2657 = vrot.slane %v1863, 5
        %v2658 = vsel %vm1174, %v2656, %v2657
        %v2659 = vrot.slane %v2657, 4
        %v2660 = vrot.slane %v1864, 5
        %v2661 = vsel %vm1174, %v2659, %v2660
        %v2662 = vrot.slane %v2568, 5
        %v2663 = vrot.slane %v2662, 4
        %v2664 = vrot.slane %v1866, 5
        %v2665 = vsel %vm1174, %v2663, %v2664
        %v2666 = vrot.slane %v2664, 4
        %v2667 = vrot.slane %v1867, 5
        %v2668 = vsel %vm1174, %v2666, %v2667
        %v2669 = vrot.slane %v2569, 5
        %v2670 = vrot.slane %v2669, 4
        %v2671 = vrot.slane %v1869, 5
        %v2672 = vsel %vm1174, %v2670, %v2671
        %v2673 = vrot.slane %v2671, 4
        %v2674 = vrot.slane %v1870, 5
        %v2675 = vsel %vm1174, %v2673, %v2674
        %v2676 = vrot.slane %v2570, 5
        %v2677 = vrot.slane %v2676, 4
        %v2678 = vrot.slane %v1872, 5
        %v2679 = vsel %vm1174, %v2677, %v2678
        %v2680 = vrot.slane %v2678, 4
        %v2681 = vrot.slane %v1873, 5
        %v2682 = vsel %vm1174, %v2680, %v2681
        %v2683 = vrot.slane %v2571, 5
        %v2684 = vrot.slane %v2683, 4
        %v2685 = vrot.slane %v1875, 5
        %v2686 = vsel %vm1174, %v2684, %v2685
        %v2687 = vrot.slane %v2685, 4
        %v2688 = vrot.slane %v1876, 5
        %v2689 = vsel %vm1174, %v2687, %v2688
        %v2690 = vrot.slane %v2572, 5
        %v2691 = vrot.slane %v2690, 4
        %v2692 = vrot.slane %v1878, 5
        %v2693 = vsel %vm1174, %v2691, %v2692
        %v2694 = vrot.slane %v2692, 4
        %v2695 = vrot.slane %v1879, 5
        %v2696 = vsel %vm1174, %v2694, %v2695
        %v2697 = vrot.slane %v2573, 5
        %v2698 = vrot.slane %v2697, 4
        %v2699 = vrot.slane %v1881, 5
        %v2700 = vsel %vm1174, %v2698, %v2699
        %v2701 = vrot.slane %v2699, 4
        %v2702 = vrot.slane %v1882, 5
        %v2703 = vsel %vm1174, %v2701, %v2702
        %v2704 = vrot.slane %v2574, 5
        %v2705 = vrot.slane %v2704, 4
        %v2706 = vrot.slane %v1884, 5
        %v2707 = vsel %vm1174, %v2705, %v2706
        %v2708 = vrot.slane %v2706, 4
        %v2709 = vrot.slane %v1885, 5
        %v2710 = vsel %vm1174, %v2708, %v2709
        %v2711 = vrot.slane %v2575, 5
        %v2712 = vrot.slane %v2711, 4
        %v2713 = vrot.slane %v1887, 5
        %v2714 = vsel %vm1174, %v2712, %v2713
        %v2715 = vrot.slane %v2713, 4
        %v2716 = vrot.slane %v1888, 5
        %v2717 = vsel %vm1174, %v2715, %v2716
        %v2718 = vrot.slane %v2576, 5
        %v2719 = vrot.slane %v2718, 4
        %v2720 = vrot.slane %v1890, 5
        %v2721 = vsel %vm1174, %v2719, %v2720
        %v2722 = vrot.slane %v2720, 4
        %v2723 = vrot.slane %v1891, 5
        %v2724 = vsel %vm1174, %v2722, %v2723
        %v2725 = vrot.slane %v2577, 5
        %v2726 = vrot.slane %v2725, 4
        %v2727 = vrot.slane %v1893, 5
        %v2728 = vsel %vm1174, %v2726, %v2727
        %v2729 = vrot.slane %v2727, 4
        %v2730 = vrot.slane %v1894, 5
        %v2731 = vsel %vm1174, %v2729, %v2730
        %v2732 = vrot.slane %v2578, 5
        %v2733 = vrot.slane %v2732, 4
        %v2734 = vrot.slane %v1896, 5
        %v2735 = vsel %vm1174, %v2733, %v2734
        %v2736 = vrot.slane %v2734, 4
        %v2737 = vrot.slane %v1897, 5
        %v2738 = vsel %vm1174, %v2736, %v2737
        %v2739 = vld [vmem:[%s1 + $0x140] sm:$0xf]
        %v2740 = vld [vmem:[%s1 + $0x144] sm:$0xf]
        %v2741 = vld [vmem:[%s1 + $0x148] sm:$0xf]
        %v2742 = vld [vmem:[%s1 + $0x14c] sm:$0xf]
        %v2743 = vld [vmem:[%s1 + $0x150] sm:$0xf]
        %v2744 = vld [vmem:[%s1 + $0x154] sm:$0xf]
        %v2745 = vld [vmem:[%s1 + $0x158] sm:$0xf]
        %v2746 = vld [vmem:[%s1 + $0x15c] sm:$0xf]
        %v2747 = vld [vmem:[%s1 + $0x160] sm:$0xf]
        %v2748 = vld [vmem:[%s1 + $0x164] sm:$0xf]
        %v2749 = vld [vmem:[%s1 + $0x168] sm:$0xf]
        %v2750 = vld [vmem:[%s1 + $0x16c] sm:$0xf]
        %v2751 = vld [vmem:[%s1 + $0x170] sm:$0xf]
        %v2752 = vld [vmem:[%s1 + $0x174] sm:$0xf]
        %v2753 = vld [vmem:[%s1 + $0x178] sm:$0xf]
        %v2754 = vld [vmem:[%s1 + $0x17c] sm:$0xf]
        %v2755 = vunpack.c.l.b16 %v2630
        %v2756 = vunpack.c.l.b16 %v2633
        %v2757 = vunpack.c.l.b16 %v2637
        %v2758 = vunpack.c.l.b16 %v2640
        %v2759 = vunpack.c.l.b16 %v2644
        %v2760 = vunpack.c.l.b16 %v2647
        %v2761 = vunpack.c.l.b16 %v2651
        %v2762 = vunpack.c.l.b16 %v2654
        %v2763 = vunpack.c.l.b16 %v2658
        %v2764 = vunpack.c.l.b16 %v2661
        %v2765 = vunpack.c.l.b16 %v2665
        %v2766 = vunpack.c.l.b16 %v2668
        %v2767 = vunpack.c.l.b16 %v2672
        %v2768 = vunpack.c.l.b16 %v2675
        %v2769 = vunpack.c.l.b16 %v2679
        %v2770 = vunpack.c.l.b16 %v2682
        %v2771 = vunpack.c.l.b16 %v2686
        %v2772 = vunpack.c.l.b16 %v2689
        %v2773 = vunpack.c.l.b16 %v2693
        %v2774 = vunpack.c.l.b16 %v2696
        %v2775 = vunpack.c.l.b16 %v2700
        %v2776 = vunpack.c.l.b16 %v2703
        %v2777 = vunpack.c.l.b16 %v2707
        %v2778 = vunpack.c.l.b16 %v2710
        %v2779 = vunpack.c.l.b16 %v2714
        %v2780 = vunpack.c.l.b16 %v2717
        %v2781 = vunpack.c.l.b16 %v2721
        %v2782 = vunpack.c.l.b16 %v2724
        %v2783 = vunpack.c.l.b16 %v2728
        %v2784 = vunpack.c.l.b16 %v2731
        %v2785 = vunpack.c.l.b16 %v2735
        %v2786 = vunpack.c.l.b16 %v2738
        %v2787 = vpack.c.b16 %v2756, %v2755
        %v2788 = vpack.c.b16 %v2758, %v2757
        %v2789 = vpack.c.b16 %v2760, %v2759
        %v2790 = vpack.c.b16 %v2762, %v2761
        %v2791 = vpack.c.b16 %v2764, %v2763
        %v2792 = vpack.c.b16 %v2766, %v2765
        %v2793 = vpack.c.b16 %v2768, %v2767
        %v2794 = vpack.c.b16 %v2770, %v2769
        %v2795 = vpack.c.b16 %v2772, %v2771
        %v2796 = vpack.c.b16 %v2774, %v2773
        %v2797 = vpack.c.b16 %v2776, %v2775
        %v2798 = vpack.c.b16 %v2778, %v2777
        %v2799 = vpack.c.b16 %v2780, %v2779
        %v2800 = vpack.c.b16 %v2782, %v2781
        %v2801 = vpack.c.b16 %v2784, %v2783
        %v2802 = vpack.c.b16 %v2786, %v2785
        %v2835 = vunpack.c.l.b16 %v2739
        %v2836 = vunpack.c.l.b16 %v2740
        %v2837 = vunpack.c.l.b16 %v2741
        %v2838 = vunpack.c.l.b16 %v2742
        %v2839 = vunpack.c.l.b16 %v2743
        %v2840 = vunpack.c.l.b16 %v2744
        %v2841 = vunpack.c.l.b16 %v2745
        %v2842 = vunpack.c.l.b16 %v2746
        %v2843 = vunpack.c.l.b16 %v2747
        %v2844 = vunpack.c.l.b16 %v2748
        %v2845 = vunpack.c.l.b16 %v2749
        %v2846 = vunpack.c.l.b16 %v2750
        %v2847 = vunpack.c.l.b16 %v2751
        %v2848 = vunpack.c.l.b16 %v2752
        %v2849 = vunpack.c.l.b16 %v2753
        %v2850 = vunpack.c.l.b16 %v2754
        %v2851 = vpack.c.b16 %v2836, %v2835
        %v2852 = vpack.c.b16 %v2838, %v2837
        %v2853 = vpack.c.b16 %v2840, %v2839
        %v2854 = vpack.c.b16 %v2842, %v2841
        %v2855 = vpack.c.b16 %v2844, %v2843
        %v2856 = vpack.c.b16 %v2846, %v2845
        %v2857 = vpack.c.b16 %v2848, %v2847
        %v2858 = vpack.c.b16 %v2850, %v2849
        %2867 = vmatpush.bf16.msra.mxu0 %v2858
        %2868 = vmatpush.bf16.msra.mxu0 %v2857
        %2869 = vmatpush.bf16.msra.mxu0 %v2856
        %2870 = vmatpush.bf16.msra.mxu0 %v2855
        %2871 = vmatpush.bf16.msra.mxu0 %v2854
        %2872 = vmatpush.bf16.msra.mxu0 %v2853
        %2873 = vmatpush.bf16.msra.mxu0 %v2852
        %2874 = vmatpush.bf16.msra.mxu0 %v2851
        %2875 = vmatmul.bf16.gmra.mxu0 %v2787
        %v2876 = vpop.f32.mrf.mxu0
        %v2877 = vadd.f32 0.0, %v2876
        %v2878 = vpop.f32.mrf.mxu0
        %v2879 = vadd.f32 0.0, %v2878
        %2880 = vmatmul.bf16.gmra.mxu0 %v2788
        %v2881 = vpop.f32.mrf.mxu0
        %v2882 = vadd.f32 0.0, %v2881
        %v2883 = vpop.f32.mrf.mxu0
        %v2884 = vadd.f32 0.0, %v2883
        %2885 = vmatmul.bf16.gmra.mxu0 %v2789
        %v2886 = vpop.f32.mrf.mxu0
        %v2887 = vadd.f32 0.0, %v2886
        %v2888 = vpop.f32.mrf.mxu0
        %v2889 = vadd.f32 0.0, %v2888
        %2890 = vmatmul.bf16.gmra.mxu0 %v2790
        %v2891 = vpop.f32.mrf.mxu0
        %v2892 = vadd.f32 0.0, %v2891
        %v2893 = vpop.f32.mrf.mxu0
        %v2894 = vadd.f32 0.0, %v2893
        %2895 = vmatmul.bf16.gmra.mxu0 %v2791
        %v2896 = vpop.f32.mrf.mxu0
        %v2897 = vadd.f32 0.0, %v2896
        %v2898 = vpop.f32.mrf.mxu0
        %v2899 = vadd.f32 0.0, %v2898
        %2900 = vmatmul.bf16.gmra.mxu0 %v2792
        %v2901 = vpop.f32.mrf.mxu0
        %v2902 = vadd.f32 0.0, %v2901
        %v2903 = vpop.f32.mrf.mxu0
        %v2904 = vadd.f32 0.0, %v2903
        %2905 = vmatmul.bf16.gmra.mxu0 %v2793
        %v2906 = vpop.f32.mrf.mxu0
        %v2907 = vadd.f32 0.0, %v2906
        %v2908 = vpop.f32.mrf.mxu0
        %v2909 = vadd.f32 0.0, %v2908
        %2910 = vmatmul.bf16.gmra.mxu0 %v2794
        %v2911 = vpop.f32.mrf.mxu0
        %v2912 = vadd.f32 0.0, %v2911
        %v2913 = vpop.f32.mrf.mxu0
        %v2914 = vadd.f32 0.0, %v2913
        %2915 = vmatmul.bf16.gmra.mxu0 %v2795
        %v2916 = vpop.f32.mrf.mxu0
        %v2917 = vadd.f32 0.0, %v2916
        %v2918 = vpop.f32.mrf.mxu0
        %v2919 = vadd.f32 0.0, %v2918
        %2920 = vmatmul.bf16.gmra.mxu0 %v2796
        %v2921 = vpop.f32.mrf.mxu0
        %v2922 = vadd.f32 0.0, %v2921
        %v2923 = vpop.f32.mrf.mxu0
        %v2924 = vadd.f32 0.0, %v2923
        %2925 = vmatmul.bf16.gmra.mxu0 %v2797
        %v2926 = vpop.f32.mrf.mxu0
        %v2927 = vadd.f32 0.0, %v2926
        %v2928 = vpop.f32.mrf.mxu0
        %v2929 = vadd.f32 0.0, %v2928
        %2930 = vmatmul.bf16.gmra.mxu0 %v2798
        %v2931 = vpop.f32.mrf.mxu0
        %v2932 = vadd.f32 0.0, %v2931
        %v2933 = vpop.f32.mrf.mxu0
        %v2934 = vadd.f32 0.0, %v2933
        %2935 = vmatmul.bf16.gmra.mxu0 %v2799
        %v2936 = vpop.f32.mrf.mxu0
        %v2937 = vadd.f32 0.0, %v2936
        %v2938 = vpop.f32.mrf.mxu0
        %v2939 = vadd.f32 0.0, %v2938
        %2940 = vmatmul.bf16.gmra.mxu0 %v2800
        %v2941 = vpop.f32.mrf.mxu0
        %v2942 = vadd.f32 0.0, %v2941
        %v2943 = vpop.f32.mrf.mxu0
        %v2944 = vadd.f32 0.0, %v2943
        %2945 = vmatmul.bf16.gmra.mxu0 %v2801
        %v2946 = vpop.f32.mrf.mxu0
        %v2947 = vadd.f32 0.0, %v2946
        %v2948 = vpop.f32.mrf.mxu0
        %v2949 = vadd.f32 0.0, %v2948
        %2950 = vmatmul.bf16.gmra.mxu0 %v2802
        %v2951 = vpop.f32.mrf.mxu0
        %v2952 = vadd.f32 0.0, %v2951
        %v2953 = vpop.f32.mrf.mxu0
        %v2954 = vadd.f32 0.0, %v2953
        %2955 = vdwg.mxu0
        %v2956 = vadd.f32 %v2531, %v2877
        %v2957 = vadd.f32 %v2532, %v2879
        %v2958 = vadd.f32 %v2533, %v2882
        %v2959 = vadd.f32 %v2534, %v2884
        %v2960 = vadd.f32 %v2535, %v2887
        %v2961 = vadd.f32 %v2536, %v2889
        %v2962 = vadd.f32 %v2537, %v2892
        %v2963 = vadd.f32 %v2538, %v2894
        %v2964 = vadd.f32 %v2539, %v2897
        %v2965 = vadd.f32 %v2540, %v2899
        %v2966 = vadd.f32 %v2541, %v2902
        %v2967 = vadd.f32 %v2542, %v2904
        %v2968 = vadd.f32 %v2543, %v2907
        %v2969 = vadd.f32 %v2544, %v2909
        %v2970 = vadd.f32 %v2545, %v2912
        %v2971 = vadd.f32 %v2546, %v2914
        %v2972 = vadd.f32 %v2547, %v2917
        %v2973 = vadd.f32 %v2548, %v2919
        %v2974 = vadd.f32 %v2549, %v2922
        %v2975 = vadd.f32 %v2550, %v2924
        %v2976 = vadd.f32 %v2551, %v2927
        %v2977 = vadd.f32 %v2552, %v2929
        %v2978 = vadd.f32 %v2553, %v2932
        %v2979 = vadd.f32 %v2554, %v2934
        %v2980 = vadd.f32 %v2555, %v2937
        %v2981 = vadd.f32 %v2556, %v2939
        %v2982 = vadd.f32 %v2557, %v2942
        %v2983 = vadd.f32 %v2558, %v2944
        %v2984 = vadd.f32 %v2559, %v2947
        %v2985 = vadd.f32 %v2560, %v2949
        %v2986 = vadd.f32 %v2561, %v2952
        %v2987 = vadd.f32 %v2562, %v2954
        %s2988 = scalar_lea.vmem %s222, 24
        %v2989 = vld [vmem:[%s2988] sm:$0xf]
        %v2990 = vld [vmem:[%s2988 + $0x4] sm:$0xf]
        %v2991 = vld [vmem:[%s2988 + $0xc] sm:$0xf]
        %v2992 = vld [vmem:[%s2988 + $0x10] sm:$0xf]
        %v2993 = vld [vmem:[%s2988 + $0x18] sm:$0xf]
        %v2994 = vld [vmem:[%s2988 + $0x1c] sm:$0xf]
        %v2995 = vld [vmem:[%s2988 + $0x24] sm:$0xf]
        %v2996 = vld [vmem:[%s2988 + $0x28] sm:$0xf]
        %v2997 = vld [vmem:[%s2988 + $0x30] sm:$0xf]
        %v2998 = vld [vmem:[%s2988 + $0x34] sm:$0xf]
        %v2999 = vld [vmem:[%s2988 + $0x3c] sm:$0xf]
        %v3000 = vld [vmem:[%s2988 + $0x40] sm:$0xf]
        %v3001 = vld [vmem:[%s2988 + $0x48] sm:$0xf]
        %v3002 = vld [vmem:[%s2988 + $0x4c] sm:$0xf]
        %v3003 = vld [vmem:[%s2988 + $0x54] sm:$0xf]
        %v3004 = vld [vmem:[%s2988 + $0x58] sm:$0xf]
        %v3005 = vld [vmem:[%s2988 + $0x60] sm:$0xf]
        %v3006 = vld [vmem:[%s2988 + $0x64] sm:$0xf]
        %v3007 = vld [vmem:[%s2988 + $0x6c] sm:$0xf]
        %v3008 = vld [vmem:[%s2988 + $0x70] sm:$0xf]
        %v3009 = vld [vmem:[%s2988 + $0x78] sm:$0xf]
        %v3010 = vld [vmem:[%s2988 + $0x7c] sm:$0xf]
        %v3011 = vld [vmem:[%s2988 + $0x84] sm:$0xf]
        %v3012 = vld [vmem:[%s2988 + $0x88] sm:$0xf]
        %v3013 = vld [vmem:[%s2988 + $0x90] sm:$0xf]
        %v3014 = vld [vmem:[%s2988 + $0x94] sm:$0xf]
        %v3015 = vld [vmem:[%s2988 + $0x9c] sm:$0xf]
        %v3016 = vld [vmem:[%s2988 + $0xa0] sm:$0xf]
        %v3017 = vld [vmem:[%s2988 + $0xa8] sm:$0xf]
        %v3018 = vld [vmem:[%s2988 + $0xac] sm:$0xf]
        %v3019 = vld [vmem:[%s2988 + $0xb4] sm:$0xf]
        %v3020 = vld [vmem:[%s2988 + $0xb8] sm:$0xf]
        %v3021 = vld [vmem:[%s1 + $0x180] sm:$0xf]
        %v3022 = vld [vmem:[%s1 + $0x184] sm:$0xf]
        %v3023 = vld [vmem:[%s1 + $0x188] sm:$0xf]
        %v3024 = vld [vmem:[%s1 + $0x18c] sm:$0xf]
        %v3025 = vld [vmem:[%s1 + $0x190] sm:$0xf]
        %v3026 = vld [vmem:[%s1 + $0x194] sm:$0xf]
        %v3027 = vld [vmem:[%s1 + $0x198] sm:$0xf]
        %v3028 = vld [vmem:[%s1 + $0x19c] sm:$0xf]
        %v3029 = vld [vmem:[%s1 + $0x1a0] sm:$0xf]
        %v3030 = vld [vmem:[%s1 + $0x1a4] sm:$0xf]
        %v3031 = vld [vmem:[%s1 + $0x1a8] sm:$0xf]
        %v3032 = vld [vmem:[%s1 + $0x1ac] sm:$0xf]
        %v3033 = vld [vmem:[%s1 + $0x1b0] sm:$0xf]
        %v3034 = vld [vmem:[%s1 + $0x1b4] sm:$0xf]
        %v3035 = vld [vmem:[%s1 + $0x1b8] sm:$0xf]
        %v3036 = vld [vmem:[%s1 + $0x1bc] sm:$0xf]
        %v3069 = vunpack.c.l.b16 %v2989
        %v3070 = vunpack.c.l.b16 %v2990
        %v3071 = vunpack.c.l.b16 %v2991
        %v3072 = vunpack.c.l.b16 %v2992
        %v3073 = vunpack.c.l.b16 %v2993
        %v3074 = vunpack.c.l.b16 %v2994
        %v3075 = vunpack.c.l.b16 %v2995
        %v3076 = vunpack.c.l.b16 %v2996
        %v3077 = vunpack.c.l.b16 %v2997
        %v3078 = vunpack.c.l.b16 %v2998
        %v3079 = vunpack.c.l.b16 %v2999
        %v3080 = vunpack.c.l.b16 %v3000
        %v3081 = vunpack.c.l.b16 %v3001
        %v3082 = vunpack.c.l.b16 %v3002
        %v3083 = vunpack.c.l.b16 %v3003
        %v3084 = vunpack.c.l.b16 %v3004
        %v3085 = vunpack.c.l.b16 %v3005
        %v3086 = vunpack.c.l.b16 %v3006
        %v3087 = vunpack.c.l.b16 %v3007
        %v3088 = vunpack.c.l.b16 %v3008
        %v3089 = vunpack.c.l.b16 %v3009
        %v3090 = vunpack.c.l.b16 %v3010
        %v3091 = vunpack.c.l.b16 %v3011
        %v3092 = vunpack.c.l.b16 %v3012
        %v3093 = vunpack.c.l.b16 %v3013
        %v3094 = vunpack.c.l.b16 %v3014
        %v3095 = vunpack.c.l.b16 %v3015
        %v3096 = vunpack.c.l.b16 %v3016
        %v3097 = vunpack.c.l.b16 %v3017
        %v3098 = vunpack.c.l.b16 %v3018
        %v3099 = vunpack.c.l.b16 %v3019
        %v3100 = vunpack.c.l.b16 %v3020
        %v3101 = vpack.c.b16 %v3070, %v3069
        %v3102 = vpack.c.b16 %v3072, %v3071
        %v3103 = vpack.c.b16 %v3074, %v3073
        %v3104 = vpack.c.b16 %v3076, %v3075
        %v3105 = vpack.c.b16 %v3078, %v3077
        %v3106 = vpack.c.b16 %v3080, %v3079
        %v3107 = vpack.c.b16 %v3082, %v3081
        %v3108 = vpack.c.b16 %v3084, %v3083
        %v3109 = vpack.c.b16 %v3086, %v3085
        %v3110 = vpack.c.b16 %v3088, %v3087
        %v3111 = vpack.c.b16 %v3090, %v3089
        %v3112 = vpack.c.b16 %v3092, %v3091
        %v3113 = vpack.c.b16 %v3094, %v3093
        %v3114 = vpack.c.b16 %v3096, %v3095
        %v3115 = vpack.c.b16 %v3098, %v3097
        %v3116 = vpack.c.b16 %v3100, %v3099
        %v3149 = vunpack.c.l.b16 %v3021
        %v3150 = vunpack.c.l.b16 %v3022
        %v3151 = vunpack.c.l.b16 %v3023
        %v3152 = vunpack.c.l.b16 %v3024
        %v3153 = vunpack.c.l.b16 %v3025
        %v3154 = vunpack.c.l.b16 %v3026
        %v3155 = vunpack.c.l.b16 %v3027
        %v3156 = vunpack.c.l.b16 %v3028
        %v3157 = vunpack.c.l.b16 %v3029
        %v3158 = vunpack.c.l.b16 %v3030
        %v3159 = vunpack.c.l.b16 %v3031
        %v3160 = vunpack.c.l.b16 %v3032
        %v3161 = vunpack.c.l.b16 %v3033
        %v3162 = vunpack.c.l.b16 %v3034
        %v3163 = vunpack.c.l.b16 %v3035
        %v3164 = vunpack.c.l.b16 %v3036
        %v3165 = vpack.c.b16 %v3150, %v3149
        %v3166 = vpack.c.b16 %v3152, %v3151
        %v3167 = vpack.c.b16 %v3154, %v3153
        %v3168 = vpack.c.b16 %v3156, %v3155
        %v3169 = vpack.c.b16 %v3158, %v3157
        %v3170 = vpack.c.b16 %v3160, %v3159
        %v3171 = vpack.c.b16 %v3162, %v3161
        %v3172 = vpack.c.b16 %v3164, %v3163
        %3181 = vmatpush.bf16.msra.mxu0 %v3172
        %3182 = vmatpush.bf16.msra.mxu0 %v3171
        %3183 = vmatpush.bf16.msra.mxu0 %v3170
        %3184 = vmatpush.bf16.msra.mxu0 %v3169
        %3185 = vmatpush.bf16.msra.mxu0 %v3168
        %3186 = vmatpush.bf16.msra.mxu0 %v3167
        %3187 = vmatpush.bf16.msra.mxu0 %v3166
        %3188 = vmatpush.bf16.msra.mxu0 %v3165
        %3189 = vmatmul.bf16.gmra.mxu0 %v3101
        %v3190 = vpop.f32.mrf.mxu0
        %v3191 = vadd.f32 0.0, %v3190
        %v3192 = vpop.f32.mrf.mxu0
        %v3193 = vadd.f32 0.0, %v3192
        %3194 = vmatmul.bf16.gmra.mxu0 %v3102
        %v3195 = vpop.f32.mrf.mxu0
        %v3196 = vadd.f32 0.0, %v3195
        %v3197 = vpop.f32.mrf.mxu0
        %v3198 = vadd.f32 0.0, %v3197
        %3199 = vmatmul.bf16.gmra.mxu0 %v3103
        %v3200 = vpop.f32.mrf.mxu0
        %v3201 = vadd.f32 0.0, %v3200
        %v3202 = vpop.f32.mrf.mxu0
        %v3203 = vadd.f32 0.0, %v3202
        %3204 = vmatmul.bf16.gmra.mxu0 %v3104
        %v3205 = vpop.f32.mrf.mxu0
        %v3206 = vadd.f32 0.0, %v3205
        %v3207 = vpop.f32.mrf.mxu0
        %v3208 = vadd.f32 0.0, %v3207
        %3209 = vmatmul.bf16.gmra.mxu0 %v3105
        %v3210 = vpop.f32.mrf.mxu0
        %v3211 = vadd.f32 0.0, %v3210
        %v3212 = vpop.f32.mrf.mxu0
        %v3213 = vadd.f32 0.0, %v3212
        %3214 = vmatmul.bf16.gmra.mxu0 %v3106
        %v3215 = vpop.f32.mrf.mxu0
        %v3216 = vadd.f32 0.0, %v3215
        %v3217 = vpop.f32.mrf.mxu0
        %v3218 = vadd.f32 0.0, %v3217
        %3219 = vmatmul.bf16.gmra.mxu0 %v3107
        %v3220 = vpop.f32.mrf.mxu0
        %v3221 = vadd.f32 0.0, %v3220
        %v3222 = vpop.f32.mrf.mxu0
        %v3223 = vadd.f32 0.0, %v3222
        %3224 = vmatmul.bf16.gmra.mxu0 %v3108
        %v3225 = vpop.f32.mrf.mxu0
        %v3226 = vadd.f32 0.0, %v3225
        %v3227 = vpop.f32.mrf.mxu0
        %v3228 = vadd.f32 0.0, %v3227
        %3229 = vmatmul.bf16.gmra.mxu0 %v3109
        %v3230 = vpop.f32.mrf.mxu0
        %v3231 = vadd.f32 0.0, %v3230
        %v3232 = vpop.f32.mrf.mxu0
        %v3233 = vadd.f32 0.0, %v3232
        %3234 = vmatmul.bf16.gmra.mxu0 %v3110
        %v3235 = vpop.f32.mrf.mxu0
        %v3236 = vadd.f32 0.0, %v3235
        %v3237 = vpop.f32.mrf.mxu0
        %v3238 = vadd.f32 0.0, %v3237
        %3239 = vmatmul.bf16.gmra.mxu0 %v3111
        %v3240 = vpop.f32.mrf.mxu0
        %v3241 = vadd.f32 0.0, %v3240
        %v3242 = vpop.f32.mrf.mxu0
        %v3243 = vadd.f32 0.0, %v3242
        %3244 = vmatmul.bf16.gmra.mxu0 %v3112
        %v3245 = vpop.f32.mrf.mxu0
        %v3246 = vadd.f32 0.0, %v3245
        %v3247 = vpop.f32.mrf.mxu0
        %v3248 = vadd.f32 0.0, %v3247
        %3249 = vmatmul.bf16.gmra.mxu0 %v3113
        %v3250 = vpop.f32.mrf.mxu0
        %v3251 = vadd.f32 0.0, %v3250
        %v3252 = vpop.f32.mrf.mxu0
        %v3253 = vadd.f32 0.0, %v3252
        %3254 = vmatmul.bf16.gmra.mxu0 %v3114
        %v3255 = vpop.f32.mrf.mxu0
        %v3256 = vadd.f32 0.0, %v3255
        %v3257 = vpop.f32.mrf.mxu0
        %v3258 = vadd.f32 0.0, %v3257
        %3259 = vmatmul.bf16.gmra.mxu0 %v3115
        %v3260 = vpop.f32.mrf.mxu0
        %v3261 = vadd.f32 0.0, %v3260
        %v3262 = vpop.f32.mrf.mxu0
        %v3263 = vadd.f32 0.0, %v3262
        %3264 = vmatmul.bf16.gmra.mxu0 %v3116
        %v3265 = vpop.f32.mrf.mxu0
        %v3266 = vadd.f32 0.0, %v3265
        %v3267 = vpop.f32.mrf.mxu0
        %v3268 = vadd.f32 0.0, %v3267
        %3269 = vdwg.mxu0
        %v3270 = vadd.f32 %v2956, %v3191
        %v3271 = vadd.f32 %v2957, %v3193
        %v3272 = vadd.f32 %v2958, %v3196
        %v3273 = vadd.f32 %v2959, %v3198
        %v3274 = vadd.f32 %v2960, %v3201
        %v3275 = vadd.f32 %v2961, %v3203
        %v3276 = vadd.f32 %v2962, %v3206
        %v3277 = vadd.f32 %v2963, %v3208
        %v3278 = vadd.f32 %v2964, %v3211
        %v3279 = vadd.f32 %v2965, %v3213
        %v3280 = vadd.f32 %v2966, %v3216
        %v3281 = vadd.f32 %v2967, %v3218
        %v3282 = vadd.f32 %v2968, %v3221
        %v3283 = vadd.f32 %v2969, %v3223
        %v3284 = vadd.f32 %v2970, %v3226
        %v3285 = vadd.f32 %v2971, %v3228
        %v3286 = vadd.f32 %v2972, %v3231
        %v3287 = vadd.f32 %v2973, %v3233
        %v3288 = vadd.f32 %v2974, %v3236
        %v3289 = vadd.f32 %v2975, %v3238
        %v3290 = vadd.f32 %v2976, %v3241
        %v3291 = vadd.f32 %v2977, %v3243
        %v3292 = vadd.f32 %v2978, %v3246
        %v3293 = vadd.f32 %v2979, %v3248
        %v3294 = vadd.f32 %v2980, %v3251
        %v3295 = vadd.f32 %v2981, %v3253
        %v3296 = vadd.f32 %v2982, %v3256
        %v3297 = vadd.f32 %v2983, %v3258
        %v3298 = vadd.f32 %v2984, %v3261
        %v3299 = vadd.f32 %v2985, %v3263
        %v3300 = vadd.f32 %v2986, %v3266
        %v3301 = vadd.f32 %v2987, %v3268
        %v3302 = vld [vmem:[%s2988] sm:$0xf]
        %v3303 = vld [vmem:[%s2988 + $0x4] sm:$0xf]
        %v3304 = vld [vmem:[%s2988 + $0x8] sm:$0x1]
        %v3305 = vld [vmem:[%s2988 + $0xc] sm:$0xf]
        %v3306 = vld [vmem:[%s2988 + $0x10] sm:$0xf]
        %v3307 = vld [vmem:[%s2988 + $0x14] sm:$0x1]
        %v3308 = vld [vmem:[%s2988 + $0x18] sm:$0xf]
        %v3309 = vld [vmem:[%s2988 + $0x1c] sm:$0xf]
        %v3310 = vld [vmem:[%s2988 + $0x20] sm:$0x1]
        %v3311 = vld [vmem:[%s2988 + $0x24] sm:$0xf]
        %v3312 = vld [vmem:[%s2988 + $0x28] sm:$0xf]
        %v3313 = vld [vmem:[%s2988 + $0x2c] sm:$0x1]
        %v3314 = vld [vmem:[%s2988 + $0x30] sm:$0xf]
        %v3315 = vld [vmem:[%s2988 + $0x34] sm:$0xf]
        %v3316 = vld [vmem:[%s2988 + $0x38] sm:$0x1]
        %v3317 = vld [vmem:[%s2988 + $0x3c] sm:$0xf]
        %v3318 = vld [vmem:[%s2988 + $0x40] sm:$0xf]
        %v3319 = vld [vmem:[%s2988 + $0x44] sm:$0x1]
        %v3320 = vld [vmem:[%s2988 + $0x48] sm:$0xf]
        %v3321 = vld [vmem:[%s2988 + $0x4c] sm:$0xf]
        %v3322 = vld [vmem:[%s2988 + $0x50] sm:$0x1]
        %v3323 = vld [vmem:[%s2988 + $0x54] sm:$0xf]
        %v3324 = vld [vmem:[%s2988 + $0x58] sm:$0xf]
        %v3325 = vld [vmem:[%s2988 + $0x5c] sm:$0x1]
        %v3326 = vld [vmem:[%s2988 + $0x60] sm:$0xf]
        %v3327 = vld [vmem:[%s2988 + $0x64] sm:$0xf]
        %v3328 = vld [vmem:[%s2988 + $0x68] sm:$0x1]
        %v3329 = vld [vmem:[%s2988 + $0x6c] sm:$0xf]
        %v3330 = vld [vmem:[%s2988 + $0x70] sm:$0xf]
        %v3331 = vld [vmem:[%s2988 + $0x74] sm:$0x1]
        %v3332 = vld [vmem:[%s2988 + $0x78] sm:$0xf]
        %v3333 = vld [vmem:[%s2988 + $0x7c] sm:$0xf]
        %v3334 = vld [vmem:[%s2988 + $0x80] sm:$0x1]
        %v3335 = vld [vmem:[%s2988 + $0x84] sm:$0xf]
        %v3336 = vld [vmem:[%s2988 + $0x88] sm:$0xf]
        %v3337 = vld [vmem:[%s2988 + $0x8c] sm:$0x1]
        %v3338 = vld [vmem:[%s2988 + $0x90] sm:$0xf]
        %v3339 = vld [vmem:[%s2988 + $0x94] sm:$0xf]
        %v3340 = vld [vmem:[%s2988 + $0x98] sm:$0x1]
        %v3341 = vld [vmem:[%s2988 + $0x9c] sm:$0xf]
        %v3342 = vld [vmem:[%s2988 + $0xa0] sm:$0xf]
        %v3343 = vld [vmem:[%s2988 + $0xa4] sm:$0x1]
        %v3344 = vld [vmem:[%s2988 + $0xa8] sm:$0xf]
        %v3345 = vld [vmem:[%s2988 + $0xac] sm:$0xf]
        %v3346 = vld [vmem:[%s2988 + $0xb0] sm:$0x1]
        %v3347 = vld [vmem:[%s2988 + $0xb4] sm:$0xf]
        %v3348 = vld [vmem:[%s2988 + $0xb8] sm:$0xf]
        %v3349 = vld [vmem:[%s2988 + $0xbc] sm:$0x1]
        %v3351 = vshrl.u32 %v3302, 16
        %v3353 = vrot.slane %v3351, 4
        %v3354 = vshll.u32 %v3302, 16
        %v3356 = vrot.slane %v3354, 5
        %v3357 = vor.u32 %v3353, %v3356
        %v3358 = vrot.slane %v3357, 4
        %v3360 = vshll.u32 %v3303, 16
        %v3362 = vrot.slane %v3360, 5
        %v3363 = vsel %vm289, %v3358, %v3362
        %v3364 = vshrl.u32 %v3303, 16
        %v3366 = vrot.slane %v3364, 4
        %v3367 = vor.u32 %v3366, %v3362
        %v3368 = vrot.slane %v3367, 4
        %v3370 = vshll.u32 %v3304, 16
        %v3372 = vrot.slane %v3370, 5
        %v3373 = vsel %vm289, %v3368, %v3372
        %v3375 = vshrl.u32 %v3305, 16
        %v3377 = vrot.slane %v3375, 4
        %v3378 = vshll.u32 %v3305, 16
        %v3380 = vrot.slane %v3378, 5
        %v3381 = vor.u32 %v3377, %v3380
        %v3382 = vrot.slane %v3381, 4
        %v3384 = vshll.u32 %v3306, 16
        %v3386 = vrot.slane %v3384, 5
        %v3387 = vsel %vm289, %v3382, %v3386
        %v3388 = vshrl.u32 %v3306, 16
        %v3390 = vrot.slane %v3388, 4
        %v3391 = vor.u32 %v3390, %v3386
        %v3392 = vrot.slane %v3391, 4
        %v3394 = vshll.u32 %v3307, 16
        %v3396 = vrot.slane %v3394, 5
        %v3397 = vsel %vm289, %v3392, %v3396
        %v3399 = vshrl.u32 %v3308, 16
        %v3401 = vrot.slane %v3399, 4
        %v3402 = vshll.u32 %v3308, 16
        %v3404 = vrot.slane %v3402, 5
        %v3405 = vor.u32 %v3401, %v3404
        %v3406 = vrot.slane %v3405, 4
        %v3408 = vshll.u32 %v3309, 16
        %v3410 = vrot.slane %v3408, 5
        %v3411 = vsel %vm289, %v3406, %v3410
        %v3412 = vshrl.u32 %v3309, 16
        %v3414 = vrot.slane %v3412, 4
        %v3415 = vor.u32 %v3414, %v3410
        %v3416 = vrot.slane %v3415, 4
        %v3418 = vshll.u32 %v3310, 16
        %v3420 = vrot.slane %v3418, 5
        %v3421 = vsel %vm289, %v3416, %v3420
        %v3423 = vshrl.u32 %v3311, 16
        %v3425 = vrot.slane %v3423, 4
        %v3426 = vshll.u32 %v3311, 16
        %v3428 = vrot.slane %v3426, 5
        %v3429 = vor.u32 %v3425, %v3428
        %v3430 = vrot.slane %v3429, 4
        %v3432 = vshll.u32 %v3312, 16
        %v3434 = vrot.slane %v3432, 5
        %v3435 = vsel %vm289, %v3430, %v3434
        %v3436 = vshrl.u32 %v3312, 16
        %v3438 = vrot.slane %v3436, 4
        %v3439 = vor.u32 %v3438, %v3434
        %v3440 = vrot.slane %v3439, 4
        %v3442 = vshll.u32 %v3313, 16
        %v3444 = vrot.slane %v3442, 5
        %v3445 = vsel %vm289, %v3440, %v3444
        %v3447 = vshrl.u32 %v3314, 16
        %v3449 = vrot.slane %v3447, 4
        %v3450 = vshll.u32 %v3314, 16
        %v3452 = vrot.slane %v3450, 5
        %v3453 = vor.u32 %v3449, %v3452
        %v3454 = vrot.slane %v3453, 4
        %v3456 = vshll.u32 %v3315, 16
        %v3458 = vrot.slane %v3456, 5
        %v3459 = vsel %vm289, %v3454, %v3458
        %v3460 = vshrl.u32 %v3315, 16
        %v3462 = vrot.slane %v3460, 4
        %v3463 = vor.u32 %v3462, %v3458
        %v3464 = vrot.slane %v3463, 4
        %v3466 = vshll.u32 %v3316, 16
        %v3468 = vrot.slane %v3466, 5
        %v3469 = vsel %vm289, %v3464, %v3468
        %v3471 = vshrl.u32 %v3317, 16
        %v3473 = vrot.slane %v3471, 4
        %v3474 = vshll.u32 %v3317, 16
        %v3476 = vrot.slane %v3474, 5
        %v3477 = vor.u32 %v3473, %v3476
        %v3478 = vrot.slane %v3477, 4
        %v3480 = vshll.u32 %v3318, 16
        %v3482 = vrot.slane %v3480, 5
        %v3483 = vsel %vm289, %v3478, %v3482
        %v3484 = vshrl.u32 %v3318, 16
        %v3486 = vrot.slane %v3484, 4
        %v3487 = vor.u32 %v3486, %v3482
        %v3488 = vrot.slane %v3487, 4
        %v3490 = vshll.u32 %v3319, 16
        %v3492 = vrot.slane %v3490, 5
        %v3493 = vsel %vm289, %v3488, %v3492
        %v3495 = vshrl.u32 %v3320, 16
        %v3497 = vrot.slane %v3495, 4
        %v3498 = vshll.u32 %v3320, 16
        %v3500 = vrot.slane %v3498, 5
        %v3501 = vor.u32 %v3497, %v3500
        %v3502 = vrot.slane %v3501, 4
        %v3504 = vshll.u32 %v3321, 16
        %v3506 = vrot.slane %v3504, 5
        %v3507 = vsel %vm289, %v3502, %v3506
        %v3508 = vshrl.u32 %v3321, 16
        %v3510 = vrot.slane %v3508, 4
        %v3511 = vor.u32 %v3510, %v3506
        %v3512 = vrot.slane %v3511, 4
        %v3514 = vshll.u32 %v3322, 16
        %v3516 = vrot.slane %v3514, 5
        %v3517 = vsel %vm289, %v3512, %v3516
        %v3519 = vshrl.u32 %v3323, 16
        %v3521 = vrot.slane %v3519, 4
        %v3522 = vshll.u32 %v3323, 16
        %v3524 = vrot.slane %v3522, 5
        %v3525 = vor.u32 %v3521, %v3524
        %v3526 = vrot.slane %v3525, 4
        %v3528 = vshll.u32 %v3324, 16
        %v3530 = vrot.slane %v3528, 5
        %v3531 = vsel %vm289, %v3526, %v3530
        %v3532 = vshrl.u32 %v3324, 16
        %v3534 = vrot.slane %v3532, 4
        %v3535 = vor.u32 %v3534, %v3530
        %v3536 = vrot.slane %v3535, 4
        %v3538 = vshll.u32 %v3325, 16
        %v3540 = vrot.slane %v3538, 5
        %v3541 = vsel %vm289, %v3536, %v3540
        %v3543 = vshrl.u32 %v3326, 16
        %v3545 = vrot.slane %v3543, 4
        %v3546 = vshll.u32 %v3326, 16
        %v3548 = vrot.slane %v3546, 5
        %v3549 = vor.u32 %v3545, %v3548
        %v3550 = vrot.slane %v3549, 4
        %v3552 = vshll.u32 %v3327, 16
        %v3554 = vrot.slane %v3552, 5
        %v3555 = vsel %vm289, %v3550, %v3554
        %v3556 = vshrl.u32 %v3327, 16
        %v3558 = vrot.slane %v3556, 4
        %v3559 = vor.u32 %v3558, %v3554
        %v3560 = vrot.slane %v3559, 4
        %v3562 = vshll.u32 %v3328, 16
        %v3564 = vrot.slane %v3562, 5
        %v3565 = vsel %vm289, %v3560, %v3564
        %v3567 = vshrl.u32 %v3329, 16
        %v3569 = vrot.slane %v3567, 4
        %v3570 = vshll.u32 %v3329, 16
        %v3572 = vrot.slane %v3570, 5
        %v3573 = vor.u32 %v3569, %v3572
        %v3574 = vrot.slane %v3573, 4
        %v3576 = vshll.u32 %v3330, 16
        %v3578 = vrot.slane %v3576, 5
        %v3579 = vsel %vm289, %v3574, %v3578
        %v3580 = vshrl.u32 %v3330, 16
        %v3582 = vrot.slane %v3580, 4
        %v3583 = vor.u32 %v3582, %v3578
        %v3584 = vrot.slane %v3583, 4
        %v3586 = vshll.u32 %v3331, 16
        %v3588 = vrot.slane %v3586, 5
        %v3589 = vsel %vm289, %v3584, %v3588
        %v3591 = vshrl.u32 %v3332, 16
        %v3593 = vrot.slane %v3591, 4
        %v3594 = vshll.u32 %v3332, 16
        %v3596 = vrot.slane %v3594, 5
        %v3597 = vor.u32 %v3593, %v3596
        %v3598 = vrot.slane %v3597, 4
        %v3600 = vshll.u32 %v3333, 16
        %v3602 = vrot.slane %v3600, 5
        %v3603 = vsel %vm289, %v3598, %v3602
        %v3604 = vshrl.u32 %v3333, 16
        %v3606 = vrot.slane %v3604, 4
        %v3607 = vor.u32 %v3606, %v3602
        %v3608 = vrot.slane %v3607, 4
        %v3610 = vshll.u32 %v3334, 16
        %v3612 = vrot.slane %v3610, 5
        %v3613 = vsel %vm289, %v3608, %v3612
        %v3615 = vshrl.u32 %v3335, 16
        %v3617 = vrot.slane %v3615, 4
        %v3618 = vshll.u32 %v3335, 16
        %v3620 = vrot.slane %v3618, 5
        %v3621 = vor.u32 %v3617, %v3620
        %v3622 = vrot.slane %v3621, 4
        %v3624 = vshll.u32 %v3336, 16
        %v3626 = vrot.slane %v3624, 5
        %v3627 = vsel %vm289, %v3622, %v3626
        %v3628 = vshrl.u32 %v3336, 16
        %v3630 = vrot.slane %v3628, 4
        %v3631 = vor.u32 %v3630, %v3626
        %v3632 = vrot.slane %v3631, 4
        %v3634 = vshll.u32 %v3337, 16
        %v3636 = vrot.slane %v3634, 5
        %v3637 = vsel %vm289, %v3632, %v3636
        %v3639 = vshrl.u32 %v3338, 16
        %v3641 = vrot.slane %v3639, 4
        %v3642 = vshll.u32 %v3338, 16
        %v3644 = vrot.slane %v3642, 5
        %v3645 = vor.u32 %v3641, %v3644
        %v3646 = vrot.slane %v3645, 4
        %v3648 = vshll.u32 %v3339, 16
        %v3650 = vrot.slane %v3648, 5
        %v3651 = vsel %vm289, %v3646, %v3650
        %v3652 = vshrl.u32 %v3339, 16
        %v3654 = vrot.slane %v3652, 4
        %v3655 = vor.u32 %v3654, %v3650
        %v3656 = vrot.slane %v3655, 4
        %v3658 = vshll.u32 %v3340, 16
        %v3660 = vrot.slane %v3658, 5
        %v3661 = vsel %vm289, %v3656, %v3660
        %v3663 = vshrl.u32 %v3341, 16
        %v3665 = vrot.slane %v3663, 4
        %v3666 = vshll.u32 %v3341, 16
        %v3668 = vrot.slane %v3666, 5
        %v3669 = vor.u32 %v3665, %v3668
        %v3670 = vrot.slane %v3669, 4
        %v3672 = vshll.u32 %v3342, 16
        %v3674 = vrot.slane %v3672, 5
        %v3675 = vsel %vm289, %v3670, %v3674
        %v3676 = vshrl.u32 %v3342, 16
        %v3678 = vrot.slane %v3676, 4
        %v3679 = vor.u32 %v3678, %v3674
        %v3680 = vrot.slane %v3679, 4
        %v3682 = vshll.u32 %v3343, 16
        %v3684 = vrot.slane %v3682, 5
        %v3685 = vsel %vm289, %v3680, %v3684
        %v3687 = vshrl.u32 %v3344, 16
        %v3689 = vrot.slane %v3687, 4
        %v3690 = vshll.u32 %v3344, 16
        %v3692 = vrot.slane %v3690, 5
        %v3693 = vor.u32 %v3689, %v3692
        %v3694 = vrot.slane %v3693, 4
        %v3696 = vshll.u32 %v3345, 16
        %v3698 = vrot.slane %v3696, 5
        %v3699 = vsel %vm289, %v3694, %v3698
        %v3700 = vshrl.u32 %v3345, 16
        %v3702 = vrot.slane %v3700, 4
        %v3703 = vor.u32 %v3702, %v3698
        %v3704 = vrot.slane %v3703, 4
        %v3706 = vshll.u32 %v3346, 16
        %v3708 = vrot.slane %v3706, 5
        %v3709 = vsel %vm289, %v3704, %v3708
        %v3711 = vshrl.u32 %v3347, 16
        %v3713 = vrot.slane %v3711, 4
        %v3714 = vshll.u32 %v3347, 16
        %v3716 = vrot.slane %v3714, 5
        %v3717 = vor.u32 %v3713, %v3716
        %v3718 = vrot.slane %v3717, 4
        %v3720 = vshll.u32 %v3348, 16
        %v3722 = vrot.slane %v3720, 5
        %v3723 = vsel %vm289, %v3718, %v3722
        %v3724 = vshrl.u32 %v3348, 16
        %v3726 = vrot.slane %v3724, 4
        %v3727 = vor.u32 %v3726, %v3722
        %v3728 = vrot.slane %v3727, 4
        %v3730 = vshll.u32 %v3349, 16
        %v3732 = vrot.slane %v3730, 5
        %v3733 = vsel %vm289, %v3728, %v3732
        %v3734 = vld [vmem:[%s1 + $0x1c0] sm:$0xf]
        %v3735 = vld [vmem:[%s1 + $0x1c4] sm:$0xf]
        %v3736 = vld [vmem:[%s1 + $0x1c8] sm:$0xf]
        %v3737 = vld [vmem:[%s1 + $0x1cc] sm:$0xf]
        %v3738 = vld [vmem:[%s1 + $0x1d0] sm:$0xf]
        %v3739 = vld [vmem:[%s1 + $0x1d4] sm:$0xf]
        %v3740 = vld [vmem:[%s1 + $0x1d8] sm:$0xf]
        %v3741 = vld [vmem:[%s1 + $0x1dc] sm:$0xf]
        %v3742 = vld [vmem:[%s1 + $0x1e0] sm:$0xf]
        %v3743 = vld [vmem:[%s1 + $0x1e4] sm:$0xf]
        %v3744 = vld [vmem:[%s1 + $0x1e8] sm:$0xf]
        %v3745 = vld [vmem:[%s1 + $0x1ec] sm:$0xf]
        %v3746 = vld [vmem:[%s1 + $0x1f0] sm:$0xf]
        %v3747 = vld [vmem:[%s1 + $0x1f4] sm:$0xf]
        %v3748 = vld [vmem:[%s1 + $0x1f8] sm:$0xf]
        %v3749 = vld [vmem:[%s1 + $0x1fc] sm:$0xf]
        %v3750 = vunpack.c.l.b16 %v3363
        %v3751 = vunpack.c.l.b16 %v3373
        %v3752 = vunpack.c.l.b16 %v3387
        %v3753 = vunpack.c.l.b16 %v3397
        %v3754 = vunpack.c.l.b16 %v3411
        %v3755 = vunpack.c.l.b16 %v3421
        %v3756 = vunpack.c.l.b16 %v3435
        %v3757 = vunpack.c.l.b16 %v3445
        %v3758 = vunpack.c.l.b16 %v3459
        %v3759 = vunpack.c.l.b16 %v3469
        %v3760 = vunpack.c.l.b16 %v3483
        %v3761 = vunpack.c.l.b16 %v3493
        %v3762 = vunpack.c.l.b16 %v3507
        %v3763 = vunpack.c.l.b16 %v3517
        %v3764 = vunpack.c.l.b16 %v3531
        %v3765 = vunpack.c.l.b16 %v3541
        %v3766 = vunpack.c.l.b16 %v3555
        %v3767 = vunpack.c.l.b16 %v3565
        %v3768 = vunpack.c.l.b16 %v3579
        %v3769 = vunpack.c.l.b16 %v3589
        %v3770 = vunpack.c.l.b16 %v3603
        %v3771 = vunpack.c.l.b16 %v3613
        %v3772 = vunpack.c.l.b16 %v3627
        %v3773 = vunpack.c.l.b16 %v3637
        %v3774 = vunpack.c.l.b16 %v3651
        %v3775 = vunpack.c.l.b16 %v3661
        %v3776 = vunpack.c.l.b16 %v3675
        %v3777 = vunpack.c.l.b16 %v3685
        %v3778 = vunpack.c.l.b16 %v3699
        %v3779 = vunpack.c.l.b16 %v3709
        %v3780 = vunpack.c.l.b16 %v3723
        %v3781 = vunpack.c.l.b16 %v3733
        %v3782 = vpack.c.b16 %v3751, %v3750
        %v3783 = vpack.c.b16 %v3753, %v3752
        %v3784 = vpack.c.b16 %v3755, %v3754
        %v3785 = vpack.c.b16 %v3757, %v3756
        %v3786 = vpack.c.b16 %v3759, %v3758
        %v3787 = vpack.c.b16 %v3761, %v3760
        %v3788 = vpack.c.b16 %v3763, %v3762
        %v3789 = vpack.c.b16 %v3765, %v3764
        %v3790 = vpack.c.b16 %v3767, %v3766
        %v3791 = vpack.c.b16 %v3769, %v3768
        %v3792 = vpack.c.b16 %v3771, %v3770
        %v3793 = vpack.c.b16 %v3773, %v3772
        %v3794 = vpack.c.b16 %v3775, %v3774
        %v3795 = vpack.c.b16 %v3777, %v3776
        %v3796 = vpack.c.b16 %v3779, %v3778
        %v3797 = vpack.c.b16 %v3781, %v3780
        %v3830 = vunpack.c.l.b16 %v3734
        %v3831 = vunpack.c.l.b16 %v3735
        %v3832 = vunpack.c.l.b16 %v3736
        %v3833 = vunpack.c.l.b16 %v3737
        %v3834 = vunpack.c.l.b16 %v3738
        %v3835 = vunpack.c.l.b16 %v3739
        %v3836 = vunpack.c.l.b16 %v3740
        %v3837 = vunpack.c.l.b16 %v3741
        %v3838 = vunpack.c.l.b16 %v3742
        %v3839 = vunpack.c.l.b16 %v3743
        %v3840 = vunpack.c.l.b16 %v3744
        %v3841 = vunpack.c.l.b16 %v3745
        %v3842 = vunpack.c.l.b16 %v3746
        %v3843 = vunpack.c.l.b16 %v3747
        %v3844 = vunpack.c.l.b16 %v3748
        %v3845 = vunpack.c.l.b16 %v3749
        %v3846 = vpack.c.b16 %v3831, %v3830
        %v3847 = vpack.c.b16 %v3833, %v3832
        %v3848 = vpack.c.b16 %v3835, %v3834
        %v3849 = vpack.c.b16 %v3837, %v3836
        %v3850 = vpack.c.b16 %v3839, %v3838
        %v3851 = vpack.c.b16 %v3841, %v3840
        %v3852 = vpack.c.b16 %v3843, %v3842
        %v3853 = vpack.c.b16 %v3845, %v3844
        %3862 = vmatpush.bf16.msra.mxu0 %v3853
        %3863 = vmatpush.bf16.msra.mxu0 %v3852
        %3864 = vmatpush.bf16.msra.mxu0 %v3851
        %3865 = vmatpush.bf16.msra.mxu0 %v3850
        %3866 = vmatpush.bf16.msra.mxu0 %v3849
        %3867 = vmatpush.bf16.msra.mxu0 %v3848
        %3868 = vmatpush.bf16.msra.mxu0 %v3847
        %3869 = vmatpush.bf16.msra.mxu0 %v3846
        %3870 = vmatmul.bf16.gmra.mxu0 %v3782
        %v3871 = vpop.f32.mrf.mxu0
        %v3872 = vadd.f32 0.0, %v3871
        %v3873 = vpop.f32.mrf.mxu0
        %v3874 = vadd.f32 0.0, %v3873
        %3875 = vmatmul.bf16.gmra.mxu0 %v3783
        %v3876 = vpop.f32.mrf.mxu0
        %v3877 = vadd.f32 0.0, %v3876
        %v3878 = vpop.f32.mrf.mxu0
        %v3879 = vadd.f32 0.0, %v3878
        %3880 = vmatmul.bf16.gmra.mxu0 %v3784
        %v3881 = vpop.f32.mrf.mxu0
        %v3882 = vadd.f32 0.0, %v3881
        %v3883 = vpop.f32.mrf.mxu0
        %v3884 = vadd.f32 0.0, %v3883
        %3885 = vmatmul.bf16.gmra.mxu0 %v3785
        %v3886 = vpop.f32.mrf.mxu0
        %v3887 = vadd.f32 0.0, %v3886
        %v3888 = vpop.f32.mrf.mxu0
        %v3889 = vadd.f32 0.0, %v3888
        %3890 = vmatmul.bf16.gmra.mxu0 %v3786
        %v3891 = vpop.f32.mrf.mxu0
        %v3892 = vadd.f32 0.0, %v3891
        %v3893 = vpop.f32.mrf.mxu0
        %v3894 = vadd.f32 0.0, %v3893
        %3895 = vmatmul.bf16.gmra.mxu0 %v3787
        %v3896 = vpop.f32.mrf.mxu0
        %v3897 = vadd.f32 0.0, %v3896
        %v3898 = vpop.f32.mrf.mxu0
        %v3899 = vadd.f32 0.0, %v3898
        %3900 = vmatmul.bf16.gmra.mxu0 %v3788
        %v3901 = vpop.f32.mrf.mxu0
        %v3902 = vadd.f32 0.0, %v3901
        %v3903 = vpop.f32.mrf.mxu0
        %v3904 = vadd.f32 0.0, %v3903
        %3905 = vmatmul.bf16.gmra.mxu0 %v3789
        %v3906 = vpop.f32.mrf.mxu0
        %v3907 = vadd.f32 0.0, %v3906
        %v3908 = vpop.f32.mrf.mxu0
        %v3909 = vadd.f32 0.0, %v3908
        %3910 = vmatmul.bf16.gmra.mxu0 %v3790
        %v3911 = vpop.f32.mrf.mxu0
        %v3912 = vadd.f32 0.0, %v3911
        %v3913 = vpop.f32.mrf.mxu0
        %v3914 = vadd.f32 0.0, %v3913
        %3915 = vmatmul.bf16.gmra.mxu0 %v3791
        %v3916 = vpop.f32.mrf.mxu0
        %v3917 = vadd.f32 0.0, %v3916
        %v3918 = vpop.f32.mrf.mxu0
        %v3919 = vadd.f32 0.0, %v3918
        %3920 = vmatmul.bf16.gmra.mxu0 %v3792
        %v3921 = vpop.f32.mrf.mxu0
        %v3922 = vadd.f32 0.0, %v3921
        %v3923 = vpop.f32.mrf.mxu0
        %v3924 = vadd.f32 0.0, %v3923
        %3925 = vmatmul.bf16.gmra.mxu0 %v3793
        %v3926 = vpop.f32.mrf.mxu0
        %v3927 = vadd.f32 0.0, %v3926
        %v3928 = vpop.f32.mrf.mxu0
        %v3929 = vadd.f32 0.0, %v3928
        %3930 = vmatmul.bf16.gmra.mxu0 %v3794
        %v3931 = vpop.f32.mrf.mxu0
        %v3932 = vadd.f32 0.0, %v3931
        %v3933 = vpop.f32.mrf.mxu0
        %v3934 = vadd.f32 0.0, %v3933
        %3935 = vmatmul.bf16.gmra.mxu0 %v3795
        %v3936 = vpop.f32.mrf.mxu0
        %v3937 = vadd.f32 0.0, %v3936
        %v3938 = vpop.f32.mrf.mxu0
        %v3939 = vadd.f32 0.0, %v3938
        %3940 = vmatmul.bf16.gmra.mxu0 %v3796
        %v3941 = vpop.f32.mrf.mxu0
        %v3942 = vadd.f32 0.0, %v3941
        %v3943 = vpop.f32.mrf.mxu0
        %v3944 = vadd.f32 0.0, %v3943
        %3945 = vmatmul.bf16.gmra.mxu0 %v3797
        %v3946 = vpop.f32.mrf.mxu0
        %v3947 = vadd.f32 0.0, %v3946
        %v3948 = vpop.f32.mrf.mxu0
        %v3949 = vadd.f32 0.0, %v3948
        %3950 = vdwg.mxu0
        %v3951 = vadd.f32 %v3270, %v3872
        %v3952 = vadd.f32 %v3271, %v3874
        %v3953 = vadd.f32 %v3272, %v3877
        %v3954 = vadd.f32 %v3273, %v3879
        %v3955 = vadd.f32 %v3274, %v3882
        %v3956 = vadd.f32 %v3275, %v3884
        %v3957 = vadd.f32 %v3276, %v3887
        %v3958 = vadd.f32 %v3277, %v3889
        %v3959 = vadd.f32 %v3278, %v3892
        %v3960 = vadd.f32 %v3279, %v3894
        %v3961 = vadd.f32 %v3280, %v3897
        %v3962 = vadd.f32 %v3281, %v3899
        %v3963 = vadd.f32 %v3282, %v3902
        %v3964 = vadd.f32 %v3283, %v3904
        %v3965 = vadd.f32 %v3284, %v3907
        %v3966 = vadd.f32 %v3285, %v3909
        %v3967 = vadd.f32 %v3286, %v3912
        %v3968 = vadd.f32 %v3287, %v3914
        %v3969 = vadd.f32 %v3288, %v3917
        %v3970 = vadd.f32 %v3289, %v3919
        %v3971 = vadd.f32 %v3290, %v3922
        %v3972 = vadd.f32 %v3291, %v3924
        %v3973 = vadd.f32 %v3292, %v3927
        %v3974 = vadd.f32 %v3293, %v3929
        %v3975 = vadd.f32 %v3294, %v3932
        %v3976 = vadd.f32 %v3295, %v3934
        %v3977 = vadd.f32 %v3296, %v3937
        %v3978 = vadd.f32 %v3297, %v3939
        %v3979 = vadd.f32 %v3298, %v3942
        %v3980 = vadd.f32 %v3299, %v3944
        %v3981 = vadd.f32 %v3300, %v3947
        %v3982 = vadd.f32 %v3301, %v3949
        %v3983 = vld [vmem:[%s2988] sm:$0xe]
        %v3984 = vld [vmem:[%s2988 + $0xc] sm:$0xe]
        %v3985 = vld [vmem:[%s2988 + $0x18] sm:$0xe]
        %v3986 = vld [vmem:[%s2988 + $0x24] sm:$0xe]
        %v3987 = vld [vmem:[%s2988 + $0x30] sm:$0xe]
        %v3988 = vld [vmem:[%s2988 + $0x3c] sm:$0xe]
        %v3989 = vld [vmem:[%s2988 + $0x48] sm:$0xe]
        %v3990 = vld [vmem:[%s2988 + $0x54] sm:$0xe]
        %v3991 = vld [vmem:[%s2988 + $0x60] sm:$0xe]
        %v3992 = vld [vmem:[%s2988 + $0x6c] sm:$0xe]
        %v3993 = vld [vmem:[%s2988 + $0x78] sm:$0xe]
        %v3994 = vld [vmem:[%s2988 + $0x84] sm:$0xe]
        %v3995 = vld [vmem:[%s2988 + $0x90] sm:$0xe]
        %v3996 = vld [vmem:[%s2988 + $0x9c] sm:$0xe]
        %v3997 = vld [vmem:[%s2988 + $0xa8] sm:$0xe]
        %v3998 = vld [vmem:[%s2988 + $0xb4] sm:$0xe]
        %v4047 = vrot.slane %v3983, 5
        %v4048 = vrot.slane %v4047, 4
        %v4049 = vrot.slane %v3303, 5
        %v4050 = vsel %vm1174, %v4048, %v4049
        %v4051 = vrot.slane %v4049, 4
        %v4052 = vrot.slane %v3304, 5
        %v4053 = vsel %vm1174, %v4051, %v4052
        %v4054 = vrot.slane %v3984, 5
        %v4055 = vrot.slane %v4054, 4
        %v4056 = vrot.slane %v3306, 5
        %v4057 = vsel %vm1174, %v4055, %v4056
        %v4058 = vrot.slane %v4056, 4
        %v4059 = vrot.slane %v3307, 5
        %v4060 = vsel %vm1174, %v4058, %v4059
        %v4061 = vrot.slane %v3985, 5
        %v4062 = vrot.slane %v4061, 4
        %v4063 = vrot.slane %v3309, 5
        %v4064 = vsel %vm1174, %v4062, %v4063
        %v4065 = vrot.slane %v4063, 4
        %v4066 = vrot.slane %v3310, 5
        %v4067 = vsel %vm1174, %v4065, %v4066
        %v4068 = vrot.slane %v3986, 5
        %v4069 = vrot.slane %v4068, 4
        %v4070 = vrot.slane %v3312, 5
        %v4071 = vsel %vm1174, %v4069, %v4070
        %v4072 = vrot.slane %v4070, 4
        %v4073 = vrot.slane %v3313, 5
        %v4074 = vsel %vm1174, %v4072, %v4073
        %v4075 = vrot.slane %v3987, 5
        %v4076 = vrot.slane %v4075, 4
        %v4077 = vrot.slane %v3315, 5
        %v4078 = vsel %vm1174, %v4076, %v4077
        %v4079 = vrot.slane %v4077, 4
        %v4080 = vrot.slane %v3316, 5
        %v4081 = vsel %vm1174, %v4079, %v4080
        %v4082 = vrot.slane %v3988, 5
        %v4083 = vrot.slane %v4082, 4
        %v4084 = vrot.slane %v3318, 5
        %v4085 = vsel %vm1174, %v4083, %v4084
        %v4086 = vrot.slane %v4084, 4
        %v4087 = vrot.slane %v3319, 5
        %v4088 = vsel %vm1174, %v4086, %v4087
        %v4089 = vrot.slane %v3989, 5
        %v4090 = vrot.slane %v4089, 4
        %v4091 = vrot.slane %v3321, 5
        %v4092 = vsel %vm1174, %v4090, %v4091
        %v4093 = vrot.slane %v4091, 4
        %v4094 = vrot.slane %v3322, 5
        %v4095 = vsel %vm1174, %v4093, %v4094
        %v4096 = vrot.slane %v3990, 5
        %v4097 = vrot.slane %v4096, 4
        %v4098 = vrot.slane %v3324, 5
        %v4099 = vsel %vm1174, %v4097, %v4098
        %v4100 = vrot.slane %v4098, 4
        %v4101 = vrot.slane %v3325, 5
        %v4102 = vsel %vm1174, %v4100, %v4101
        %v4103 = vrot.slane %v3991, 5
        %v4104 = vrot.slane %v4103, 4
        %v4105 = vrot.slane %v3327, 5
        %v4106 = vsel %vm1174, %v4104, %v4105
        %v4107 = vrot.slane %v4105, 4
        %v4108 = vrot.slane %v3328, 5
        %v4109 = vsel %vm1174, %v4107, %v4108
        %v4110 = vrot.slane %v3992, 5
        %v4111 = vrot.slane %v4110, 4
        %v4112 = vrot.slane %v3330, 5
        %v4113 = vsel %vm1174, %v4111, %v4112
        %v4114 = vrot.slane %v4112, 4
        %v4115 = vrot.slane %v3331, 5
        %v4116 = vsel %vm1174, %v4114, %v4115
        %v4117 = vrot.slane %v3993, 5
        %v4118 = vrot.slane %v4117, 4
        %v4119 = vrot.slane %v3333, 5
        %v4120 = vsel %vm1174, %v4118, %v4119
        %v4121 = vrot.slane %v4119, 4
        %v4122 = vrot.slane %v3334, 5
        %v4123 = vsel %vm1174, %v4121, %v4122
        %v4124 = vrot.slane %v3994, 5
        %v4125 = vrot.slane %v4124, 4
        %v4126 = vrot.slane %v3336, 5
        %v4127 = vsel %vm1174, %v4125, %v4126
        %v4128 = vrot.slane %v4126, 4
        %v4129 = vrot.slane %v3337, 5
        %v4130 = vsel %vm1174, %v4128, %v4129
        %v4131 = vrot.slane %v3995, 5
        %v4132 = vrot.slane %v4131, 4
        %v4133 = vrot.slane %v3339, 5
        %v4134 = vsel %vm1174, %v4132, %v4133
        %v4135 = vrot.slane %v4133, 4
        %v4136 = vrot.slane %v3340, 5
        %v4137 = vsel %vm1174, %v4135, %v4136
        %v4138 = vrot.slane %v3996, 5
        %v4139 = vrot.slane %v4138, 4
        %v4140 = vrot.slane %v3342, 5
        %v4141 = vsel %vm1174, %v4139, %v4140
        %v4142 = vrot.slane %v4140, 4
        %v4143 = vrot.slane %v3343, 5
        %v4144 = vsel %vm1174, %v4142, %v4143
        %v4145 = vrot.slane %v3997, 5
        %v4146 = vrot.slane %v4145, 4
        %v4147 = vrot.slane %v3345, 5
        %v4148 = vsel %vm1174, %v4146, %v4147
        %v4149 = vrot.slane %v4147, 4
        %v4150 = vrot.slane %v3346, 5
        %v4151 = vsel %vm1174, %v4149, %v4150
        %v4152 = vrot.slane %v3998, 5
        %v4153 = vrot.slane %v4152, 4
        %v4154 = vrot.slane %v3348, 5
        %v4155 = vsel %vm1174, %v4153, %v4154
        %v4156 = vrot.slane %v4154, 4
        %v4157 = vrot.slane %v3349, 5
        %v4158 = vsel %vm1174, %v4156, %v4157
        %v4159 = vld [vmem:[%s1 + $0x200] sm:$0xf]
        %v4160 = vld [vmem:[%s1 + $0x204] sm:$0xf]
        %v4161 = vld [vmem:[%s1 + $0x208] sm:$0xf]
        %v4162 = vld [vmem:[%s1 + $0x20c] sm:$0xf]
        %v4163 = vld [vmem:[%s1 + $0x210] sm:$0xf]
        %v4164 = vld [vmem:[%s1 + $0x214] sm:$0xf]
        %v4165 = vld [vmem:[%s1 + $0x218] sm:$0xf]
        %v4166 = vld [vmem:[%s1 + $0x21c] sm:$0xf]
        %v4167 = vld [vmem:[%s1 + $0x220] sm:$0xf]
        %v4168 = vld [vmem:[%s1 + $0x224] sm:$0xf]
        %v4169 = vld [vmem:[%s1 + $0x228] sm:$0xf]
        %v4170 = vld [vmem:[%s1 + $0x22c] sm:$0xf]
        %v4171 = vld [vmem:[%s1 + $0x230] sm:$0xf]
        %v4172 = vld [vmem:[%s1 + $0x234] sm:$0xf]
        %v4173 = vld [vmem:[%s1 + $0x238] sm:$0xf]
        %v4174 = vld [vmem:[%s1 + $0x23c] sm:$0xf]
        %v4175 = vunpack.c.l.b16 %v4050
        %v4176 = vunpack.c.l.b16 %v4053
        %v4177 = vunpack.c.l.b16 %v4057
        %v4178 = vunpack.c.l.b16 %v4060
        %v4179 = vunpack.c.l.b16 %v4064
        %v4180 = vunpack.c.l.b16 %v4067
        %v4181 = vunpack.c.l.b16 %v4071
        %v4182 = vunpack.c.l.b16 %v4074
        %v4183 = vunpack.c.l.b16 %v4078
        %v4184 = vunpack.c.l.b16 %v4081
        %v4185 = vunpack.c.l.b16 %v4085
        %v4186 = vunpack.c.l.b16 %v4088
        %v4187 = vunpack.c.l.b16 %v4092
        %v4188 = vunpack.c.l.b16 %v4095
        %v4189 = vunpack.c.l.b16 %v4099
        %v4190 = vunpack.c.l.b16 %v4102
        %v4191 = vunpack.c.l.b16 %v4106
        %v4192 = vunpack.c.l.b16 %v4109
        %v4193 = vunpack.c.l.b16 %v4113
        %v4194 = vunpack.c.l.b16 %v4116
        %v4195 = vunpack.c.l.b16 %v4120
        %v4196 = vunpack.c.l.b16 %v4123
        %v4197 = vunpack.c.l.b16 %v4127
        %v4198 = vunpack.c.l.b16 %v4130
        %v4199 = vunpack.c.l.b16 %v4134
        %v4200 = vunpack.c.l.b16 %v4137
        %v4201 = vunpack.c.l.b16 %v4141
        %v4202 = vunpack.c.l.b16 %v4144
        %v4203 = vunpack.c.l.b16 %v4148
        %v4204 = vunpack.c.l.b16 %v4151
        %v4205 = vunpack.c.l.b16 %v4155
        %v4206 = vunpack.c.l.b16 %v4158
        %v4207 = vpack.c.b16 %v4176, %v4175
        %v4208 = vpack.c.b16 %v4178, %v4177
        %v4209 = vpack.c.b16 %v4180, %v4179
        %v4210 = vpack.c.b16 %v4182, %v4181
        %v4211 = vpack.c.b16 %v4184, %v4183
        %v4212 = vpack.c.b16 %v4186, %v4185
        %v4213 = vpack.c.b16 %v4188, %v4187
        %v4214 = vpack.c.b16 %v4190, %v4189
        %v4215 = vpack.c.b16 %v4192, %v4191
        %v4216 = vpack.c.b16 %v4194, %v4193
        %v4217 = vpack.c.b16 %v4196, %v4195
        %v4218 = vpack.c.b16 %v4198, %v4197
        %v4219 = vpack.c.b16 %v4200, %v4199
        %v4220 = vpack.c.b16 %v4202, %v4201
        %v4221 = vpack.c.b16 %v4204, %v4203
        %v4222 = vpack.c.b16 %v4206, %v4205
        %v4255 = vunpack.c.l.b16 %v4159
        %v4256 = vunpack.c.l.b16 %v4160
        %v4257 = vunpack.c.l.b16 %v4161
        %v4258 = vunpack.c.l.b16 %v4162
        %v4259 = vunpack.c.l.b16 %v4163
        %v4260 = vunpack.c.l.b16 %v4164
        %v4261 = vunpack.c.l.b16 %v4165
        %v4262 = vunpack.c.l.b16 %v4166
        %v4263 = vunpack.c.l.b16 %v4167
        %v4264 = vunpack.c.l.b16 %v4168
        %v4265 = vunpack.c.l.b16 %v4169
        %v4266 = vunpack.c.l.b16 %v4170
        %v4267 = vunpack.c.l.b16 %v4171
        %v4268 = vunpack.c.l.b16 %v4172
        %v4269 = vunpack.c.l.b16 %v4173
        %v4270 = vunpack.c.l.b16 %v4174
        %v4271 = vpack.c.b16 %v4256, %v4255
        %v4272 = vpack.c.b16 %v4258, %v4257
        %v4273 = vpack.c.b16 %v4260, %v4259
        %v4274 = vpack.c.b16 %v4262, %v4261
        %v4275 = vpack.c.b16 %v4264, %v4263
        %v4276 = vpack.c.b16 %v4266, %v4265
        %v4277 = vpack.c.b16 %v4268, %v4267
        %v4278 = vpack.c.b16 %v4270, %v4269
        %4287 = vmatpush.bf16.msra.mxu0 %v4278
        %4288 = vmatpush.bf16.msra.mxu0 %v4277
        %4289 = vmatpush.bf16.msra.mxu0 %v4276
        %4290 = vmatpush.bf16.msra.mxu0 %v4275
        %4291 = vmatpush.bf16.msra.mxu0 %v4274
        %4292 = vmatpush.bf16.msra.mxu0 %v4273
        %4293 = vmatpush.bf16.msra.mxu0 %v4272
        %4294 = vmatpush.bf16.msra.mxu0 %v4271
        %4295 = vmatmul.bf16.gmra.mxu0 %v4207
        %v4296 = vpop.f32.mrf.mxu0
        %v4297 = vadd.f32 0.0, %v4296
        %v4298 = vpop.f32.mrf.mxu0
        %v4299 = vadd.f32 0.0, %v4298
        %4300 = vmatmul.bf16.gmra.mxu0 %v4208
        %v4301 = vpop.f32.mrf.mxu0
        %v4302 = vadd.f32 0.0, %v4301
        %v4303 = vpop.f32.mrf.mxu0
        %v4304 = vadd.f32 0.0, %v4303
        %4305 = vmatmul.bf16.gmra.mxu0 %v4209
        %v4306 = vpop.f32.mrf.mxu0
        %v4307 = vadd.f32 0.0, %v4306
        %v4308 = vpop.f32.mrf.mxu0
        %v4309 = vadd.f32 0.0, %v4308
        %4310 = vmatmul.bf16.gmra.mxu0 %v4210
        %v4311 = vpop.f32.mrf.mxu0
        %v4312 = vadd.f32 0.0, %v4311
        %v4313 = vpop.f32.mrf.mxu0
        %v4314 = vadd.f32 0.0, %v4313
        %4315 = vmatmul.bf16.gmra.mxu0 %v4211
        %v4316 = vpop.f32.mrf.mxu0
        %v4317 = vadd.f32 0.0, %v4316
        %v4318 = vpop.f32.mrf.mxu0
        %v4319 = vadd.f32 0.0, %v4318
        %4320 = vmatmul.bf16.gmra.mxu0 %v4212
        %v4321 = vpop.f32.mrf.mxu0
        %v4322 = vadd.f32 0.0, %v4321
        %v4323 = vpop.f32.mrf.mxu0
        %v4324 = vadd.f32 0.0, %v4323
        %4325 = vmatmul.bf16.gmra.mxu0 %v4213
        %v4326 = vpop.f32.mrf.mxu0
        %v4327 = vadd.f32 0.0, %v4326
        %v4328 = vpop.f32.mrf.mxu0
        %v4329 = vadd.f32 0.0, %v4328
        %4330 = vmatmul.bf16.gmra.mxu0 %v4214
        %v4331 = vpop.f32.mrf.mxu0
        %v4332 = vadd.f32 0.0, %v4331
        %v4333 = vpop.f32.mrf.mxu0
        %v4334 = vadd.f32 0.0, %v4333
        %4335 = vmatmul.bf16.gmra.mxu0 %v4215
        %v4336 = vpop.f32.mrf.mxu0
        %v4337 = vadd.f32 0.0, %v4336
        %v4338 = vpop.f32.mrf.mxu0
        %v4339 = vadd.f32 0.0, %v4338
        %4340 = vmatmul.bf16.gmra.mxu0 %v4216
        %v4341 = vpop.f32.mrf.mxu0
        %v4342 = vadd.f32 0.0, %v4341
        %v4343 = vpop.f32.mrf.mxu0
        %v4344 = vadd.f32 0.0, %v4343
        %4345 = vmatmul.bf16.gmra.mxu0 %v4217
        %v4346 = vpop.f32.mrf.mxu0
        %v4347 = vadd.f32 0.0, %v4346
        %v4348 = vpop.f32.mrf.mxu0
        %v4349 = vadd.f32 0.0, %v4348
        %4350 = vmatmul.bf16.gmra.mxu0 %v4218
        %v4351 = vpop.f32.mrf.mxu0
        %v4352 = vadd.f32 0.0, %v4351
        %v4353 = vpop.f32.mrf.mxu0
        %v4354 = vadd.f32 0.0, %v4353
        %4355 = vmatmul.bf16.gmra.mxu0 %v4219
        %v4356 = vpop.f32.mrf.mxu0
        %v4357 = vadd.f32 0.0, %v4356
        %v4358 = vpop.f32.mrf.mxu0
        %v4359 = vadd.f32 0.0, %v4358
        %4360 = vmatmul.bf16.gmra.mxu0 %v4220
        %v4361 = vpop.f32.mrf.mxu0
        %v4362 = vadd.f32 0.0, %v4361
        %v4363 = vpop.f32.mrf.mxu0
        %v4364 = vadd.f32 0.0, %v4363
        %4365 = vmatmul.bf16.gmra.mxu0 %v4221
        %v4366 = vpop.f32.mrf.mxu0
        %v4367 = vadd.f32 0.0, %v4366
        %v4368 = vpop.f32.mrf.mxu0
        %v4369 = vadd.f32 0.0, %v4368
        %4370 = vmatmul.bf16.gmra.mxu0 %v4222
        %v4371 = vpop.f32.mrf.mxu0
        %v4372 = vadd.f32 0.0, %v4371
        %v4373 = vpop.f32.mrf.mxu0
        %v4374 = vadd.f32 0.0, %v4373
        %4375 = vdwg.mxu0
        %v4376 = vadd.f32 %v3951, %v4297
        %v4377 = vadd.f32 %v3952, %v4299
        %v4378 = vadd.f32 %v3953, %v4302
        %v4379 = vadd.f32 %v3954, %v4304
        %v4380 = vadd.f32 %v3955, %v4307
        %v4381 = vadd.f32 %v3956, %v4309
        %v4382 = vadd.f32 %v3957, %v4312
        %v4383 = vadd.f32 %v3958, %v4314
        %v4384 = vadd.f32 %v3959, %v4317
        %v4385 = vadd.f32 %v3960, %v4319
        %v4386 = vadd.f32 %v3961, %v4322
        %v4387 = vadd.f32 %v3962, %v4324
        %v4388 = vadd.f32 %v3963, %v4327
        %v4389 = vadd.f32 %v3964, %v4329
        %v4390 = vadd.f32 %v3965, %v4332
        %v4391 = vadd.f32 %v3966, %v4334
        %v4392 = vadd.f32 %v3967, %v4337
        %v4393 = vadd.f32 %v3968, %v4339
        %v4394 = vadd.f32 %v3969, %v4342
        %v4395 = vadd.f32 %v3970, %v4344
        %v4396 = vadd.f32 %v3971, %v4347
        %v4397 = vadd.f32 %v3972, %v4349
        %v4398 = vadd.f32 %v3973, %v4352
        %v4399 = vadd.f32 %v3974, %v4354
        %v4400 = vadd.f32 %v3975, %v4357
        %v4401 = vadd.f32 %v3976, %v4359
        %v4402 = vadd.f32 %v3977, %v4362
        %v4403 = vadd.f32 %v3978, %v4364
        %v4404 = vadd.f32 %v3979, %v4367
        %v4405 = vadd.f32 %v3980, %v4369
        %v4406 = vadd.f32 %v3981, %v4372
        %v4407 = vadd.f32 %v3982, %v4374
        %v4408 = vld [vmem:[%s2] sm:$0x1]
        %v4410 = vperm.slane %v4408, 0
        %v4412 = vmul.f32 %v4376, %v4410
        %v4413 = vmul.f32 %v4377, %v4410
        %v4414 = vmul.f32 %v4378, %v4410
        %v4415 = vmul.f32 %v4379, %v4410
        %v4416 = vmul.f32 %v4380, %v4410
        %v4417 = vmul.f32 %v4381, %v4410
        %v4418 = vmul.f32 %v4382, %v4410
        %v4419 = vmul.f32 %v4383, %v4410
        %v4420 = vmul.f32 %v4384, %v4410
        %v4421 = vmul.f32 %v4385, %v4410
        %v4422 = vmul.f32 %v4386, %v4410
        %v4423 = vmul.f32 %v4387, %v4410
        %v4424 = vmul.f32 %v4388, %v4410
        %v4425 = vmul.f32 %v4389, %v4410
        %v4426 = vmul.f32 %v4390, %v4410
        %v4427 = vmul.f32 %v4391, %v4410
        %v4428 = vmul.f32 %v4392, %v4410
        %v4429 = vmul.f32 %v4393, %v4410
        %v4430 = vmul.f32 %v4394, %v4410
        %v4431 = vmul.f32 %v4395, %v4410
        %v4432 = vmul.f32 %v4396, %v4410
        %v4433 = vmul.f32 %v4397, %v4410
        %v4434 = vmul.f32 %v4398, %v4410
        %v4435 = vmul.f32 %v4399, %v4410
        %v4436 = vmul.f32 %v4400, %v4410
        %v4437 = vmul.f32 %v4401, %v4410
        %v4438 = vmul.f32 %v4402, %v4410
        %v4439 = vmul.f32 %v4403, %v4410
        %v4440 = vmul.f32 %v4404, %v4410
        %v4441 = vmul.f32 %v4405, %v4410
        %v4442 = vmul.f32 %v4406, %v4410
        %v4443 = vmul.f32 %v4407, %v4410
        %v4444 = vld [vmem:[%s3] sm:$0x1]
        %v4446 = vperm.slane %v4444, 0
        %v4448 = vadd.f32 %v4412, %v4446
        %v4449 = vadd.f32 %v4413, %v4446
        %v4450 = vadd.f32 %v4414, %v4446
        %v4451 = vadd.f32 %v4415, %v4446
        %v4452 = vadd.f32 %v4416, %v4446
        %v4453 = vadd.f32 %v4417, %v4446
        %v4454 = vadd.f32 %v4418, %v4446
        %v4455 = vadd.f32 %v4419, %v4446
        %v4456 = vadd.f32 %v4420, %v4446
        %v4457 = vadd.f32 %v4421, %v4446
        %v4458 = vadd.f32 %v4422, %v4446
        %v4459 = vadd.f32 %v4423, %v4446
        %v4460 = vadd.f32 %v4424, %v4446
        %v4461 = vadd.f32 %v4425, %v4446
        %v4462 = vadd.f32 %v4426, %v4446
        %v4463 = vadd.f32 %v4427, %v4446
        %v4464 = vadd.f32 %v4428, %v4446
        %v4465 = vadd.f32 %v4429, %v4446
        %v4466 = vadd.f32 %v4430, %v4446
        %v4467 = vadd.f32 %v4431, %v4446
        %v4468 = vadd.f32 %v4432, %v4446
        %v4469 = vadd.f32 %v4433, %v4446
        %v4470 = vadd.f32 %v4434, %v4446
        %v4471 = vadd.f32 %v4435, %v4446
        %v4472 = vadd.f32 %v4436, %v4446
        %v4473 = vadd.f32 %v4437, %v4446
        %v4474 = vadd.f32 %v4438, %v4446
        %v4475 = vadd.f32 %v4439, %v4446
        %v4476 = vadd.f32 %v4440, %v4446
        %v4477 = vadd.f32 %v4441, %v4446
        %v4478 = vadd.f32 %v4442, %v4446
        %v4479 = vadd.f32 %v4443, %v4446
        %v4480 = vunpack.c.l.bf16 %v1911
        %v4481 = vunpack.c.l.bf16 %v1921
        %v4482 = vunpack.c.l.bf16 %v1935
        %v4483 = vunpack.c.l.bf16 %v1945
        %v4484 = vunpack.c.l.bf16 %v1959
        %v4485 = vunpack.c.l.bf16 %v1969
        %v4486 = vunpack.c.l.bf16 %v1983
        %v4487 = vunpack.c.l.bf16 %v1993
        %v4488 = vunpack.c.l.bf16 %v2007
        %v4489 = vunpack.c.l.bf16 %v2017
        %v4490 = vunpack.c.l.bf16 %v2031
        %v4491 = vunpack.c.l.bf16 %v2041
        %v4492 = vunpack.c.l.bf16 %v2055
        %v4493 = vunpack.c.l.bf16 %v2065
        %v4494 = vunpack.c.l.bf16 %v2079
        %v4495 = vunpack.c.l.bf16 %v2089
        %v4496 = vunpack.c.l.bf16 %v2103
        %v4497 = vunpack.c.l.bf16 %v2113
        %v4498 = vunpack.c.l.bf16 %v2127
        %v4499 = vunpack.c.l.bf16 %v2137
        %v4500 = vunpack.c.l.bf16 %v2151
        %v4501 = vunpack.c.l.bf16 %v2161
        %v4502 = vunpack.c.l.bf16 %v2175
        %v4503 = vunpack.c.l.bf16 %v2185
        %v4504 = vunpack.c.l.bf16 %v2199
        %v4505 = vunpack.c.l.bf16 %v2209
        %v4506 = vunpack.c.l.bf16 %v2223
        %v4507 = vunpack.c.l.bf16 %v2233
        %v4508 = vunpack.c.l.bf16 %v2247
        %v4509 = vunpack.c.l.bf16 %v2257
        %v4510 = vunpack.c.l.bf16 %v2271
        %v4511 = vunpack.c.l.bf16 %v2281
        %v4512 = vadd.f32 %v4448, %v4480
        %v4513 = vadd.f32 %v4449, %v4481
        %v4514 = vadd.f32 %v4450, %v4482
        %v4515 = vadd.f32 %v4451, %v4483
        %v4516 = vadd.f32 %v4452, %v4484
        %v4517 = vadd.f32 %v4453, %v4485
        %v4518 = vadd.f32 %v4454, %v4486
        %v4519 = vadd.f32 %v4455, %v4487
        %v4520 = vadd.f32 %v4456, %v4488
        %v4521 = vadd.f32 %v4457, %v4489
        %v4522 = vadd.f32 %v4458, %v4490
        %v4523 = vadd.f32 %v4459, %v4491
        %v4524 = vadd.f32 %v4460, %v4492
        %v4525 = vadd.f32 %v4461, %v4493
        %v4526 = vadd.f32 %v4462, %v4494
        %v4527 = vadd.f32 %v4463, %v4495
        %v4528 = vadd.f32 %v4464, %v4496
        %v4529 = vadd.f32 %v4465, %v4497
        %v4530 = vadd.f32 %v4466, %v4498
        %v4531 = vadd.f32 %v4467, %v4499
        %v4532 = vadd.f32 %v4468, %v4500
        %v4533 = vadd.f32 %v4469, %v4501
        %v4534 = vadd.f32 %v4470, %v4502
        %v4535 = vadd.f32 %v4471, %v4503
        %v4536 = vadd.f32 %v4472, %v4504
        %v4537 = vadd.f32 %v4473, %v4505
        %v4538 = vadd.f32 %v4474, %v4506
        %v4539 = vadd.f32 %v4475, %v4507
        %v4540 = vadd.f32 %v4476, %v4508
        %v4541 = vadd.f32 %v4477, %v4509
        %v4542 = vadd.f32 %v4478, %v4510
        %v4543 = vadd.f32 %v4479, %v4511
        %vm4544 = vcmp.ge.f32.partialorder %v4512, 0.0
        %vm4545 = vcmp.ge.f32.partialorder %v4513, 0.0
        %vm4546 = vcmp.ge.f32.partialorder %v4514, 0.0
        %vm4547 = vcmp.ge.f32.partialorder %v4515, 0.0
        %vm4548 = vcmp.ge.f32.partialorder %v4516, 0.0
        %vm4549 = vcmp.ge.f32.partialorder %v4517, 0.0
        %vm4550 = vcmp.ge.f32.partialorder %v4518, 0.0
        %vm4551 = vcmp.ge.f32.partialorder %v4519, 0.0
        %vm4552 = vcmp.ge.f32.partialorder %v4520, 0.0
        %vm4553 = vcmp.ge.f32.partialorder %v4521, 0.0
        %vm4554 = vcmp.ge.f32.partialorder %v4522, 0.0
        %vm4555 = vcmp.ge.f32.partialorder %v4523, 0.0
        %vm4556 = vcmp.ge.f32.partialorder %v4524, 0.0
        %vm4557 = vcmp.ge.f32.partialorder %v4525, 0.0
        %vm4558 = vcmp.ge.f32.partialorder %v4526, 0.0
        %vm4559 = vcmp.ge.f32.partialorder %v4527, 0.0
        %vm4560 = vcmp.ge.f32.partialorder %v4528, 0.0
        %vm4561 = vcmp.ge.f32.partialorder %v4529, 0.0
        %vm4562 = vcmp.ge.f32.partialorder %v4530, 0.0
        %vm4563 = vcmp.ge.f32.partialorder %v4531, 0.0
        %vm4564 = vcmp.ge.f32.partialorder %v4532, 0.0
        %vm4565 = vcmp.ge.f32.partialorder %v4533, 0.0
        %vm4566 = vcmp.ge.f32.partialorder %v4534, 0.0
        %vm4567 = vcmp.ge.f32.partialorder %v4535, 0.0
        %vm4568 = vcmp.ge.f32.partialorder %v4536, 0.0
        %vm4569 = vcmp.ge.f32.partialorder %v4537, 0.0
        %vm4570 = vcmp.ge.f32.partialorder %v4538, 0.0
        %vm4571 = vcmp.ge.f32.partialorder %v4539, 0.0
        %vm4572 = vcmp.ge.f32.partialorder %v4540, 0.0
        %vm4573 = vcmp.ge.f32.partialorder %v4541, 0.0
        %vm4574 = vcmp.ge.f32.partialorder %v4542, 0.0
        %vm4575 = vcmp.ge.f32.partialorder %v4543, 0.0
        %v4576 = vld [vmem:[%s4] sm:$0x1]
        %v4578 = vperm.slane %v4576, 0
        %v4580 = vmul.f32 %v4578, %v4512
        %v4581 = vmul.f32 %v4578, %v4513
        %v4582 = vmul.f32 %v4578, %v4514
        %v4583 = vmul.f32 %v4578, %v4515
        %v4584 = vmul.f32 %v4578, %v4516
        %v4585 = vmul.f32 %v4578, %v4517
        %v4586 = vmul.f32 %v4578, %v4518
        %v4587 = vmul.f32 %v4578, %v4519
        %v4588 = vmul.f32 %v4578, %v4520
        %v4589 = vmul.f32 %v4578, %v4521
        %v4590 = vmul.f32 %v4578, %v4522
        %v4591 = vmul.f32 %v4578, %v4523
        %v4592 = vmul.f32 %v4578, %v4524
        %v4593 = vmul.f32 %v4578, %v4525
        %v4594 = vmul.f32 %v4578, %v4526
        %v4595 = vmul.f32 %v4578, %v4527
        %v4596 = vmul.f32 %v4578, %v4528
        %v4597 = vmul.f32 %v4578, %v4529
        %v4598 = vmul.f32 %v4578, %v4530
        %v4599 = vmul.f32 %v4578, %v4531
        %v4600 = vmul.f32 %v4578, %v4532
        %v4601 = vmul.f32 %v4578, %v4533
        %v4602 = vmul.f32 %v4578, %v4534
        %v4603 = vmul.f32 %v4578, %v4535
        %v4604 = vmul.f32 %v4578, %v4536
        %v4605 = vmul.f32 %v4578, %v4537
        %v4606 = vmul.f32 %v4578, %v4538
        %v4607 = vmul.f32 %v4578, %v4539
        %v4608 = vmul.f32 %v4578, %v4540
        %v4609 = vmul.f32 %v4578, %v4541
        %v4610 = vmul.f32 %v4578, %v4542
        %v4611 = vmul.f32 %v4578, %v4543
        %v4612 = vsel %vm4544, %v4512, %v4580
        %v4613 = vsel %vm4545, %v4513, %v4581
        %v4614 = vsel %vm4546, %v4514, %v4582
        %v4615 = vsel %vm4547, %v4515, %v4583
        %v4616 = vsel %vm4548, %v4516, %v4584
        %v4617 = vsel %vm4549, %v4517, %v4585
        %v4618 = vsel %vm4550, %v4518, %v4586
        %v4619 = vsel %vm4551, %v4519, %v4587
        %v4620 = vsel %vm4552, %v4520, %v4588
        %v4621 = vsel %vm4553, %v4521, %v4589
        %v4622 = vsel %vm4554, %v4522, %v4590
        %v4623 = vsel %vm4555, %v4523, %v4591
        %v4624 = vsel %vm4556, %v4524, %v4592
        %v4625 = vsel %vm4557, %v4525, %v4593
        %v4626 = vsel %vm4558, %v4526, %v4594
        %v4627 = vsel %vm4559, %v4527, %v4595
        %v4628 = vsel %vm4560, %v4528, %v4596
        %v4629 = vsel %vm4561, %v4529, %v4597
        %v4630 = vsel %vm4562, %v4530, %v4598
        %v4631 = vsel %vm4563, %v4531, %v4599
        %v4632 = vsel %vm4564, %v4532, %v4600
        %v4633 = vsel %vm4565, %v4533, %v4601
        %v4634 = vsel %vm4566, %v4534, %v4602
        %v4635 = vsel %vm4567, %v4535, %v4603
        %v4636 = vsel %vm4568, %v4536, %v4604
        %v4637 = vsel %vm4569, %v4537, %v4605
        %v4638 = vsel %vm4570, %v4538, %v4606
        %v4639 = vsel %vm4571, %v4539, %v4607
        %v4640 = vsel %vm4572, %v4540, %v4608
        %v4641 = vsel %vm4573, %v4541, %v4609
        %v4642 = vsel %vm4574, %v4542, %v4610
        %v4643 = vsel %vm4575, %v4543, %v4611
        %4644 = vst [vmem:[%s217] sm:$0xff] %v4612
        %4645 = vst [vmem:[%s217 + $0x8] sm:$0xff] %v4613
        %4646 = vst [vmem:[%s217 + $0x10] sm:$0xff] %v4614
        %4647 = vst [vmem:[%s217 + $0x18] sm:$0xff] %v4615
        %4648 = vst [vmem:[%s217 + $0x20] sm:$0xff] %v4616
        %4649 = vst [vmem:[%s217 + $0x28] sm:$0xff] %v4617
        %4650 = vst [vmem:[%s217 + $0x30] sm:$0xff] %v4618
        %4651 = vst [vmem:[%s217 + $0x38] sm:$0xff] %v4619
        %4652 = vst [vmem:[%s217 + $0x40] sm:$0xff] %v4620
        %4653 = vst [vmem:[%s217 + $0x48] sm:$0xff] %v4621
        %4654 = vst [vmem:[%s217 + $0x50] sm:$0xff] %v4622
        %4655 = vst [vmem:[%s217 + $0x58] sm:$0xff] %v4623
        %4656 = vst [vmem:[%s217 + $0x60] sm:$0xff] %v4624
        %4657 = vst [vmem:[%s217 + $0x68] sm:$0xff] %v4625
        %4658 = vst [vmem:[%s217 + $0x70] sm:$0xff] %v4626
        %4659 = vst [vmem:[%s217 + $0x78] sm:$0xff] %v4627
        %4660 = vst [vmem:[%s217 + $0x80] sm:$0xff] %v4628
        %4661 = vst [vmem:[%s217 + $0x88] sm:$0xff] %v4629
        %4662 = vst [vmem:[%s217 + $0x90] sm:$0xff] %v4630
        %4663 = vst [vmem:[%s217 + $0x98] sm:$0xff] %v4631
        %4664 = vst [vmem:[%s217 + $0xa0] sm:$0xff] %v4632
        %4665 = vst [vmem:[%s217 + $0xa8] sm:$0xff] %v4633
        %4666 = vst [vmem:[%s217 + $0xb0] sm:$0xff] %v4634
        %4667 = vst [vmem:[%s217 + $0xb8] sm:$0xff] %v4635
        %4668 = vst [vmem:[%s217 + $0xc0] sm:$0xff] %v4636
        %4669 = vst [vmem:[%s217 + $0xc8] sm:$0xff] %v4637
        %4670 = vst [vmem:[%s217 + $0xd0] sm:$0xff] %v4638
        %4671 = vst [vmem:[%s217 + $0xd8] sm:$0xff] %v4639
        %4672 = vst [vmem:[%s217 + $0xe0] sm:$0xff] %v4640
        %4673 = vst [vmem:[%s217 + $0xe8] sm:$0xff] %v4641
        %4674 = vst [vmem:[%s217 + $0xf0] sm:$0xff] %v4642
        %4675 = vst [vmem:[%s217 + $0xf8] sm:$0xff] %v4643
        %s4676 = sand.u32 %s137, 1
        %s4677 = scalar_lea.sflag [#allocation3], %s4676
        %s4678 = sand.u32 %s137, 1
        %s4679 = smul.addr %s4678, 256
        %s4680 = scalar_lea.vmem [#allocation2], %s4679
        // Predicated region
        $region41: #{tpu_custom_call.1} parent=39 // pred_check
          %p4681 = pneg %p147
        $region42: #{tpu_custom_call.1} parent=39 // pred_check_branch
          %4683 = sbr.rel (%p4681) target = $region44
        $region43: #{tpu_custom_call.1} parent=39 // pred_region
          %4685 = vsyncadd %s4677, 0
          %s4686 = smul.addr %s19, 32
          %s4687 = smul.addr %s4686, 8
          %s4688 = scalar_lea.hbm %s5, %s4687
          %s4689 = sshll.u32 %s4680, 4
          %s4690 = int_to_ptr.vmem [resolvable:$true] %s4689
          %s4691 = sshll.u32 %s4688, 4
          %s4692 = int_to_ptr.hbm [resolvable:$true] %s4691
          %4697 = dma.vmem_to_hbm [thread:$0]  %s4690, 4096, %s4692, %s4677, 128, 128, 8
        $region44: #{tpu_custom_call.1} parent=39 // pred_fallthru
          _
      $region40: #{tpu_custom_call.1} parent=5 // pred_fallthru
        _
      %p4698 = scmp.le.s32.totalorder 2, %s14
      // Predicated region
      $region45: #{tpu_custom_call.1} parent=5 // pred_check
        %p4699 = pneg %p4698
      $region46: #{tpu_custom_call.1} parent=5 // pred_check_branch
        %4701 = sbr.rel (%p4699) target = $region48
      $region47: #{tpu_custom_call.1} parent=5 // pred_region
        %s4702 = ssub.s32 %s14, 2
        // Predicated region
        $region49: #{tpu_custom_call.1} parent=47 // pred_check
          %p4703 = pneg %p153
        $region50: #{tpu_custom_call.1} parent=47 // pred_check_branch
          %4705 = sbr.rel (%p4703) target = $region52
        $region51: #{tpu_custom_call.1} parent=47 // pred_region
          %s4706 = sand.u32 %s138, 1
          %s4707 = scalar_lea.sflag [#allocation3], %s4706
          %s4708 = sand.u32 %s138, 1
          %s4709 = smul.addr %s4708, 256
          %s4710 = scalar_lea.vmem [#allocation2], %s4709
          %4712 = dma.done %s4707, 4096
        $region52: #{tpu_custom_call.1} parent=47 // pred_fallthru
          _
      $region48: #{tpu_custom_call.1} parent=5 // pred_fallthru
        _
    $region6: #{tpu_custom_call.1} parent=1 // loop_footer
      %s18 = sadd.s32 1, %s14
    $region7: #{tpu_custom_call.1} parent=1 // loop_footer_branch
      %13 = sbr.rel target = $region3
    $region8: #{tpu_custom_call.1} parent=1 // loop_exit
      _
    %4713 = vsyncpa [#allocation3], 1
    %s4714 = scalar_lea.sflag [#allocation3], 1
    %4715 = vsyncpa %s4714, 1

</llo_original>
